<compile_context>
chip_gen: v5e
topology: v5e:2x2
jax: 0.10.0
libtpu: 0.0.40
codegen_flags: <defaults>
</compile_context>

<pallas_src>
import functools

import jax
import jax.numpy as jnp
from jax.experimental import pallas as pl
from jax.experimental.pallas import tpu as pltpu


def _sigmoid(v):
    # sigmoid(v) == 0.5 * tanh(0.5 * v) + 0.5 : one EUP op per element.
    return 0.5 * jnp.tanh(0.5 * v) + 0.5


def ebm_kernel(
    x_ref, y_ref,
    w1, b1, w2, b2, w3, b3, w4, b4,     # g_1 params ([out,in] bf16, [out,1] f32)
    w5, b5, w6, b6, w7, b7, w8, b8,     # g_2 params (w5 is f32, VPU path)
    out_ref,
    *, act_dtype,
):
    f32 = jnp.float32
    bf16 = jnp.bfloat16

    def dense_sigmoid(h_t, w_ref, b_ref):
        # h_t: [K, TM] (batch on lanes); w: [N, K] bf16; b: [N, 1] f32.
        acc = jnp.dot(w_ref[...], h_t.astype(bf16), preferred_element_type=f32)
        v = (acc + b_ref[...]).astype(act_dtype)
        return _sigmoid(v)

    # ---- g_1 branch: x -> g1(x), computed transposed ([feat, batch]) -------
    h = dense_sigmoid(x_ref[...], w1, b1)          # [256, TM]
    h = dense_sigmoid(h, w2, b2)                   # [256, TM]
    h = dense_sigmoid(h, w3, b3)                   # [128, TM]
    g1 = jnp.dot(w4[...], h.astype(bf16),
                 preferred_element_type=f32) + b4[...]          # [1, TM]

    # ---- g_2 branch: y -> yn -----------------------------------------------
    y_row = y_ref[...].astype(f32)                               # [1, TM]
    # First layer has K=1: VPU broadcast multiply instead of an MXU pass.
    v0 = (w5[...] * y_row + b5[...]).astype(act_dtype)           # [128, TM]
    z = _sigmoid(v0)
    z = dense_sigmoid(z, w6, b6)                   # [128, TM]
    z = dense_sigmoid(z, w7, b7)                   # [128, TM]
    yn = jnp.dot(w8[...], z.astype(bf16),
                 preferred_element_type=f32) + b8[...]           # [1, TM]

    # ---- combine: energy = 0.5 * (g1(x) - (y + yn))^2  (lane-dense row) ----
    diff = g1 - (y_row + yn)
    out_ref[...] = 0.5 * diff * diff               # [1, TM], f32


def init_params(key, in_features=32):
    """PyTorch-Linear-style init: U(+-1/sqrt(fan_in)) for W and b.

    Weights stored in PyTorch layout [out, in] (the kernel computes
    W @ h_t + b on batch-in-lanes activations), biases as [out, 1] columns.
    MXU-bound weights are bf16; the g_2 input-layer weight (VPU path) and all
    biases stay f32.
    """
    g1_dims = [(in_features, 256), (256, 256), (256, 128), (128, 1)]
    g2_dims = [(1, 128), (128, 128), (128, 128), (128, 1)]
    params = []
    for idx, (fan_in, fan_out) in enumerate(g1_dims + g2_dims):
        key, kw, kb = jax.random.split(key, 3)
        bound = 1.0 / (fan_in ** 0.5)
        w = jax.random.uniform(kw, (fan_out, fan_in), jnp.float32, -bound, bound)
        b = jax.random.uniform(kb, (fan_out, 1), jnp.float32, -bound, bound)
        is_g2_input_layer = idx == len(g1_dims)    # [128, 1] weight, VPU path
        params += [w if is_g2_input_layer else w.astype(jnp.bfloat16), b]
    return params


def _round_up(n, m):
    return ((n + m - 1) // m) * m


def _default_act_dtype():
    """bf16 elementwise/tanh where the chip has a bf16 VPU/EUP (v6e, v7x);
    f32 on v5e and older."""
    try:
        kind = jax.devices()[0].device_kind.lower()
    except Exception:
        return jnp.float32
    if any(v in kind for v in ("v2", "v3", "v4", "v5")):
        return jnp.float32
    return jnp.bfloat16


def ebm_forward(x, y, params, tm=1024, act_dtype=None):
    """x: [B, in_features], y: [B] (or [B, 1])  ->  energy: [B]"""
    if act_dtype is None:
        act_dtype = _default_act_dtype()

    B, F = x.shape
    x = x.astype(jnp.float32)
    y = y.astype(jnp.float32).reshape(-1)

    # Batch tile on lanes: multiple of 128; target >= 2 grid steps once the
    # batch is big enough (v7x megacore on the "parallel" axis), capped at
    # `tm` so intermediates stay well inside scoped VMEM on every chip.
    TM = _round_up(max(min(tm, _round_up(pl.cdiv(B, 2), 128)), 128), 128)
    Bp = _round_up(B, TM)
    if Bp != B:
        x = jnp.pad(x, ((0, Bp - B), (0, 0)))
        y = jnp.pad(y, (0, Bp - B))
    x_t = x.T                       # [F, Bp]  (batch on lanes)
    y_row = y.reshape(1, Bp)        # [1, Bp]
    grid = (Bp // TM,)

    # Lane-dense batch-tiled activations; weights/biases stay VMEM-resident
    # across grid steps (constant index_map).
    in_specs = [
        pl.BlockSpec((F, TM), lambda i: (0, i)),
        pl.BlockSpec((1, TM), lambda i: (0, i)),
    ] + [pl.BlockSpec(p.shape, lambda i: (0, 0)) for p in params]
    out_spec = pl.BlockSpec((1, TM), lambda i: (0, i))

    # Advisory cost estimate (MACs*2; tanh count) so XLA schedules the call
    # sensibly around neighbouring ops.
    flops_per_row = 2 * (F * 256 + 256 * 256 + 256 * 128 + 128 * 1
                         + 1 * 128 + 128 * 128 + 128 * 128 + 128 * 1)
    trans_per_row = 256 + 256 + 128 + 128 + 128 + 128       # tanh per row
    weight_bytes = int(sum(int(p.size) * p.dtype.itemsize for p in params))
    cost = pl.CostEstimate(
        flops=int(flops_per_row * Bp),
        transcendentals=int(trans_per_row * Bp),
        bytes_accessed=int(weight_bytes + Bp * (F + 1 + 1) * 4),
    )

    out = pl.pallas_call(
        functools.partial(ebm_kernel, act_dtype=act_dtype),
        out_shape=jax.ShapeDtypeStruct((1, Bp), jnp.float32),
        grid=grid,
        in_specs=in_specs,
        out_specs=out_spec,
        compiler_params=pltpu.CompilerParams(
            dimension_semantics=("parallel",),       # v7x: shard batch over 2 TCs
            vmem_limit_bytes=32 * 1024 * 1024,       # explicit; > v5e's 16 MiB default
        ),
        cost_estimate=cost,
    )(x_t, y_row, *params)

    return out[0, :B]     # matches the PyTorch output shape [B]


def ebm_reference(x, y, params):
    """Pure-JAX f32 reference mirroring the PyTorch forward (eval mode)."""
    (w1, b1, w2, b2, w3, b3, w4, b4,
     w5, b5, w6, b6, w7, b7, w8, b8) = [p.astype(jnp.float32) for p in params]
    xt = x.astype(jnp.float32).T
    h = jax.nn.sigmoid(w1 @ xt + b1)
    h = jax.nn.sigmoid(w2 @ h + b2)
    h = jax.nn.sigmoid(w3 @ h + b3)
    g1 = w4 @ h + b4
    yr = y.astype(jnp.float32).reshape(1, -1)
    z = jax.nn.sigmoid(w5 @ yr + b5)
    z = jax.nn.sigmoid(w6 @ z + b6)
    z = jax.nn.sigmoid(w7 @ z + b7)
    yn = w8 @ z + b8
    diff = g1 - (yr + yn)
    return (0.5 * diff * diff)[0]


if __name__ == "__main__":
    key = jax.random.PRNGKey(0)
    k_param, k_x, k_y = jax.random.split(key, 3)

    B, F = 16, 32
    x = jax.random.normal(k_x, (B, F), jnp.float32)
    y = jax.random.normal(k_y, (B,), jnp.float32)

    params = init_params(k_param, in_features=F)

    energy = ebm_forward(x, y, params)
    jax.block_until_ready(energy)

    ref = ebm_reference(x, y, params)

    assert energy.shape == (B,)
    assert bool(jnp.all(jnp.isfinite(energy)))
    assert bool(jnp.all(energy >= 0.0))
    # bf16 weights / bf16 tanh chain deviate slightly from the f32 reference.
    assert bool(jnp.allclose(energy, ref, rtol=1e-1, atol=1e-1))
    print("KERNEL_OK")
</pallas_src>

<mosaic_0001>
module attributes {stable_mosaic.version = 11 : i64} {
  func.func @ebm_kernel(%arg0: i32, %arg1: memref<32x128xf32, #tpu.memory_space<vmem>>, %arg2: memref<1x128xf32, #tpu.memory_space<vmem>>, %arg3: memref<256x32xbf16, #tpu.memory_space<vmem>>, %arg4: memref<256x1xf32, #tpu.memory_space<vmem>>, %arg5: memref<256x256xbf16, #tpu.memory_space<vmem>>, %arg6: memref<256x1xf32, #tpu.memory_space<vmem>>, %arg7: memref<128x256xbf16, #tpu.memory_space<vmem>>, %arg8: memref<128x1xf32, #tpu.memory_space<vmem>>, %arg9: memref<1x128xbf16, #tpu.memory_space<vmem>>, %arg10: memref<1x1xf32, #tpu.memory_space<vmem>>, %arg11: memref<128x1xf32, #tpu.memory_space<vmem>>, %arg12: memref<128x1xf32, #tpu.memory_space<vmem>>, %arg13: memref<128x128xbf16, #tpu.memory_space<vmem>>, %arg14: memref<128x1xf32, #tpu.memory_space<vmem>>, %arg15: memref<128x128xbf16, #tpu.memory_space<vmem>>, %arg16: memref<128x1xf32, #tpu.memory_space<vmem>>, %arg17: memref<1x128xbf16, #tpu.memory_space<vmem>>, %arg18: memref<1x1xf32, #tpu.memory_space<vmem>>, %arg19: memref<1x128xf32, #tpu.memory_space<vmem>>) attributes {dimension_semantics = [#tpu.dimension_semantics<parallel>], iteration_bounds = array<i64: 1>, scalar_prefetch = 0 : i64, scratch_operands = 0 : i64, tpu.core_type = #tpu.core_type<tc>, window_params = [{transform_indices = @transform_0, window_bounds = array<i64: 32, 128>}, {transform_indices = @transform_1, window_bounds = array<i64: 1, 128>}, {pipeline_mode = #tpu.pipeline_mode<synchronous>, transform_indices = @transform_2, window_bounds = array<i64: 256, 32>}, {pipeline_mode = #tpu.pipeline_mode<synchronous>, transform_indices = @transform_3, window_bounds = array<i64: 256, 1>}, {pipeline_mode = #tpu.pipeline_mode<synchronous>, transform_indices = @transform_4, window_bounds = array<i64: 256, 256>}, {pipeline_mode = #tpu.pipeline_mode<synchronous>, transform_indices = @transform_5, window_bounds = array<i64: 256, 1>}, {pipeline_mode = #tpu.pipeline_mode<synchronous>, transform_indices = @transform_6, window_bounds = array<i64: 128, 256>}, {pipeline_mode = #tpu.pipeline_mode<synchronous>, transform_indices = @transform_7, window_bounds = array<i64: 128, 1>}, {pipeline_mode = #tpu.pipeline_mode<synchronous>, transform_indices = @transform_8, window_bounds = array<i64: 1, 128>}, {pipeline_mode = #tpu.pipeline_mode<synchronous>, transform_indices = @transform_9, window_bounds = array<i64: 1, 1>}, {pipeline_mode = #tpu.pipeline_mode<synchronous>, transform_indices = @transform_10, window_bounds = array<i64: 128, 1>}, {pipeline_mode = #tpu.pipeline_mode<synchronous>, transform_indices = @transform_11, window_bounds = array<i64: 128, 1>}, {pipeline_mode = #tpu.pipeline_mode<synchronous>, transform_indices = @transform_12, window_bounds = array<i64: 128, 128>}, {pipeline_mode = #tpu.pipeline_mode<synchronous>, transform_indices = @transform_13, window_bounds = array<i64: 128, 1>}, {pipeline_mode = #tpu.pipeline_mode<synchronous>, transform_indices = @transform_14, window_bounds = array<i64: 128, 128>}, {pipeline_mode = #tpu.pipeline_mode<synchronous>, transform_indices = @transform_15, window_bounds = array<i64: 128, 1>}, {pipeline_mode = #tpu.pipeline_mode<synchronous>, transform_indices = @transform_16, window_bounds = array<i64: 1, 128>}, {pipeline_mode = #tpu.pipeline_mode<synchronous>, transform_indices = @transform_17, window_bounds = array<i64: 1, 1>}, {transform_indices = @transform_18, window_bounds = array<i64: 1, 128>}]} {
    %c0 = arith.constant 0 : index
    %c0_0 = arith.constant 0 : index
    %0 = vector.load %arg1[%c0, %c0_0] : memref<32x128xf32, #tpu.memory_space<vmem>>, vector<32x128xf32>
    %c0_1 = arith.constant 0 : index
    %c0_2 = arith.constant 0 : index
    %1 = vector.load %arg3[%c0_1, %c0_2] : memref<256x32xbf16, #tpu.memory_space<vmem>>, vector<256x32xbf16>
    %2 = arith.truncf %0 : vector<32x128xf32> to vector<32x128xbf16>
    %cst = arith.constant dense<0.000000e+00> : vector<256x128xf32>
    %3 = tpu.matmul %1, %2, %cst {dimension_numbers = #tpu.dot_dimension_numbers<[1], [0], [0], [1], [0, 0, 1, 1], [], []>} : vector<256x32xbf16>, vector<32x128xbf16>, vector<256x128xf32> -> vector<256x128xf32>
    %c0_3 = arith.constant 0 : index
    %c0_4 = arith.constant 0 : index
    %4 = vector.load %arg4[%c0_3, %c0_4] : memref<256x1xf32, #tpu.memory_space<vmem>>, vector<256x1xf32>
    %5 = vector.broadcast %4 : vector<256x1xf32> to vector<256x128xf32>
    %6 = arith.addf %3, %5 : vector<256x128xf32>
    %7 = arith.truncf %6 : vector<256x128xf32> to vector<256x128xbf16>
    %cst_5 = arith.constant 5.000000e-01 : bf16
    %8 = vector.broadcast %cst_5 : bf16 to vector<256x128xbf16>
    %9 = arith.mulf %8, %7 : vector<256x128xbf16>
    %10 = math.tanh %9 : vector<256x128xbf16>
    %cst_6 = arith.constant 5.000000e-01 : bf16
    %11 = vector.broadcast %cst_6 : bf16 to vector<256x128xbf16>
    %12 = arith.mulf %11, %10 : vector<256x128xbf16>
    %cst_7 = arith.constant 5.000000e-01 : bf16
    %13 = vector.broadcast %cst_7 : bf16 to vector<256x128xbf16>
    %14 = arith.addf %12, %13 : vector<256x128xbf16>
    %c0_8 = arith.constant 0 : index
    %c0_9 = arith.constant 0 : index
    %15 = vector.load %arg5[%c0_8, %c0_9] : memref<256x256xbf16, #tpu.memory_space<vmem>>, vector<256x256xbf16>
    %cst_10 = arith.constant dense<0.000000e+00> : vector<256x128xf32>
    %16 = tpu.matmul %15, %14, %cst_10 {dimension_numbers = #tpu.dot_dimension_numbers<[1], [0], [0], [1], [0, 0, 1, 1], [], []>} : vector<256x256xbf16>, vector<256x128xbf16>, vector<256x128xf32> -> vector<256x128xf32>
    %c0_11 = arith.constant 0 : index
    %c0_12 = arith.constant 0 : index
    %17 = vector.load %arg6[%c0_11, %c0_12] : memref<256x1xf32, #tpu.memory_space<vmem>>, vector<256x1xf32>
    %18 = vector.broadcast %17 : vector<256x1xf32> to vector<256x128xf32>
    %19 = arith.addf %16, %18 : vector<256x128xf32>
    %20 = arith.truncf %19 : vector<256x128xf32> to vector<256x128xbf16>
    %cst_13 = arith.constant 5.000000e-01 : bf16
    %21 = vector.broadcast %cst_13 : bf16 to vector<256x128xbf16>
    %22 = arith.mulf %21, %20 : vector<256x128xbf16>
    %23 = math.tanh %22 : vector<256x128xbf16>
    %cst_14 = arith.constant 5.000000e-01 : bf16
    %24 = vector.broadcast %cst_14 : bf16 to vector<256x128xbf16>
    %25 = arith.mulf %24, %23 : vector<256x128xbf16>
    %cst_15 = arith.constant 5.000000e-01 : bf16
    %26 = vector.broadcast %cst_15 : bf16 to vector<256x128xbf16>
    %27 = arith.addf %25, %26 : vector<256x128xbf16>
    %c0_16 = arith.constant 0 : index
    %c0_17 = arith.constant 0 : index
    %28 = vector.load %arg7[%c0_16, %c0_17] : memref<128x256xbf16, #tpu.memory_space<vmem>>, vector<128x256xbf16>
    %cst_18 = arith.constant dense<0.000000e+00> : vector<128x128xf32>
    %29 = tpu.matmul %28, %27, %cst_18 {dimension_numbers = #tpu.dot_dimension_numbers<[1], [0], [0], [1], [0, 0, 1, 1], [], []>} : vector<128x256xbf16>, vector<256x128xbf16>, vector<128x128xf32> -> vector<128x128xf32>
    %c0_19 = arith.constant 0 : index
    %c0_20 = arith.constant 0 : index
    %30 = vector.load %arg8[%c0_19, %c0_20] : memref<128x1xf32, #tpu.memory_space<vmem>>, vector<128x1xf32>
    %31 = vector.broadcast %30 : vector<128x1xf32> to vector<128x128xf32>
    %32 = arith.addf %29, %31 : vector<128x128xf32>
    %33 = arith.truncf %32 : vector<128x128xf32> to vector<128x128xbf16>
    %cst_21 = arith.constant 5.000000e-01 : bf16
    %34 = vector.broadcast %cst_21 : bf16 to vector<128x128xbf16>
    %35 = arith.mulf %34, %33 : vector<128x128xbf16>
    %36 = math.tanh %35 : vector<128x128xbf16>
    %cst_22 = arith.constant 5.000000e-01 : bf16
    %37 = vector.broadcast %cst_22 : bf16 to vector<128x128xbf16>
    %38 = arith.mulf %37, %36 : vector<128x128xbf16>
    %cst_23 = arith.constant 5.000000e-01 : bf16
    %39 = vector.broadcast %cst_23 : bf16 to vector<128x128xbf16>
    %40 = arith.addf %38, %39 : vector<128x128xbf16>
    %c0_24 = arith.constant 0 : index
    %c0_25 = arith.constant 0 : index
    %41 = vector.load %arg9[%c0_24, %c0_25] : memref<1x128xbf16, #tpu.memory_space<vmem>>, vector<1x128xbf16>
    %cst_26 = arith.constant dense<0.000000e+00> : vector<1x128xf32>
    %42 = tpu.matmul %41, %40, %cst_26 {dimension_numbers = #tpu.dot_dimension_numbers<[1], [0], [0], [1], [0, 0, 1, 1], [], []>} : vector<1x128xbf16>, vector<128x128xbf16>, vector<1x128xf32> -> vector<1x128xf32>
    %c0_27 = arith.constant 0 : index
    %c0_28 = arith.constant 0 : index
    %43 = vector.load %arg10[%c0_27, %c0_28] : memref<1x1xf32, #tpu.memory_space<vmem>>, vector<1x1xf32>
    %44 = vector.broadcast %43 : vector<1x1xf32> to vector<1x128xf32>
    %45 = arith.addf %42, %44 : vector<1x128xf32>
    %c0_29 = arith.constant 0 : index
    %c0_30 = arith.constant 0 : index
    %46 = vector.load %arg2[%c0_29, %c0_30] : memref<1x128xf32, #tpu.memory_space<vmem>>, vector<1x128xf32>
    %c0_31 = arith.constant 0 : index
    %c0_32 = arith.constant 0 : index
    %47 = vector.load %arg11[%c0_31, %c0_32] : memref<128x1xf32, #tpu.memory_space<vmem>>, vector<128x1xf32>
    %48 = vector.broadcast %47 : vector<128x1xf32> to vector<128x128xf32>
    %49 = vector.broadcast %46 : vector<1x128xf32> to vector<128x128xf32>
    %50 = arith.mulf %48, %49 : vector<128x128xf32>
    %c0_33 = arith.constant 0 : index
    %c0_34 = arith.constant 0 : index
    %51 = vector.load %arg12[%c0_33, %c0_34] : memref<128x1xf32, #tpu.memory_space<vmem>>, vector<128x1xf32>
    %52 = vector.broadcast %51 : vector<128x1xf32> to vector<128x128xf32>
    %53 = arith.addf %50, %52 : vector<128x128xf32>
    %54 = arith.truncf %53 : vector<128x128xf32> to vector<128x128xbf16>
    %cst_35 = arith.constant 5.000000e-01 : bf16
    %55 = vector.broadcast %cst_35 : bf16 to vector<128x128xbf16>
    %56 = arith.mulf %55, %54 : vector<128x128xbf16>
    %57 = math.tanh %56 : vector<128x128xbf16>
    %cst_36 = arith.constant 5.000000e-01 : bf16
    %58 = vector.broadcast %cst_36 : bf16 to vector<128x128xbf16>
    %59 = arith.mulf %58, %57 : vector<128x128xbf16>
    %cst_37 = arith.constant 5.000000e-01 : bf16
    %60 = vector.broadcast %cst_37 : bf16 to vector<128x128xbf16>
    %61 = arith.addf %59, %60 : vector<128x128xbf16>
    %c0_38 = arith.constant 0 : index
    %c0_39 = arith.constant 0 : index
    %62 = vector.load %arg13[%c0_38, %c0_39] : memref<128x128xbf16, #tpu.memory_space<vmem>>, vector<128x128xbf16>
    %cst_40 = arith.constant dense<0.000000e+00> : vector<128x128xf32>
    %63 = tpu.matmul %62, %61, %cst_40 {dimension_numbers = #tpu.dot_dimension_numbers<[1], [0], [0], [1], [0, 0, 1, 1], [], []>} : vector<128x128xbf16>, vector<128x128xbf16>, vector<128x128xf32> -> vector<128x128xf32>
    %c0_41 = arith.constant 0 : index
    %c0_42 = arith.constant 0 : index
    %64 = vector.load %arg14[%c0_41, %c0_42] : memref<128x1xf32, #tpu.memory_space<vmem>>, vector<128x1xf32>
    %65 = vector.broadcast %64 : vector<128x1xf32> to vector<128x128xf32>
    %66 = arith.addf %63, %65 : vector<128x128xf32>
    %67 = arith.truncf %66 : vector<128x128xf32> to vector<128x128xbf16>
    %cst_43 = arith.constant 5.000000e-01 : bf16
    %68 = vector.broadcast %cst_43 : bf16 to vector<128x128xbf16>
    %69 = arith.mulf %68, %67 : vector<128x128xbf16>
    %70 = math.tanh %69 : vector<128x128xbf16>
    %cst_44 = arith.constant 5.000000e-01 : bf16
    %71 = vector.broadcast %cst_44 : bf16 to vector<128x128xbf16>
    %72 = arith.mulf %71, %70 : vector<128x128xbf16>
    %cst_45 = arith.constant 5.000000e-01 : bf16
    %73 = vector.broadcast %cst_45 : bf16 to vector<128x128xbf16>
    %74 = arith.addf %72, %73 : vector<128x128xbf16>
    %c0_46 = arith.constant 0 : index
    %c0_47 = arith.constant 0 : index
    %75 = vector.load %arg15[%c0_46, %c0_47] : memref<128x128xbf16, #tpu.memory_space<vmem>>, vector<128x128xbf16>
    %cst_48 = arith.constant dense<0.000000e+00> : vector<128x128xf32>
    %76 = tpu.matmul %75, %74, %cst_48 {dimension_numbers = #tpu.dot_dimension_numbers<[1], [0], [0], [1], [0, 0, 1, 1], [], []>} : vector<128x128xbf16>, vector<128x128xbf16>, vector<128x128xf32> -> vector<128x128xf32>
    %c0_49 = arith.constant 0 : index
    %c0_50 = arith.constant 0 : index
    %77 = vector.load %arg16[%c0_49, %c0_50] : memref<128x1xf32, #tpu.memory_space<vmem>>, vector<128x1xf32>
    %78 = vector.broadcast %77 : vector<128x1xf32> to vector<128x128xf32>
    %79 = arith.addf %76, %78 : vector<128x128xf32>
    %80 = arith.truncf %79 : vector<128x128xf32> to vector<128x128xbf16>
    %cst_51 = arith.constant 5.000000e-01 : bf16
    %81 = vector.broadcast %cst_51 : bf16 to vector<128x128xbf16>
    %82 = arith.mulf %81, %80 : vector<128x128xbf16>
    %83 = math.tanh %82 : vector<128x128xbf16>
    %cst_52 = arith.constant 5.000000e-01 : bf16
    %84 = vector.broadcast %cst_52 : bf16 to vector<128x128xbf16>
    %85 = arith.mulf %84, %83 : vector<128x128xbf16>
    %cst_53 = arith.constant 5.000000e-01 : bf16
    %86 = vector.broadcast %cst_53 : bf16 to vector<128x128xbf16>
    %87 = arith.addf %85, %86 : vector<128x128xbf16>
    %c0_54 = arith.constant 0 : index
    %c0_55 = arith.constant 0 : index
    %88 = vector.load %arg17[%c0_54, %c0_55] : memref<1x128xbf16, #tpu.memory_space<vmem>>, vector<1x128xbf16>
    %cst_56 = arith.constant dense<0.000000e+00> : vector<1x128xf32>
    %89 = tpu.matmul %88, %87, %cst_56 {dimension_numbers = #tpu.dot_dimension_numbers<[1], [0], [0], [1], [0, 0, 1, 1], [], []>} : vector<1x128xbf16>, vector<128x128xbf16>, vector<1x128xf32> -> vector<1x128xf32>
    %c0_57 = arith.constant 0 : index
    %c0_58 = arith.constant 0 : index
    %90 = vector.load %arg18[%c0_57, %c0_58] : memref<1x1xf32, #tpu.memory_space<vmem>>, vector<1x1xf32>
    %91 = vector.broadcast %90 : vector<1x1xf32> to vector<1x128xf32>
    %92 = arith.addf %89, %91 : vector<1x128xf32>
    %93 = arith.addf %46, %92 : vector<1x128xf32>
    %94 = arith.subf %45, %93 : vector<1x128xf32>
    %cst_59 = arith.constant 5.000000e-01 : f32
    %95 = vector.broadcast %cst_59 : f32 to vector<1x128xf32>
    %96 = arith.mulf %95, %94 : vector<1x128xf32>
    %97 = arith.mulf %96, %94 : vector<1x128xf32>
    %c0_60 = arith.constant 0 : index
    %c0_61 = arith.constant 0 : index
    %98 = vector.load %arg19[%c0_60, %c0_61] : memref<1x128xf32, #tpu.memory_space<vmem>>, vector<1x128xf32>
    tpu.vector_store %arg19[%c0_60, %c0_61], %97 {strides = array<i32>} : memref<1x128xf32, #tpu.memory_space<vmem>>, vector<1x128xf32>,
    return
  }
  func.func @transform_0(%arg0: i32) -> (i32, i32) {
    %c0_i32 = arith.constant 0 : i32
    %c0_i32_0 = arith.constant 0 : i32
    return %c0_i32, %arg0 : i32, i32
  }
  func.func @transform_1(%arg0: i32) -> (i32, i32) {
    %c0_i32 = arith.constant 0 : i32
    %c0_i32_0 = arith.constant 0 : i32
    return %c0_i32, %arg0 : i32, i32
  }
  func.func @transform_2(%arg0: i32) -> (i32, i32) {
    %c0_i32 = arith.constant 0 : i32
    %c0_i32_0 = arith.constant 0 : i32
    %c0_i32_1 = arith.constant 0 : i32
    return %c0_i32, %c0_i32_0 : i32, i32
  }
  func.func @transform_3(%arg0: i32) -> (i32, i32) {
    %c0_i32 = arith.constant 0 : i32
    %c0_i32_0 = arith.constant 0 : i32
    %c0_i32_1 = arith.constant 0 : i32
    return %c0_i32, %c0_i32_0 : i32, i32
  }
  func.func @transform_4(%arg0: i32) -> (i32, i32) {
    %c0_i32 = arith.constant 0 : i32
    %c0_i32_0 = arith.constant 0 : i32
    %c0_i32_1 = arith.constant 0 : i32
    return %c0_i32, %c0_i32_0 : i32, i32
  }
  func.func @transform_5(%arg0: i32) -> (i32, i32) {
    %c0_i32 = arith.constant 0 : i32
    %c0_i32_0 = arith.constant 0 : i32
    %c0_i32_1 = arith.constant 0 : i32
    return %c0_i32, %c0_i32_0 : i32, i32
  }
  func.func @transform_6(%arg0: i32) -> (i32, i32) {
    %c0_i32 = arith.constant 0 : i32
    %c0_i32_0 = arith.constant 0 : i32
    %c0_i32_1 = arith.constant 0 : i32
    return %c0_i32, %c0_i32_0 : i32, i32
  }
  func.func @transform_7(%arg0: i32) -> (i32, i32) {
    %c0_i32 = arith.constant 0 : i32
    %c0_i32_0 = arith.constant 0 : i32
    %c0_i32_1 = arith.constant 0 : i32
    return %c0_i32, %c0_i32_0 : i32, i32
  }
  func.func @transform_8(%arg0: i32) -> (i32, i32) {
    %c0_i32 = arith.constant 0 : i32
    %c0_i32_0 = arith.constant 0 : i32
    %c0_i32_1 = arith.constant 0 : i32
    return %c0_i32, %c0_i32_0 : i32, i32
  }
  func.func @transform_9(%arg0: i32) -> (i32, i32) {
    %c0_i32 = arith.constant 0 : i32
    %c0_i32_0 = arith.constant 0 : i32
    %c0_i32_1 = arith.constant 0 : i32
    return %c0_i32, %c0_i32_0 : i32, i32
  }
  func.func @transform_10(%arg0: i32) -> (i32, i32) {
    %c0_i32 = arith.constant 0 : i32
    %c0_i32_0 = arith.constant 0 : i32
    %c0_i32_1 = arith.constant 0 : i32
    return %c0_i32, %c0_i32_0 : i32, i32
  }
  func.func @transform_11(%arg0: i32) -> (i32, i32) {
    %c0_i32 = arith.constant 0 : i32
    %c0_i32_0 = arith.constant 0 : i32
    %c0_i32_1 = arith.constant 0 : i32
    return %c0_i32, %c0_i32_0 : i32, i32
  }
  func.func @transform_12(%arg0: i32) -> (i32, i32) {
    %c0_i32 = arith.constant 0 : i32
    %c0_i32_0 = arith.constant 0 : i32
    %c0_i32_1 = arith.constant 0 : i32
    return %c0_i32, %c0_i32_0 : i32, i32
  }
  func.func @transform_13(%arg0: i32) -> (i32, i32) {
    %c0_i32 = arith.constant 0 : i32
    %c0_i32_0 = arith.constant 0 : i32
    %c0_i32_1 = arith.constant 0 : i32
    return %c0_i32, %c0_i32_0 : i32, i32
  }
  func.func @transform_14(%arg0: i32) -> (i32, i32) {
    %c0_i32 = arith.constant 0 : i32
    %c0_i32_0 = arith.constant 0 : i32
    %c0_i32_1 = arith.constant 0 : i32
    return %c0_i32, %c0_i32_0 : i32, i32
  }
  func.func @transform_15(%arg0: i32) -> (i32, i32) {
    %c0_i32 = arith.constant 0 : i32
    %c0_i32_0 = arith.constant 0 : i32
    %c0_i32_1 = arith.constant 0 : i32
    return %c0_i32, %c0_i32_0 : i32, i32
  }
  func.func @transform_16(%arg0: i32) -> (i32, i32) {
    %c0_i32 = arith.constant 0 : i32
    %c0_i32_0 = arith.constant 0 : i32
    %c0_i32_1 = arith.constant 0 : i32
    return %c0_i32, %c0_i32_0 : i32, i32
  }
  func.func @transform_17(%arg0: i32) -> (i32, i32) {
    %c0_i32 = arith.constant 0 : i32
    %c0_i32_0 = arith.constant 0 : i32
    %c0_i32_1 = arith.constant 0 : i32
    return %c0_i32, %c0_i32_0 : i32, i32
  }
  func.func @transform_18(%arg0: i32) -> (i32, i32) {
    %c0_i32 = arith.constant 0 : i32
    %c0_i32_0 = arith.constant 0 : i32
    return %c0_i32, %arg0 : i32, i32
  }
}

</mosaic_0001>

<llo_original>
// kernel: tpu_custom_call.1
$region0: #{tpu_custom_call.1}
  #allocation0 [shape = 'u32[]', space=smem, size = 0x4, offset = 0x4, fixed_abs, tag = 'smem constant byte address 0x4 - core index']
  #allocation1 [shape = 'u32[72,128]{1,0:T(1,128)}', space=vmem, size = 0x9000, scoped, tag = 'internal scratch']
  #allocation2 [shape = 'f32[1,1]{1,0:T(1,128)S(1)}', space=vmem, size = 0x200, scoped, tag = 'scoped memory for tpu_custom_call.1']
  #allocation3 [shape = 'f32[1,1]{1,0:T(1,128)S(1)}', space=vmem, size = 0x200, scoped, tag = 'scoped memory for tpu_custom_call.1']
  %s0 = inlined_call_operand.vmem [shape: f32[32,128], index: 0, kind: input, shape index: {}]
  %s1 = inlined_call_operand.vmem [shape: f32[1,128], index: 1, kind: input, shape index: {}]
  %s2 = inlined_call_operand.vmem [shape: bf16[256,32], index: 2, kind: input, shape index: {}]
  %s3 = inlined_call_operand.vmem [shape: f32[256,1], index: 3, kind: input, shape index: {}]
  %s4 = inlined_call_operand.vmem [shape: bf16[256,256], index: 4, kind: input, shape index: {}]
  %s5 = inlined_call_operand.vmem [shape: f32[256,1], index: 5, kind: input, shape index: {}]
  %s6 = inlined_call_operand.vmem [shape: bf16[128,256], index: 6, kind: input, shape index: {}]
  %s7 = inlined_call_operand.vmem [shape: f32[128,1], index: 7, kind: input, shape index: {}]
  %s8 = inlined_call_operand.vmem [shape: bf16[1,128], index: 8, kind: input, shape index: {}]
  %s9 = inlined_call_operand.<no memory space> [shape: f32[1,1], index: 9, kind: input, shape index: {}]
  %s10 = inlined_call_operand.vmem [shape: f32[128,1], index: 10, kind: input, shape index: {}]
  %s11 = inlined_call_operand.vmem [shape: f32[128,1], index: 11, kind: input, shape index: {}]
  %s12 = inlined_call_operand.vmem [shape: bf16[128,128], index: 12, kind: input, shape index: {}]
  %s13 = inlined_call_operand.vmem [shape: f32[128,1], index: 13, kind: input, shape index: {}]
  %s14 = inlined_call_operand.vmem [shape: bf16[128,128], index: 14, kind: input, shape index: {}]
  %s15 = inlined_call_operand.vmem [shape: f32[128,1], index: 15, kind: input, shape index: {}]
  %s16 = inlined_call_operand.vmem [shape: bf16[1,128], index: 16, kind: input, shape index: {}]
  %s17 = inlined_call_operand.<no memory space> [shape: f32[1,1], index: 17, kind: input, shape index: {}]
  %s18 = inlined_call_operand.hbm [shape: f32[1,128], index: 18, kind: output, shape index: {}]
  %s19 = sld [smem:[#allocation0]]
  $region82: #{tpu_custom_call.1} parent=0
    _
  %s21 = ssub.s32 1, %s19
  %s22 = scalar_select 0, %s21, %s19
  %v23 = vstv %s9
  %24 = vst [vmem:[#allocation2] sm:$0x1] %v23
  %v25 = vstv %s17
  %26 = vst [vmem:[#allocation3] sm:$0x1] %v25
  $region1: #{tpu_custom_call.1} parent=0
    #allocation4 [shape = 'u8[512]{0}', space=vmem, size = 0x400, scoped, tag = 'output window, operand 0, single buffered']
    #allocation5 [shape = 's32[1]{0}', space=sflag, size = 0x4, scoped, tag = 'scoped memory for tpu_custom_call.1']
    %27 = vsyncpa [#allocation5], 0
    // Predicated region
    $region2: #{tpu_custom_call.1} parent=1 // pred_check
      _
    $region3: #{tpu_custom_call.1} parent=1 // pred_check_branch
      %29 = sbr.rel (0) target = $region5
    $region4: #{tpu_custom_call.1} parent=1 // pred_region
      _
    $region5: #{tpu_custom_call.1} parent=1 // pred_fallthru
      _
    // Predicated region
    $region6: #{tpu_custom_call.1} parent=1 // pred_check
      _
    $region7: #{tpu_custom_call.1} parent=1 // pred_check_branch
      %31 = sbr.rel (0) target = $region9
    $region8: #{tpu_custom_call.1} parent=1 // pred_region
      _
    $region9: #{tpu_custom_call.1} parent=1 // pred_fallthru
      _
    // Predicated region
    $region10: #{tpu_custom_call.1} parent=1 // pred_check
      _
    $region11: #{tpu_custom_call.1} parent=1 // pred_check_branch
      %33 = sbr.rel (0) target = $region13
    $region12: #{tpu_custom_call.1} parent=1 // pred_region
      _
    $region13: #{tpu_custom_call.1} parent=1 // pred_fallthru
      _
    // Predicated region
    $region14: #{tpu_custom_call.1} parent=1 // pred_check
      _
    $region15: #{tpu_custom_call.1} parent=1 // pred_check_branch
      %35 = sbr.rel (0) target = $region17
    $region16: #{tpu_custom_call.1} parent=1 // pred_region
      _
    $region17: #{tpu_custom_call.1} parent=1 // pred_fallthru
      _
    // Predicated region
    $region18: #{tpu_custom_call.1} parent=1 // pred_check
      _
    $region19: #{tpu_custom_call.1} parent=1 // pred_check_branch
      %37 = sbr.rel (0) target = $region21
    $region20: #{tpu_custom_call.1} parent=1 // pred_region
      _
    $region21: #{tpu_custom_call.1} parent=1 // pred_fallthru
      _
    // Predicated region
    $region22: #{tpu_custom_call.1} parent=1 // pred_check
      _
    $region23: #{tpu_custom_call.1} parent=1 // pred_check_branch
      %39 = sbr.rel (0) target = $region25
    $region24: #{tpu_custom_call.1} parent=1 // pred_region
      _
    $region25: #{tpu_custom_call.1} parent=1 // pred_fallthru
      _
    // Predicated region
    $region26: #{tpu_custom_call.1} parent=1 // pred_check
      _
    $region27: #{tpu_custom_call.1} parent=1 // pred_check_branch
      %41 = sbr.rel (0) target = $region29
    $region28: #{tpu_custom_call.1} parent=1 // pred_region
      _
    $region29: #{tpu_custom_call.1} parent=1 // pred_fallthru
      _
    // Predicated region
    $region30: #{tpu_custom_call.1} parent=1 // pred_check
      _
    $region31: #{tpu_custom_call.1} parent=1 // pred_check_branch
      %43 = sbr.rel (0) target = $region33
    $region32: #{tpu_custom_call.1} parent=1 // pred_region
      _
    $region33: #{tpu_custom_call.1} parent=1 // pred_fallthru
      _
    // Predicated region
    $region34: #{tpu_custom_call.1} parent=1 // pred_check
      _
    $region35: #{tpu_custom_call.1} parent=1 // pred_check_branch
      %45 = sbr.rel (0) target = $region37
    $region36: #{tpu_custom_call.1} parent=1 // pred_region
      _
    $region37: #{tpu_custom_call.1} parent=1 // pred_fallthru
      _
    // Predicated region
    $region38: #{tpu_custom_call.1} parent=1 // pred_check
      _
    $region39: #{tpu_custom_call.1} parent=1 // pred_check_branch
      %47 = sbr.rel (0) target = $region41
    $region40: #{tpu_custom_call.1} parent=1 // pred_region
      _
    $region41: #{tpu_custom_call.1} parent=1 // pred_fallthru
      _
    // Predicated region
    $region42: #{tpu_custom_call.1} parent=1 // pred_check
      _
    $region43: #{tpu_custom_call.1} parent=1 // pred_check_branch
      %49 = sbr.rel (0) target = $region45
    $region44: #{tpu_custom_call.1} parent=1 // pred_region
      _
    $region45: #{tpu_custom_call.1} parent=1 // pred_fallthru
      _
    // Predicated region
    $region46: #{tpu_custom_call.1} parent=1 // pred_check
      _
    $region47: #{tpu_custom_call.1} parent=1 // pred_check_branch
      %51 = sbr.rel (0) target = $region49
    $region48: #{tpu_custom_call.1} parent=1 // pred_region
      _
    $region49: #{tpu_custom_call.1} parent=1 // pred_fallthru
      _
    // Predicated region
    $region50: #{tpu_custom_call.1} parent=1 // pred_check
      _
    $region51: #{tpu_custom_call.1} parent=1 // pred_check_branch
      %53 = sbr.rel (0) target = $region53
    $region52: #{tpu_custom_call.1} parent=1 // pred_region
      _
    $region53: #{tpu_custom_call.1} parent=1 // pred_fallthru
      _
    // Predicated region
    $region54: #{tpu_custom_call.1} parent=1 // pred_check
      _
    $region55: #{tpu_custom_call.1} parent=1 // pred_check_branch
      %55 = sbr.rel (0) target = $region57
    $region56: #{tpu_custom_call.1} parent=1 // pred_region
      _
    $region57: #{tpu_custom_call.1} parent=1 // pred_fallthru
      _
    // Predicated region
    $region58: #{tpu_custom_call.1} parent=1 // pred_check
      _
    $region59: #{tpu_custom_call.1} parent=1 // pred_check_branch
      %57 = sbr.rel (0) target = $region61
    $region60: #{tpu_custom_call.1} parent=1 // pred_region
      _
    $region61: #{tpu_custom_call.1} parent=1 // pred_fallthru
      _
    // Predicated region
    $region62: #{tpu_custom_call.1} parent=1 // pred_check
      _
    $region63: #{tpu_custom_call.1} parent=1 // pred_check_branch
      %59 = sbr.rel (0) target = $region65
    $region64: #{tpu_custom_call.1} parent=1 // pred_region
      _
    $region65: #{tpu_custom_call.1} parent=1 // pred_fallthru
      _
    // Predicated region
    $region66: #{tpu_custom_call.1} parent=1 // pred_check
      _
    $region67: #{tpu_custom_call.1} parent=1 // pred_check_branch
      %61 = sbr.rel (0) target = $region69
    $region68: #{tpu_custom_call.1} parent=1 // pred_region
      _
    $region69: #{tpu_custom_call.1} parent=1 // pred_fallthru
      _
    // Predicated region
    $region70: #{tpu_custom_call.1} parent=1 // pred_check
      _
    $region71: #{tpu_custom_call.1} parent=1 // pred_check_branch
      %63 = sbr.rel (0) target = $region73
    $region72: #{tpu_custom_call.1} parent=1 // pred_region
      _
    $region73: #{tpu_custom_call.1} parent=1 // pred_fallthru
      _
    %v65 = vld [vmem:[%s0] sm:$0xff]
    %v66 = vld [vmem:[%s0 + $0x8] sm:$0xff]
    %v67 = vld [vmem:[%s0 + $0x10] sm:$0xff]
    %v68 = vld [vmem:[%s0 + $0x18] sm:$0xff]
    %v69 = vld [vmem:[%s2] sm:$0xf]
    %v70 = vld [vmem:[%s2 + $0x4] sm:$0xf]
    %v71 = vld [vmem:[%s2 + $0x8] sm:$0xf]
    %v72 = vld [vmem:[%s2 + $0xc] sm:$0xf]
    %v73 = vld [vmem:[%s2 + $0x10] sm:$0xf]
    %v74 = vld [vmem:[%s2 + $0x14] sm:$0xf]
    %v75 = vld [vmem:[%s2 + $0x18] sm:$0xf]
    %v76 = vld [vmem:[%s2 + $0x1c] sm:$0xf]
    %v77 = vld [vmem:[%s2 + $0x20] sm:$0xf]
    %v78 = vld [vmem:[%s2 + $0x24] sm:$0xf]
    %v79 = vld [vmem:[%s2 + $0x28] sm:$0xf]
    %v80 = vld [vmem:[%s2 + $0x2c] sm:$0xf]
    %v81 = vld [vmem:[%s2 + $0x30] sm:$0xf]
    %v82 = vld [vmem:[%s2 + $0x34] sm:$0xf]
    %v83 = vld [vmem:[%s2 + $0x38] sm:$0xf]
    %v84 = vld [vmem:[%s2 + $0x3c] sm:$0xf]
    %v85 = vld [vmem:[%s2 + $0x40] sm:$0xf]
    %v86 = vld [vmem:[%s2 + $0x44] sm:$0xf]
    %v87 = vld [vmem:[%s2 + $0x48] sm:$0xf]
    %v88 = vld [vmem:[%s2 + $0x4c] sm:$0xf]
    %v89 = vld [vmem:[%s2 + $0x50] sm:$0xf]
    %v90 = vld [vmem:[%s2 + $0x54] sm:$0xf]
    %v91 = vld [vmem:[%s2 + $0x58] sm:$0xf]
    %v92 = vld [vmem:[%s2 + $0x5c] sm:$0xf]
    %v93 = vld [vmem:[%s2 + $0x60] sm:$0xf]
    %v94 = vld [vmem:[%s2 + $0x64] sm:$0xf]
    %v95 = vld [vmem:[%s2 + $0x68] sm:$0xf]
    %v96 = vld [vmem:[%s2 + $0x6c] sm:$0xf]
    %v97 = vld [vmem:[%s2 + $0x70] sm:$0xf]
    %v98 = vld [vmem:[%s2 + $0x74] sm:$0xf]
    %v99 = vld [vmem:[%s2 + $0x78] sm:$0xf]
    %v100 = vld [vmem:[%s2 + $0x7c] sm:$0xf]
    %v101 = vpack.c.bf16 %v66, %v65
    %v102 = vpack.c.bf16 %v68, %v67
    %v103 = vld [vmem:[%s3] sm:$0xff]
    %v104 = vld [vmem:[%s3 + $0x8] sm:$0xff]
    %v105 = vld [vmem:[%s3 + $0x10] sm:$0xff]
    %v106 = vld [vmem:[%s3 + $0x18] sm:$0xff]
    %v107 = vld [vmem:[%s3 + $0x20] sm:$0xff]
    %v108 = vld [vmem:[%s3 + $0x28] sm:$0xff]
    %v109 = vld [vmem:[%s3 + $0x30] sm:$0xff]
    %v110 = vld [vmem:[%s3 + $0x38] sm:$0xff]
    %v111 = vld [vmem:[%s3 + $0x40] sm:$0xff]
    %v112 = vld [vmem:[%s3 + $0x48] sm:$0xff]
    %v113 = vld [vmem:[%s3 + $0x50] sm:$0xff]
    %v114 = vld [vmem:[%s3 + $0x58] sm:$0xff]
    %v115 = vld [vmem:[%s3 + $0x60] sm:$0xff]
    %v116 = vld [vmem:[%s3 + $0x68] sm:$0xff]
    %v117 = vld [vmem:[%s3 + $0x70] sm:$0xff]
    %v118 = vld [vmem:[%s3 + $0x78] sm:$0xff]
    %v119 = vld [vmem:[%s3 + $0x80] sm:$0xff]
    %v120 = vld [vmem:[%s3 + $0x88] sm:$0xff]
    %v121 = vld [vmem:[%s3 + $0x90] sm:$0xff]
    %v122 = vld [vmem:[%s3 + $0x98] sm:$0xff]
    %v123 = vld [vmem:[%s3 + $0xa0] sm:$0xff]
    %v124 = vld [vmem:[%s3 + $0xa8] sm:$0xff]
    %v125 = vld [vmem:[%s3 + $0xb0] sm:$0xff]
    %v126 = vld [vmem:[%s3 + $0xb8] sm:$0xff]
    %v127 = vld [vmem:[%s3 + $0xc0] sm:$0xff]
    %v128 = vld [vmem:[%s3 + $0xc8] sm:$0xff]
    %v129 = vld [vmem:[%s3 + $0xd0] sm:$0xff]
    %v130 = vld [vmem:[%s3 + $0xd8] sm:$0xff]
    %v131 = vld [vmem:[%s3 + $0xe0] sm:$0xff]
    %v132 = vld [vmem:[%s3 + $0xe8] sm:$0xff]
    %v133 = vld [vmem:[%s3 + $0xf0] sm:$0xff]
    %v134 = vld [vmem:[%s3 + $0xf8] sm:$0xff]
    %136 = vset.pattern.permute.xlu0 0
    %137 = vperm.xlu0 %136, %v103
    %v138 = vpop.permute.xlu0 %137
    %141 = vset.pattern.permute.xlu0 0
    %142 = vperm.xlu0 %141, %v104
    %v143 = vpop.permute.xlu0 %142
    %146 = vset.pattern.permute.xlu0 0
    %147 = vperm.xlu0 %146, %v105
    %v148 = vpop.permute.xlu0 %147
    %151 = vset.pattern.permute.xlu0 0
    %152 = vperm.xlu0 %151, %v106
    %v153 = vpop.permute.xlu0 %152
    %156 = vset.pattern.permute.xlu0 0
    %157 = vperm.xlu0 %156, %v107
    %v158 = vpop.permute.xlu0 %157
    %161 = vset.pattern.permute.xlu0 0
    %162 = vperm.xlu0 %161, %v108
    %v163 = vpop.permute.xlu0 %162
    %166 = vset.pattern.permute.xlu0 0
    %167 = vperm.xlu0 %166, %v109
    %v168 = vpop.permute.xlu0 %167
    %171 = vset.pattern.permute.xlu0 0
    %172 = vperm.xlu0 %171, %v110
    %v173 = vpop.permute.xlu0 %172
    %176 = vset.pattern.permute.xlu0 0
    %177 = vperm.xlu0 %176, %v111
    %v178 = vpop.permute.xlu0 %177
    %181 = vset.pattern.permute.xlu0 0
    %182 = vperm.xlu0 %181, %v112
    %v183 = vpop.permute.xlu0 %182
    %186 = vset.pattern.permute.xlu0 0
    %187 = vperm.xlu0 %186, %v113
    %v188 = vpop.permute.xlu0 %187
    %191 = vset.pattern.permute.xlu0 0
    %192 = vperm.xlu0 %191, %v114
    %v193 = vpop.permute.xlu0 %192
    %196 = vset.pattern.permute.xlu0 0
    %197 = vperm.xlu0 %196, %v115
    %v198 = vpop.permute.xlu0 %197
    %201 = vset.pattern.permute.xlu0 0
    %202 = vperm.xlu0 %201, %v116
    %v203 = vpop.permute.xlu0 %202
    %206 = vset.pattern.permute.xlu0 0
    %207 = vperm.xlu0 %206, %v117
    %v208 = vpop.permute.xlu0 %207
    %211 = vset.pattern.permute.xlu0 0
    %212 = vperm.xlu0 %211, %v118
    %v213 = vpop.permute.xlu0 %212
    %216 = vset.pattern.permute.xlu0 0
    %217 = vperm.xlu0 %216, %v119
    %v218 = vpop.permute.xlu0 %217
    %221 = vset.pattern.permute.xlu0 0
    %222 = vperm.xlu0 %221, %v120
    %v223 = vpop.permute.xlu0 %222
    %226 = vset.pattern.permute.xlu0 0
    %227 = vperm.xlu0 %226, %v121
    %v228 = vpop.permute.xlu0 %227
    %231 = vset.pattern.permute.xlu0 0
    %232 = vperm.xlu0 %231, %v122
    %v233 = vpop.permute.xlu0 %232
    %236 = vset.pattern.permute.xlu0 0
    %237 = vperm.xlu0 %236, %v123
    %v238 = vpop.permute.xlu0 %237
    %241 = vset.pattern.permute.xlu0 0
    %242 = vperm.xlu0 %241, %v124
    %v243 = vpop.permute.xlu0 %242
    %246 = vset.pattern.permute.xlu0 0
    %247 = vperm.xlu0 %246, %v125
    %v248 = vpop.permute.xlu0 %247
    %251 = vset.pattern.permute.xlu0 0
    %252 = vperm.xlu0 %251, %v126
    %v253 = vpop.permute.xlu0 %252
    %256 = vset.pattern.permute.xlu0 0
    %257 = vperm.xlu0 %256, %v127
    %v258 = vpop.permute.xlu0 %257
    %261 = vset.pattern.permute.xlu0 0
    %262 = vperm.xlu0 %261, %v128
    %v263 = vpop.permute.xlu0 %262
    %266 = vset.pattern.permute.xlu0 0
    %267 = vperm.xlu0 %266, %v129
    %v268 = vpop.permute.xlu0 %267
    %271 = vset.pattern.permute.xlu0 0
    %272 = vperm.xlu0 %271, %v130
    %v273 = vpop.permute.xlu0 %272
    %276 = vset.pattern.permute.xlu0 0
    %277 = vperm.xlu0 %276, %v131
    %v278 = vpop.permute.xlu0 %277
    %281 = vset.pattern.permute.xlu0 0
    %282 = vperm.xlu0 %281, %v132
    %v283 = vpop.permute.xlu0 %282
    %286 = vset.pattern.permute.xlu0 0
    %287 = vperm.xlu0 %286, %v133
    %v288 = vpop.permute.xlu0 %287
    %291 = vset.pattern.permute.xlu0 0
    %292 = vperm.xlu0 %291, %v134
    %v293 = vpop.permute.xlu0 %292
    %v327 = vunpack.c.l.b16 %v69
    %v328 = vunpack.c.l.b16 %v70
    %v329 = vunpack.c.l.b16 %v71
    %v330 = vunpack.c.l.b16 %v72
    %v331 = vunpack.c.l.b16 %v73
    %v332 = vunpack.c.l.b16 %v74
    %v333 = vunpack.c.l.b16 %v75
    %v334 = vunpack.c.l.b16 %v76
    %v335 = vunpack.c.l.b16 %v77
    %v336 = vunpack.c.l.b16 %v78
    %v337 = vunpack.c.l.b16 %v79
    %v338 = vunpack.c.l.b16 %v80
    %v339 = vunpack.c.l.b16 %v81
    %v340 = vunpack.c.l.b16 %v82
    %v341 = vunpack.c.l.b16 %v83
    %v342 = vunpack.c.l.b16 %v84
    %v343 = vunpack.c.l.b16 %v85
    %v344 = vunpack.c.l.b16 %v86
    %v345 = vunpack.c.l.b16 %v87
    %v346 = vunpack.c.l.b16 %v88
    %v347 = vunpack.c.l.b16 %v89
    %v348 = vunpack.c.l.b16 %v90
    %v349 = vunpack.c.l.b16 %v91
    %v350 = vunpack.c.l.b16 %v92
    %v351 = vunpack.c.l.b16 %v93
    %v352 = vunpack.c.l.b16 %v94
    %v353 = vunpack.c.l.b16 %v95
    %v354 = vunpack.c.l.b16 %v96
    %v355 = vunpack.c.l.b16 %v97
    %v356 = vunpack.c.l.b16 %v98
    %v357 = vunpack.c.l.b16 %v99
    %v358 = vunpack.c.l.b16 %v100
    %v359 = vpack.c.b16 %v328, %v327
    %v360 = vpack.c.b16 %v330, %v329
    %v361 = vpack.c.b16 %v332, %v331
    %v362 = vpack.c.b16 %v334, %v333
    %v363 = vpack.c.b16 %v336, %v335
    %v364 = vpack.c.b16 %v338, %v337
    %v365 = vpack.c.b16 %v340, %v339
    %v366 = vpack.c.b16 %v342, %v341
    %v367 = vpack.c.b16 %v344, %v343
    %v368 = vpack.c.b16 %v346, %v345
    %v369 = vpack.c.b16 %v348, %v347
    %v370 = vpack.c.b16 %v350, %v349
    %v371 = vpack.c.b16 %v352, %v351
    %v372 = vpack.c.b16 %v354, %v353
    %v373 = vpack.c.b16 %v356, %v355
    %v374 = vpack.c.b16 %v358, %v357
    %vm375 = vcmask 261120
    %v377 = vsel %vm375, %v359, 0
    %v380 = vsel %vm375, %v360, 0
    %v383 = vsel %vm375, %v361, 0
    %v386 = vsel %vm375, %v362, 0
    %v389 = vsel %vm375, %v363, 0
    %v392 = vsel %vm375, %v364, 0
    %v395 = vsel %vm375, %v365, 0
    %v398 = vsel %vm375, %v366, 0
    %v401 = vsel %vm375, %v367, 0
    %v404 = vsel %vm375, %v368, 0
    %v407 = vsel %vm375, %v369, 0
    %v410 = vsel %vm375, %v370, 0
    %v413 = vsel %vm375, %v371, 0
    %v416 = vsel %vm375, %v372, 0
    %v419 = vsel %vm375, %v373, 0
    %v422 = vsel %vm375, %v374, 0
    %424 = vmatpush.bf16.msra.mxu0 0
    %425 = vmatpush.bf16.msra.mxu0 0
    %426 = vmatpush.bf16.msra.mxu0 0
    %427 = vmatpush.bf16.msra.mxu0 0
    %428 = vmatpush.bf16.msra.mxu0 0
    %429 = vmatpush.bf16.msra.mxu0 0
    %430 = vmatpush.bf16.msra.mxu0 %v102
    %431 = vmatpush.bf16.msra.mxu0 %v101
    %432 = vmatmul.bf16.gmra.mxu0 %v377
    %v433 = vpop.f32.mrf.mxu0
    %v434 = vadd.f32 %v138, %v433
    %v435 = vpop.f32.mrf.mxu0
    %v436 = vadd.f32 %v143, %v435
    %437 = vmatmul.bf16.gmra.mxu0 %v380
    %v438 = vpop.f32.mrf.mxu0
    %v439 = vadd.f32 %v148, %v438
    %v440 = vpop.f32.mrf.mxu0
    %v441 = vadd.f32 %v153, %v440
    %442 = vmatmul.bf16.gmra.mxu0 %v383
    %v443 = vpop.f32.mrf.mxu0
    %v444 = vadd.f32 %v158, %v443
    %v445 = vpop.f32.mrf.mxu0
    %v446 = vadd.f32 %v163, %v445
    %447 = vmatmul.bf16.gmra.mxu0 %v386
    %v448 = vpop.f32.mrf.mxu0
    %v449 = vadd.f32 %v168, %v448
    %v450 = vpop.f32.mrf.mxu0
    %v451 = vadd.f32 %v173, %v450
    %452 = vmatmul.bf16.gmra.mxu0 %v389
    %v453 = vpop.f32.mrf.mxu0
    %v454 = vadd.f32 %v178, %v453
    %v455 = vpop.f32.mrf.mxu0
    %v456 = vadd.f32 %v183, %v455
    %457 = vmatmul.bf16.gmra.mxu0 %v392
    %v458 = vpop.f32.mrf.mxu0
    %v459 = vadd.f32 %v188, %v458
    %v460 = vpop.f32.mrf.mxu0
    %v461 = vadd.f32 %v193, %v460
    %462 = vmatmul.bf16.gmra.mxu0 %v395
    %v463 = vpop.f32.mrf.mxu0
    %v464 = vadd.f32 %v198, %v463
    %v465 = vpop.f32.mrf.mxu0
    %v466 = vadd.f32 %v203, %v465
    %467 = vmatmul.bf16.gmra.mxu0 %v398
    %v468 = vpop.f32.mrf.mxu0
    %v469 = vadd.f32 %v208, %v468
    %v470 = vpop.f32.mrf.mxu0
    %v471 = vadd.f32 %v213, %v470
    %472 = vmatmul.bf16.gmra.mxu0 %v401
    %v473 = vpop.f32.mrf.mxu0
    %v474 = vadd.f32 %v218, %v473
    %v475 = vpop.f32.mrf.mxu0
    %v476 = vadd.f32 %v223, %v475
    %477 = vmatmul.bf16.gmra.mxu0 %v404
    %v478 = vpop.f32.mrf.mxu0
    %v479 = vadd.f32 %v228, %v478
    %v480 = vpop.f32.mrf.mxu0
    %v481 = vadd.f32 %v233, %v480
    %482 = vmatmul.bf16.gmra.mxu0 %v407
    %v483 = vpop.f32.mrf.mxu0
    %v484 = vadd.f32 %v238, %v483
    %v485 = vpop.f32.mrf.mxu0
    %v486 = vadd.f32 %v243, %v485
    %487 = vmatmul.bf16.gmra.mxu0 %v410
    %v488 = vpop.f32.mrf.mxu0
    %v489 = vadd.f32 %v248, %v488
    %v490 = vpop.f32.mrf.mxu0
    %v491 = vadd.f32 %v253, %v490
    %492 = vmatmul.bf16.gmra.mxu0 %v413
    %v493 = vpop.f32.mrf.mxu0
    %v494 = vadd.f32 %v258, %v493
    %v495 = vpop.f32.mrf.mxu0
    %v496 = vadd.f32 %v263, %v495
    %497 = vmatmul.bf16.gmra.mxu0 %v416
    %v498 = vpop.f32.mrf.mxu0
    %v499 = vadd.f32 %v268, %v498
    %v500 = vpop.f32.mrf.mxu0
    %v501 = vadd.f32 %v273, %v500
    %502 = vmatmul.bf16.gmra.mxu0 %v419
    %v503 = vpop.f32.mrf.mxu0
    %v504 = vadd.f32 %v278, %v503
    %v505 = vpop.f32.mrf.mxu0
    %v506 = vadd.f32 %v283, %v505
    %507 = vmatmul.bf16.gmra.mxu0 %v422
    %v508 = vpop.f32.mrf.mxu0
    %v509 = vadd.f32 %v288, %v508
    %v510 = vpop.f32.mrf.mxu0
    %v511 = vadd.f32 %v293, %v510
    %512 = vdwg.mxu0
    %v513 = vpack.c.bf16 %v434, %v434
    %v514 = vpack.c.bf16 %v436, %v436
    %v515 = vpack.c.bf16 %v439, %v439
    %v516 = vpack.c.bf16 %v441, %v441
    %v517 = vpack.c.bf16 %v444, %v444
    %v518 = vpack.c.bf16 %v446, %v446
    %v519 = vpack.c.bf16 %v449, %v449
    %v520 = vpack.c.bf16 %v451, %v451
    %v521 = vpack.c.bf16 %v454, %v454
    %v522 = vpack.c.bf16 %v456, %v456
    %v523 = vpack.c.bf16 %v459, %v459
    %v524 = vpack.c.bf16 %v461, %v461
    %v525 = vpack.c.bf16 %v464, %v464
    %v526 = vpack.c.bf16 %v466, %v466
    %v527 = vpack.c.bf16 %v469, %v469
    %v528 = vpack.c.bf16 %v471, %v471
    %v529 = vpack.c.bf16 %v474, %v474
    %v530 = vpack.c.bf16 %v476, %v476
    %v531 = vpack.c.bf16 %v479, %v479
    %v532 = vpack.c.bf16 %v481, %v481
    %v533 = vpack.c.bf16 %v484, %v484
    %v534 = vpack.c.bf16 %v486, %v486
    %v535 = vpack.c.bf16 %v489, %v489
    %v536 = vpack.c.bf16 %v491, %v491
    %v537 = vpack.c.bf16 %v494, %v494
    %v538 = vpack.c.bf16 %v496, %v496
    %v539 = vpack.c.bf16 %v499, %v499
    %v540 = vpack.c.bf16 %v501, %v501
    %v541 = vpack.c.bf16 %v504, %v504
    %v542 = vpack.c.bf16 %v506, %v506
    %v543 = vpack.c.bf16 %v509, %v509
    %v544 = vpack.c.bf16 %v511, %v511
    %v545 = vunpack.c.l.bf16 %v513
    %v546 = vunpack.c.l.bf16 %v514
    %v547 = vunpack.c.l.bf16 %v515
    %v548 = vunpack.c.l.bf16 %v516
    %v549 = vunpack.c.l.bf16 %v517
    %v550 = vunpack.c.l.bf16 %v518
    %v551 = vunpack.c.l.bf16 %v519
    %v552 = vunpack.c.l.bf16 %v520
    %v553 = vunpack.c.l.bf16 %v521
    %v554 = vunpack.c.l.bf16 %v522
    %v555 = vunpack.c.l.bf16 %v523
    %v556 = vunpack.c.l.bf16 %v524
    %v557 = vunpack.c.l.bf16 %v525
    %v558 = vunpack.c.l.bf16 %v526
    %v559 = vunpack.c.l.bf16 %v527
    %v560 = vunpack.c.l.bf16 %v528
    %v561 = vunpack.c.l.bf16 %v529
    %v562 = vunpack.c.l.bf16 %v530
    %v563 = vunpack.c.l.bf16 %v531
    %v564 = vunpack.c.l.bf16 %v532
    %v565 = vunpack.c.l.bf16 %v533
    %v566 = vunpack.c.l.bf16 %v534
    %v567 = vunpack.c.l.bf16 %v535
    %v568 = vunpack.c.l.bf16 %v536
    %v569 = vunpack.c.l.bf16 %v537
    %v570 = vunpack.c.l.bf16 %v538
    %v571 = vunpack.c.l.bf16 %v539
    %v572 = vunpack.c.l.bf16 %v540
    %v573 = vunpack.c.l.bf16 %v541
    %v574 = vunpack.c.l.bf16 %v542
    %v575 = vunpack.c.l.bf16 %v543
    %v576 = vunpack.c.l.bf16 %v544
    %v577 = vmul.f32 %v545, 0.5
    %v578 = vmul.f32 %v546, 0.5
    %v579 = vmul.f32 %v547, 0.5
    %v580 = vmul.f32 %v548, 0.5
    %v581 = vmul.f32 %v549, 0.5
    %v582 = vmul.f32 %v550, 0.5
    %v583 = vmul.f32 %v551, 0.5
    %v584 = vmul.f32 %v552, 0.5
    %v585 = vmul.f32 %v553, 0.5
    %v586 = vmul.f32 %v554, 0.5
    %v587 = vmul.f32 %v555, 0.5
    %v588 = vmul.f32 %v556, 0.5
    %v589 = vmul.f32 %v557, 0.5
    %v590 = vmul.f32 %v558, 0.5
    %v591 = vmul.f32 %v559, 0.5
    %v592 = vmul.f32 %v560, 0.5
    %v593 = vmul.f32 %v561, 0.5
    %v594 = vmul.f32 %v562, 0.5
    %v595 = vmul.f32 %v563, 0.5
    %v596 = vmul.f32 %v564, 0.5
    %v597 = vmul.f32 %v565, 0.5
    %v598 = vmul.f32 %v566, 0.5
    %v599 = vmul.f32 %v567, 0.5
    %v600 = vmul.f32 %v568, 0.5
    %v601 = vmul.f32 %v569, 0.5
    %v602 = vmul.f32 %v570, 0.5
    %v603 = vmul.f32 %v571, 0.5
    %v604 = vmul.f32 %v572, 0.5
    %v605 = vmul.f32 %v573, 0.5
    %v606 = vmul.f32 %v574, 0.5
    %v607 = vmul.f32 %v575, 0.5
    %v608 = vmul.f32 %v576, 0.5
    %v609 = vpack.c.bf16 %v577, %v577
    %v610 = vpack.c.bf16 %v578, %v578
    %v611 = vpack.c.bf16 %v579, %v579
    %v612 = vpack.c.bf16 %v580, %v580
    %v613 = vpack.c.bf16 %v581, %v581
    %v614 = vpack.c.bf16 %v582, %v582
    %v615 = vpack.c.bf16 %v583, %v583
    %v616 = vpack.c.bf16 %v584, %v584
    %v617 = vpack.c.bf16 %v585, %v585
    %v618 = vpack.c.bf16 %v586, %v586
    %v619 = vpack.c.bf16 %v587, %v587
    %v620 = vpack.c.bf16 %v588, %v588
    %v621 = vpack.c.bf16 %v589, %v589
    %v622 = vpack.c.bf16 %v590, %v590
    %v623 = vpack.c.bf16 %v591, %v591
    %v624 = vpack.c.bf16 %v592, %v592
    %v625 = vpack.c.bf16 %v593, %v593
    %v626 = vpack.c.bf16 %v594, %v594
    %v627 = vpack.c.bf16 %v595, %v595
    %v628 = vpack.c.bf16 %v596, %v596
    %v629 = vpack.c.bf16 %v597, %v597
    %v630 = vpack.c.bf16 %v598, %v598
    %v631 = vpack.c.bf16 %v599, %v599
    %v632 = vpack.c.bf16 %v600, %v600
    %v633 = vpack.c.bf16 %v601, %v601
    %v634 = vpack.c.bf16 %v602, %v602
    %v635 = vpack.c.bf16 %v603, %v603
    %v636 = vpack.c.bf16 %v604, %v604
    %v637 = vpack.c.bf16 %v605, %v605
    %v638 = vpack.c.bf16 %v606, %v606
    %v639 = vpack.c.bf16 %v607, %v607
    %v640 = vpack.c.bf16 %v608, %v608
    %v641 = vunpack.c.l.bf16 %v609
    %v642 = vunpack.c.l.bf16 %v610
    %v643 = vunpack.c.l.bf16 %v611
    %v644 = vunpack.c.l.bf16 %v612
    %v645 = vunpack.c.l.bf16 %v613
    %v646 = vunpack.c.l.bf16 %v614
    %v647 = vunpack.c.l.bf16 %v615
    %v648 = vunpack.c.l.bf16 %v616
    %v649 = vunpack.c.l.bf16 %v617
    %v650 = vunpack.c.l.bf16 %v618
    %v651 = vunpack.c.l.bf16 %v619
    %v652 = vunpack.c.l.bf16 %v620
    %v653 = vunpack.c.l.bf16 %v621
    %v654 = vunpack.c.l.bf16 %v622
    %v655 = vunpack.c.l.bf16 %v623
    %v656 = vunpack.c.l.bf16 %v624
    %v657 = vunpack.c.l.bf16 %v625
    %v658 = vunpack.c.l.bf16 %v626
    %v659 = vunpack.c.l.bf16 %v627
    %v660 = vunpack.c.l.bf16 %v628
    %v661 = vunpack.c.l.bf16 %v629
    %v662 = vunpack.c.l.bf16 %v630
    %v663 = vunpack.c.l.bf16 %v631
    %v664 = vunpack.c.l.bf16 %v632
    %v665 = vunpack.c.l.bf16 %v633
    %v666 = vunpack.c.l.bf16 %v634
    %v667 = vunpack.c.l.bf16 %v635
    %v668 = vunpack.c.l.bf16 %v636
    %v669 = vunpack.c.l.bf16 %v637
    %v670 = vunpack.c.l.bf16 %v638
    %v671 = vunpack.c.l.bf16 %v639
    %v672 = vunpack.c.l.bf16 %v640
    %v673 = vtanh.pop %v641
    %v674 = vtanh.pop %v642
    %v675 = vtanh.pop %v643
    %v676 = vtanh.pop %v644
    %v677 = vtanh.pop %v645
    %v678 = vtanh.pop %v646
    %v679 = vtanh.pop %v647
    %v680 = vtanh.pop %v648
    %v681 = vtanh.pop %v649
    %v682 = vtanh.pop %v650
    %v683 = vtanh.pop %v651
    %v684 = vtanh.pop %v652
    %v685 = vtanh.pop %v653
    %v686 = vtanh.pop %v654
    %v687 = vtanh.pop %v655
    %v688 = vtanh.pop %v656
    %v689 = vtanh.pop %v657
    %v690 = vtanh.pop %v658
    %v691 = vtanh.pop %v659
    %v692 = vtanh.pop %v660
    %v693 = vtanh.pop %v661
    %v694 = vtanh.pop %v662
    %v695 = vtanh.pop %v663
    %v696 = vtanh.pop %v664
    %v697 = vtanh.pop %v665
    %v698 = vtanh.pop %v666
    %v699 = vtanh.pop %v667
    %v700 = vtanh.pop %v668
    %v701 = vtanh.pop %v669
    %v702 = vtanh.pop %v670
    %v703 = vtanh.pop %v671
    %v704 = vtanh.pop %v672
    %v705 = vpack.c.bf16 %v673, %v673
    %v706 = vpack.c.bf16 %v674, %v674
    %v707 = vpack.c.bf16 %v675, %v675
    %v708 = vpack.c.bf16 %v676, %v676
    %v709 = vpack.c.bf16 %v677, %v677
    %v710 = vpack.c.bf16 %v678, %v678
    %v711 = vpack.c.bf16 %v679, %v679
    %v712 = vpack.c.bf16 %v680, %v680
    %v713 = vpack.c.bf16 %v681, %v681
    %v714 = vpack.c.bf16 %v682, %v682
    %v715 = vpack.c.bf16 %v683, %v683
    %v716 = vpack.c.bf16 %v684, %v684
    %v717 = vpack.c.bf16 %v685, %v685
    %v718 = vpack.c.bf16 %v686, %v686
    %v719 = vpack.c.bf16 %v687, %v687
    %v720 = vpack.c.bf16 %v688, %v688
    %v721 = vpack.c.bf16 %v689, %v689
    %v722 = vpack.c.bf16 %v690, %v690
    %v723 = vpack.c.bf16 %v691, %v691
    %v724 = vpack.c.bf16 %v692, %v692
    %v725 = vpack.c.bf16 %v693, %v693
    %v726 = vpack.c.bf16 %v694, %v694
    %v727 = vpack.c.bf16 %v695, %v695
    %v728 = vpack.c.bf16 %v696, %v696
    %v729 = vpack.c.bf16 %v697, %v697
    %v730 = vpack.c.bf16 %v698, %v698
    %v731 = vpack.c.bf16 %v699, %v699
    %v732 = vpack.c.bf16 %v700, %v700
    %v733 = vpack.c.bf16 %v701, %v701
    %v734 = vpack.c.bf16 %v702, %v702
    %v735 = vpack.c.bf16 %v703, %v703
    %v736 = vpack.c.bf16 %v704, %v704
    %v737 = vunpack.c.l.bf16 %v705
    %v738 = vunpack.c.l.bf16 %v706
    %v739 = vunpack.c.l.bf16 %v707
    %v740 = vunpack.c.l.bf16 %v708
    %v741 = vunpack.c.l.bf16 %v709
    %v742 = vunpack.c.l.bf16 %v710
    %v743 = vunpack.c.l.bf16 %v711
    %v744 = vunpack.c.l.bf16 %v712
    %v745 = vunpack.c.l.bf16 %v713
    %v746 = vunpack.c.l.bf16 %v714
    %v747 = vunpack.c.l.bf16 %v715
    %v748 = vunpack.c.l.bf16 %v716
    %v749 = vunpack.c.l.bf16 %v717
    %v750 = vunpack.c.l.bf16 %v718
    %v751 = vunpack.c.l.bf16 %v719
    %v752 = vunpack.c.l.bf16 %v720
    %v753 = vunpack.c.l.bf16 %v721
    %v754 = vunpack.c.l.bf16 %v722
    %v755 = vunpack.c.l.bf16 %v723
    %v756 = vunpack.c.l.bf16 %v724
    %v757 = vunpack.c.l.bf16 %v725
    %v758 = vunpack.c.l.bf16 %v726
    %v759 = vunpack.c.l.bf16 %v727
    %v760 = vunpack.c.l.bf16 %v728
    %v761 = vunpack.c.l.bf16 %v729
    %v762 = vunpack.c.l.bf16 %v730
    %v763 = vunpack.c.l.bf16 %v731
    %v764 = vunpack.c.l.bf16 %v732
    %v765 = vunpack.c.l.bf16 %v733
    %v766 = vunpack.c.l.bf16 %v734
    %v767 = vunpack.c.l.bf16 %v735
    %v768 = vunpack.c.l.bf16 %v736
    %v769 = vmul.f32 %v737, 0.5
    %v770 = vmul.f32 %v738, 0.5
    %v771 = vmul.f32 %v739, 0.5
    %v772 = vmul.f32 %v740, 0.5
    %v773 = vmul.f32 %v741, 0.5
    %v774 = vmul.f32 %v742, 0.5
    %v775 = vmul.f32 %v743, 0.5
    %v776 = vmul.f32 %v744, 0.5
    %v777 = vmul.f32 %v745, 0.5
    %v778 = vmul.f32 %v746, 0.5
    %v779 = vmul.f32 %v747, 0.5
    %v780 = vmul.f32 %v748, 0.5
    %v781 = vmul.f32 %v749, 0.5
    %v782 = vmul.f32 %v750, 0.5
    %v783 = vmul.f32 %v751, 0.5
    %v784 = vmul.f32 %v752, 0.5
    %v785 = vmul.f32 %v753, 0.5
    %v786 = vmul.f32 %v754, 0.5
    %v787 = vmul.f32 %v755, 0.5
    %v788 = vmul.f32 %v756, 0.5
    %v789 = vmul.f32 %v757, 0.5
    %v790 = vmul.f32 %v758, 0.5
    %v791 = vmul.f32 %v759, 0.5
    %v792 = vmul.f32 %v760, 0.5
    %v793 = vmul.f32 %v761, 0.5
    %v794 = vmul.f32 %v762, 0.5
    %v795 = vmul.f32 %v763, 0.5
    %v796 = vmul.f32 %v764, 0.5
    %v797 = vmul.f32 %v765, 0.5
    %v798 = vmul.f32 %v766, 0.5
    %v799 = vmul.f32 %v767, 0.5
    %v800 = vmul.f32 %v768, 0.5
    %v801 = vpack.c.bf16 %v769, %v769
    %v802 = vpack.c.bf16 %v770, %v770
    %v803 = vpack.c.bf16 %v771, %v771
    %v804 = vpack.c.bf16 %v772, %v772
    %v805 = vpack.c.bf16 %v773, %v773
    %v806 = vpack.c.bf16 %v774, %v774
    %v807 = vpack.c.bf16 %v775, %v775
    %v808 = vpack.c.bf16 %v776, %v776
    %v809 = vpack.c.bf16 %v777, %v777
    %v810 = vpack.c.bf16 %v778, %v778
    %v811 = vpack.c.bf16 %v779, %v779
    %v812 = vpack.c.bf16 %v780, %v780
    %v813 = vpack.c.bf16 %v781, %v781
    %v814 = vpack.c.bf16 %v782, %v782
    %v815 = vpack.c.bf16 %v783, %v783
    %v816 = vpack.c.bf16 %v784, %v784
    %v817 = vpack.c.bf16 %v785, %v785
    %v818 = vpack.c.bf16 %v786, %v786
    %v819 = vpack.c.bf16 %v787, %v787
    %v820 = vpack.c.bf16 %v788, %v788
    %v821 = vpack.c.bf16 %v789, %v789
    %v822 = vpack.c.bf16 %v790, %v790
    %v823 = vpack.c.bf16 %v791, %v791
    %v824 = vpack.c.bf16 %v792, %v792
    %v825 = vpack.c.bf16 %v793, %v793
    %v826 = vpack.c.bf16 %v794, %v794
    %v827 = vpack.c.bf16 %v795, %v795
    %v828 = vpack.c.bf16 %v796, %v796
    %v829 = vpack.c.bf16 %v797, %v797
    %v830 = vpack.c.bf16 %v798, %v798
    %v831 = vpack.c.bf16 %v799, %v799
    %v832 = vpack.c.bf16 %v800, %v800
    %v833 = vunpack.c.l.bf16 %v801
    %v834 = vunpack.c.l.bf16 %v802
    %v835 = vunpack.c.l.bf16 %v803
    %v836 = vunpack.c.l.bf16 %v804
    %v837 = vunpack.c.l.bf16 %v805
    %v838 = vunpack.c.l.bf16 %v806
    %v839 = vunpack.c.l.bf16 %v807
    %v840 = vunpack.c.l.bf16 %v808
    %v841 = vunpack.c.l.bf16 %v809
    %v842 = vunpack.c.l.bf16 %v810
    %v843 = vunpack.c.l.bf16 %v811
    %v844 = vunpack.c.l.bf16 %v812
    %v845 = vunpack.c.l.bf16 %v813
    %v846 = vunpack.c.l.bf16 %v814
    %v847 = vunpack.c.l.bf16 %v815
    %v848 = vunpack.c.l.bf16 %v816
    %v849 = vunpack.c.l.bf16 %v817
    %v850 = vunpack.c.l.bf16 %v818
    %v851 = vunpack.c.l.bf16 %v819
    %v852 = vunpack.c.l.bf16 %v820
    %v853 = vunpack.c.l.bf16 %v821
    %v854 = vunpack.c.l.bf16 %v822
    %v855 = vunpack.c.l.bf16 %v823
    %v856 = vunpack.c.l.bf16 %v824
    %v857 = vunpack.c.l.bf16 %v825
    %v858 = vunpack.c.l.bf16 %v826
    %v859 = vunpack.c.l.bf16 %v827
    %v860 = vunpack.c.l.bf16 %v828
    %v861 = vunpack.c.l.bf16 %v829
    %v862 = vunpack.c.l.bf16 %v830
    %v863 = vunpack.c.l.bf16 %v831
    %v864 = vunpack.c.l.bf16 %v832
    %v865 = vadd.f32 %v833, 0.5
    %v866 = vadd.f32 %v834, 0.5
    %v867 = vadd.f32 %v835, 0.5
    %v868 = vadd.f32 %v836, 0.5
    %v869 = vadd.f32 %v837, 0.5
    %v870 = vadd.f32 %v838, 0.5
    %v871 = vadd.f32 %v839, 0.5
    %v872 = vadd.f32 %v840, 0.5
    %v873 = vadd.f32 %v841, 0.5
    %v874 = vadd.f32 %v842, 0.5
    %v875 = vadd.f32 %v843, 0.5
    %v876 = vadd.f32 %v844, 0.5
    %v877 = vadd.f32 %v845, 0.5
    %v878 = vadd.f32 %v846, 0.5
    %v879 = vadd.f32 %v847, 0.5
    %v880 = vadd.f32 %v848, 0.5
    %v881 = vadd.f32 %v849, 0.5
    %v882 = vadd.f32 %v850, 0.5
    %v883 = vadd.f32 %v851, 0.5
    %v884 = vadd.f32 %v852, 0.5
    %v885 = vadd.f32 %v853, 0.5
    %v886 = vadd.f32 %v854, 0.5
    %v887 = vadd.f32 %v855, 0.5
    %v888 = vadd.f32 %v856, 0.5
    %v889 = vadd.f32 %v857, 0.5
    %v890 = vadd.f32 %v858, 0.5
    %v891 = vadd.f32 %v859, 0.5
    %v892 = vadd.f32 %v860, 0.5
    %v893 = vadd.f32 %v861, 0.5
    %v894 = vadd.f32 %v862, 0.5
    %v895 = vadd.f32 %v863, 0.5
    %v896 = vadd.f32 %v864, 0.5
    %v897 = vpack.c.bf16 %v866, %v865
    %v898 = vpack.c.bf16 %v868, %v867
    %v899 = vpack.c.bf16 %v870, %v869
    %v900 = vpack.c.bf16 %v872, %v871
    %v901 = vpack.c.bf16 %v874, %v873
    %v902 = vpack.c.bf16 %v876, %v875
    %v903 = vpack.c.bf16 %v878, %v877
    %v904 = vpack.c.bf16 %v880, %v879
    %v905 = vpack.c.bf16 %v882, %v881
    %v906 = vpack.c.bf16 %v884, %v883
    %v907 = vpack.c.bf16 %v886, %v885
    %v908 = vpack.c.bf16 %v888, %v887
    %v909 = vpack.c.bf16 %v890, %v889
    %v910 = vpack.c.bf16 %v892, %v891
    %v911 = vpack.c.bf16 %v894, %v893
    %v912 = vpack.c.bf16 %v896, %v895
    %v913 = vld [vmem:[%s4] sm:$0xff]
    %v914 = vld [vmem:[%s4 + $0x8] sm:$0xff]
    %v915 = vld [vmem:[%s4 + $0x10] sm:$0xff]
    %v916 = vld [vmem:[%s4 + $0x18] sm:$0xff]
    %v917 = vld [vmem:[%s4 + $0x20] sm:$0xff]
    %v918 = vld [vmem:[%s4 + $0x28] sm:$0xff]
    %v919 = vld [vmem:[%s4 + $0x30] sm:$0xff]
    %v920 = vld [vmem:[%s4 + $0x38] sm:$0xff]
    %v921 = vld [vmem:[%s4 + $0x40] sm:$0xff]
    %v922 = vld [vmem:[%s4 + $0x48] sm:$0xff]
    %v923 = vld [vmem:[%s4 + $0x50] sm:$0xff]
    %v924 = vld [vmem:[%s4 + $0x58] sm:$0xff]
    %v925 = vld [vmem:[%s4 + $0x60] sm:$0xff]
    %v926 = vld [vmem:[%s4 + $0x68] sm:$0xff]
    %v927 = vld [vmem:[%s4 + $0x70] sm:$0xff]
    %v928 = vld [vmem:[%s4 + $0x78] sm:$0xff]
    %v929 = vld [vmem:[%s4 + $0x80] sm:$0xff]
    %v930 = vld [vmem:[%s4 + $0x88] sm:$0xff]
    %v931 = vld [vmem:[%s4 + $0x90] sm:$0xff]
    %v932 = vld [vmem:[%s4 + $0x98] sm:$0xff]
    %v933 = vld [vmem:[%s4 + $0xa0] sm:$0xff]
    %v934 = vld [vmem:[%s4 + $0xa8] sm:$0xff]
    %v935 = vld [vmem:[%s4 + $0xb0] sm:$0xff]
    %v936 = vld [vmem:[%s4 + $0xb8] sm:$0xff]
    %v937 = vld [vmem:[%s4 + $0xc0] sm:$0xff]
    %v938 = vld [vmem:[%s4 + $0xc8] sm:$0xff]
    %v939 = vld [vmem:[%s4 + $0xd0] sm:$0xff]
    %v940 = vld [vmem:[%s4 + $0xd8] sm:$0xff]
    %v941 = vld [vmem:[%s4 + $0xe0] sm:$0xff]
    %v942 = vld [vmem:[%s4 + $0xe8] sm:$0xff]
    %v943 = vld [vmem:[%s4 + $0xf0] sm:$0xff]
    %v944 = vld [vmem:[%s4 + $0xf8] sm:$0xff]
    %v945 = vld [vmem:[%s5] sm:$0xff]
    %v946 = vld [vmem:[%s5 + $0x8] sm:$0xff]
    %v947 = vld [vmem:[%s5 + $0x10] sm:$0xff]
    %v948 = vld [vmem:[%s5 + $0x18] sm:$0xff]
    %v949 = vld [vmem:[%s5 + $0x20] sm:$0xff]
    %v950 = vld [vmem:[%s5 + $0x28] sm:$0xff]
    %v951 = vld [vmem:[%s5 + $0x30] sm:$0xff]
    %v952 = vld [vmem:[%s5 + $0x38] sm:$0xff]
    %v953 = vld [vmem:[%s5 + $0x40] sm:$0xff]
    %v954 = vld [vmem:[%s5 + $0x48] sm:$0xff]
    %v955 = vld [vmem:[%s5 + $0x50] sm:$0xff]
    %v956 = vld [vmem:[%s5 + $0x58] sm:$0xff]
    %v957 = vld [vmem:[%s5 + $0x60] sm:$0xff]
    %v958 = vld [vmem:[%s5 + $0x68] sm:$0xff]
    %v959 = vld [vmem:[%s5 + $0x70] sm:$0xff]
    %v960 = vld [vmem:[%s5 + $0x78] sm:$0xff]
    %v961 = vld [vmem:[%s5 + $0x80] sm:$0xff]
    %v962 = vld [vmem:[%s5 + $0x88] sm:$0xff]
    %v963 = vld [vmem:[%s5 + $0x90] sm:$0xff]
    %v964 = vld [vmem:[%s5 + $0x98] sm:$0xff]
    %v965 = vld [vmem:[%s5 + $0xa0] sm:$0xff]
    %v966 = vld [vmem:[%s5 + $0xa8] sm:$0xff]
    %v967 = vld [vmem:[%s5 + $0xb0] sm:$0xff]
    %v968 = vld [vmem:[%s5 + $0xb8] sm:$0xff]
    %v969 = vld [vmem:[%s5 + $0xc0] sm:$0xff]
    %v970 = vld [vmem:[%s5 + $0xc8] sm:$0xff]
    %v971 = vld [vmem:[%s5 + $0xd0] sm:$0xff]
    %v972 = vld [vmem:[%s5 + $0xd8] sm:$0xff]
    %v973 = vld [vmem:[%s5 + $0xe0] sm:$0xff]
    %v974 = vld [vmem:[%s5 + $0xe8] sm:$0xff]
    %v975 = vld [vmem:[%s5 + $0xf0] sm:$0xff]
    %v976 = vld [vmem:[%s5 + $0xf8] sm:$0xff]
    %978 = vset.pattern.permute.xlu0 0
    %979 = vperm.xlu0 %978, %v945
    %v980 = vpop.permute.xlu0 %979
    %983 = vset.pattern.permute.xlu0 0
    %984 = vperm.xlu0 %983, %v946
    %v985 = vpop.permute.xlu0 %984
    %988 = vset.pattern.permute.xlu0 0
    %989 = vperm.xlu0 %988, %v947
    %v990 = vpop.permute.xlu0 %989
    %993 = vset.pattern.permute.xlu0 0
    %994 = vperm.xlu0 %993, %v948
    %v995 = vpop.permute.xlu0 %994
    %998 = vset.pattern.permute.xlu0 0
    %999 = vperm.xlu0 %998, %v949
    %v1000 = vpop.permute.xlu0 %999
    %1003 = vset.pattern.permute.xlu0 0
    %1004 = vperm.xlu0 %1003, %v950
    %v1005 = vpop.permute.xlu0 %1004
    %1008 = vset.pattern.permute.xlu0 0
    %1009 = vperm.xlu0 %1008, %v951
    %v1010 = vpop.permute.xlu0 %1009
    %1013 = vset.pattern.permute.xlu0 0
    %1014 = vperm.xlu0 %1013, %v952
    %v1015 = vpop.permute.xlu0 %1014
    %1018 = vset.pattern.permute.xlu0 0
    %1019 = vperm.xlu0 %1018, %v953
    %v1020 = vpop.permute.xlu0 %1019
    %1023 = vset.pattern.permute.xlu0 0
    %1024 = vperm.xlu0 %1023, %v954
    %v1025 = vpop.permute.xlu0 %1024
    %1028 = vset.pattern.permute.xlu0 0
    %1029 = vperm.xlu0 %1028, %v955
    %v1030 = vpop.permute.xlu0 %1029
    %1033 = vset.pattern.permute.xlu0 0
    %1034 = vperm.xlu0 %1033, %v956
    %v1035 = vpop.permute.xlu0 %1034
    %1038 = vset.pattern.permute.xlu0 0
    %1039 = vperm.xlu0 %1038, %v957
    %v1040 = vpop.permute.xlu0 %1039
    %1043 = vset.pattern.permute.xlu0 0
    %1044 = vperm.xlu0 %1043, %v958
    %v1045 = vpop.permute.xlu0 %1044
    %1048 = vset.pattern.permute.xlu0 0
    %1049 = vperm.xlu0 %1048, %v959
    %v1050 = vpop.permute.xlu0 %1049
    %1053 = vset.pattern.permute.xlu0 0
    %1054 = vperm.xlu0 %1053, %v960
    %v1055 = vpop.permute.xlu0 %1054
    %1058 = vset.pattern.permute.xlu0 0
    %1059 = vperm.xlu0 %1058, %v961
    %v1060 = vpop.permute.xlu0 %1059
    %1063 = vset.pattern.permute.xlu0 0
    %1064 = vperm.xlu0 %1063, %v962
    %v1065 = vpop.permute.xlu0 %1064
    %1068 = vset.pattern.permute.xlu0 0
    %1069 = vperm.xlu0 %1068, %v963
    %v1070 = vpop.permute.xlu0 %1069
    %1073 = vset.pattern.permute.xlu0 0
    %1074 = vperm.xlu0 %1073, %v964
    %v1075 = vpop.permute.xlu0 %1074
    %1078 = vset.pattern.permute.xlu0 0
    %1079 = vperm.xlu0 %1078, %v965
    %v1080 = vpop.permute.xlu0 %1079
    %1083 = vset.pattern.permute.xlu0 0
    %1084 = vperm.xlu0 %1083, %v966
    %v1085 = vpop.permute.xlu0 %1084
    %1088 = vset.pattern.permute.xlu0 0
    %1089 = vperm.xlu0 %1088, %v967
    %v1090 = vpop.permute.xlu0 %1089
    %1093 = vset.pattern.permute.xlu0 0
    %1094 = vperm.xlu0 %1093, %v968
    %v1095 = vpop.permute.xlu0 %1094
    %1098 = vset.pattern.permute.xlu0 0
    %1099 = vperm.xlu0 %1098, %v969
    %v1100 = vpop.permute.xlu0 %1099
    %1103 = vset.pattern.permute.xlu0 0
    %1104 = vperm.xlu0 %1103, %v970
    %v1105 = vpop.permute.xlu0 %1104
    %1108 = vset.pattern.permute.xlu0 0
    %1109 = vperm.xlu0 %1108, %v971
    %v1110 = vpop.permute.xlu0 %1109
    %1113 = vset.pattern.permute.xlu0 0
    %1114 = vperm.xlu0 %1113, %v972
    %v1115 = vpop.permute.xlu0 %1114
    %1118 = vset.pattern.permute.xlu0 0
    %1119 = vperm.xlu0 %1118, %v973
    %v1120 = vpop.permute.xlu0 %1119
    %1123 = vset.pattern.permute.xlu0 0
    %1124 = vperm.xlu0 %1123, %v974
    %v1125 = vpop.permute.xlu0 %1124
    %1128 = vset.pattern.permute.xlu0 0
    %1129 = vperm.xlu0 %1128, %v975
    %v1130 = vpop.permute.xlu0 %1129
    %1133 = vset.pattern.permute.xlu0 0
    %1134 = vperm.xlu0 %1133, %v976
    %v1135 = vpop.permute.xlu0 %1134
    %v1169 = vunpack.c.l.b16 %v913
    %v1170 = vunpack.c.h.b16 %v913
    %v1171 = vunpack.c.l.b16 %v914
    %v1172 = vunpack.c.h.b16 %v914
    %v1173 = vunpack.c.l.b16 %v915
    %v1174 = vunpack.c.h.b16 %v915
    %v1175 = vunpack.c.l.b16 %v916
    %v1176 = vunpack.c.h.b16 %v916
    %v1177 = vunpack.c.l.b16 %v917
    %v1178 = vunpack.c.h.b16 %v917
    %v1179 = vunpack.c.l.b16 %v918
    %v1180 = vunpack.c.h.b16 %v918
    %v1181 = vunpack.c.l.b16 %v919
    %v1182 = vunpack.c.h.b16 %v919
    %v1183 = vunpack.c.l.b16 %v920
    %v1184 = vunpack.c.h.b16 %v920
    %v1185 = vunpack.c.l.b16 %v921
    %v1186 = vunpack.c.h.b16 %v921
    %v1187 = vunpack.c.l.b16 %v922
    %v1188 = vunpack.c.h.b16 %v922
    %v1189 = vunpack.c.l.b16 %v923
    %v1190 = vunpack.c.h.b16 %v923
    %v1191 = vunpack.c.l.b16 %v924
    %v1192 = vunpack.c.h.b16 %v924
    %v1193 = vunpack.c.l.b16 %v925
    %v1194 = vunpack.c.h.b16 %v925
    %v1195 = vunpack.c.l.b16 %v926
    %v1196 = vunpack.c.h.b16 %v926
    %v1197 = vunpack.c.l.b16 %v927
    %v1198 = vunpack.c.h.b16 %v927
    %v1199 = vunpack.c.l.b16 %v928
    %v1200 = vunpack.c.h.b16 %v928
    %v1201 = vunpack.c.l.b16 %v929
    %v1202 = vunpack.c.h.b16 %v929
    %v1203 = vunpack.c.l.b16 %v930
    %v1204 = vunpack.c.h.b16 %v930
    %v1205 = vunpack.c.l.b16 %v931
    %v1206 = vunpack.c.h.b16 %v931
    %v1207 = vunpack.c.l.b16 %v932
    %v1208 = vunpack.c.h.b16 %v932
    %v1209 = vunpack.c.l.b16 %v933
    %v1210 = vunpack.c.h.b16 %v933
    %v1211 = vunpack.c.l.b16 %v934
    %v1212 = vunpack.c.h.b16 %v934
    %v1213 = vunpack.c.l.b16 %v935
    %v1214 = vunpack.c.h.b16 %v935
    %v1215 = vunpack.c.l.b16 %v936
    %v1216 = vunpack.c.h.b16 %v936
    %v1217 = vunpack.c.l.b16 %v937
    %v1218 = vunpack.c.h.b16 %v937
    %v1219 = vunpack.c.l.b16 %v938
    %v1220 = vunpack.c.h.b16 %v938
    %v1221 = vunpack.c.l.b16 %v939
    %v1222 = vunpack.c.h.b16 %v939
    %v1223 = vunpack.c.l.b16 %v940
    %v1224 = vunpack.c.h.b16 %v940
    %v1225 = vunpack.c.l.b16 %v941
    %v1226 = vunpack.c.h.b16 %v941
    %v1227 = vunpack.c.l.b16 %v942
    %v1228 = vunpack.c.h.b16 %v942
    %v1229 = vunpack.c.l.b16 %v943
    %v1230 = vunpack.c.h.b16 %v943
    %v1231 = vunpack.c.l.b16 %v944
    %v1232 = vunpack.c.h.b16 %v944
    %v1233 = vpack.c.b16 %v1171, %v1169
    %v1234 = vpack.c.b16 %v1172, %v1170
    %v1235 = vpack.c.b16 %v1175, %v1173
    %v1236 = vpack.c.b16 %v1176, %v1174
    %v1237 = vpack.c.b16 %v1179, %v1177
    %v1238 = vpack.c.b16 %v1180, %v1178
    %v1239 = vpack.c.b16 %v1183, %v1181
    %v1240 = vpack.c.b16 %v1184, %v1182
    %v1241 = vpack.c.b16 %v1187, %v1185
    %v1242 = vpack.c.b16 %v1188, %v1186
    %v1243 = vpack.c.b16 %v1191, %v1189
    %v1244 = vpack.c.b16 %v1192, %v1190
    %v1245 = vpack.c.b16 %v1195, %v1193
    %v1246 = vpack.c.b16 %v1196, %v1194
    %v1247 = vpack.c.b16 %v1199, %v1197
    %v1248 = vpack.c.b16 %v1200, %v1198
    %v1249 = vpack.c.b16 %v1203, %v1201
    %v1250 = vpack.c.b16 %v1204, %v1202
    %v1251 = vpack.c.b16 %v1207, %v1205
    %v1252 = vpack.c.b16 %v1208, %v1206
    %v1253 = vpack.c.b16 %v1211, %v1209
    %v1254 = vpack.c.b16 %v1212, %v1210
    %v1255 = vpack.c.b16 %v1215, %v1213
    %v1256 = vpack.c.b16 %v1216, %v1214
    %v1257 = vpack.c.b16 %v1219, %v1217
    %v1258 = vpack.c.b16 %v1220, %v1218
    %v1259 = vpack.c.b16 %v1223, %v1221
    %v1260 = vpack.c.b16 %v1224, %v1222
    %v1261 = vpack.c.b16 %v1227, %v1225
    %v1262 = vpack.c.b16 %v1228, %v1226
    %v1263 = vpack.c.b16 %v1231, %v1229
    %v1264 = vpack.c.b16 %v1232, %v1230
    %1297 = vmatpush.bf16.msra.mxu0 %v904
    %1298 = vmatpush.bf16.msra.mxu0 %v903
    %1299 = vmatpush.bf16.msra.mxu0 %v902
    %1300 = vmatpush.bf16.msra.mxu0 %v901
    %1301 = vmatpush.bf16.msra.mxu0 %v900
    %1302 = vmatpush.bf16.msra.mxu0 %v899
    %1303 = vmatpush.bf16.msra.mxu0 %v898
    %1304 = vmatpush.bf16.msra.mxu0 %v897
    %1305 = vmatmul.bf16.gmra.mxu0 %v1233
    %v1306 = vpop.f32.mrf.mxu0
    %v1307 = vadd.f32 %v980, %v1306
    %v1308 = vpop.f32.mrf.mxu0
    %v1309 = vadd.f32 %v985, %v1308
    %1310 = vmatmul.bf16.gmra.mxu0 %v1235
    %v1311 = vpop.f32.mrf.mxu0
    %v1312 = vadd.f32 %v990, %v1311
    %v1313 = vpop.f32.mrf.mxu0
    %v1314 = vadd.f32 %v995, %v1313
    %1315 = vmatmul.bf16.gmra.mxu0 %v1237
    %v1316 = vpop.f32.mrf.mxu0
    %v1317 = vadd.f32 %v1000, %v1316
    %v1318 = vpop.f32.mrf.mxu0
    %v1319 = vadd.f32 %v1005, %v1318
    %1320 = vmatmul.bf16.gmra.mxu0 %v1239
    %v1321 = vpop.f32.mrf.mxu0
    %v1322 = vadd.f32 %v1010, %v1321
    %v1323 = vpop.f32.mrf.mxu0
    %v1324 = vadd.f32 %v1015, %v1323
    %1325 = vmatmul.bf16.gmra.mxu0 %v1241
    %v1326 = vpop.f32.mrf.mxu0
    %v1327 = vadd.f32 %v1020, %v1326
    %v1328 = vpop.f32.mrf.mxu0
    %v1329 = vadd.f32 %v1025, %v1328
    %1330 = vmatmul.bf16.gmra.mxu0 %v1243
    %v1331 = vpop.f32.mrf.mxu0
    %v1332 = vadd.f32 %v1030, %v1331
    %v1333 = vpop.f32.mrf.mxu0
    %v1334 = vadd.f32 %v1035, %v1333
    %1335 = vmatmul.bf16.gmra.mxu0 %v1245
    %v1336 = vpop.f32.mrf.mxu0
    %v1337 = vadd.f32 %v1040, %v1336
    %v1338 = vpop.f32.mrf.mxu0
    %v1339 = vadd.f32 %v1045, %v1338
    %1340 = vmatmul.bf16.gmra.mxu0 %v1247
    %v1341 = vpop.f32.mrf.mxu0
    %v1342 = vadd.f32 %v1050, %v1341
    %v1343 = vpop.f32.mrf.mxu0
    %v1344 = vadd.f32 %v1055, %v1343
    %1345 = vmatmul.bf16.gmra.mxu0 %v1249
    %v1346 = vpop.f32.mrf.mxu0
    %v1347 = vadd.f32 %v1060, %v1346
    %v1348 = vpop.f32.mrf.mxu0
    %v1349 = vadd.f32 %v1065, %v1348
    %1350 = vmatmul.bf16.gmra.mxu0 %v1251
    %v1351 = vpop.f32.mrf.mxu0
    %v1352 = vadd.f32 %v1070, %v1351
    %v1353 = vpop.f32.mrf.mxu0
    %v1354 = vadd.f32 %v1075, %v1353
    %1355 = vmatmul.bf16.gmra.mxu0 %v1253
    %v1356 = vpop.f32.mrf.mxu0
    %v1357 = vadd.f32 %v1080, %v1356
    %v1358 = vpop.f32.mrf.mxu0
    %v1359 = vadd.f32 %v1085, %v1358
    %1360 = vmatmul.bf16.gmra.mxu0 %v1255
    %v1361 = vpop.f32.mrf.mxu0
    %v1362 = vadd.f32 %v1090, %v1361
    %v1363 = vpop.f32.mrf.mxu0
    %v1364 = vadd.f32 %v1095, %v1363
    %1365 = vmatmul.bf16.gmra.mxu0 %v1257
    %v1366 = vpop.f32.mrf.mxu0
    %v1367 = vadd.f32 %v1100, %v1366
    %v1368 = vpop.f32.mrf.mxu0
    %v1369 = vadd.f32 %v1105, %v1368
    %1370 = vmatmul.bf16.gmra.mxu0 %v1259
    %v1371 = vpop.f32.mrf.mxu0
    %v1372 = vadd.f32 %v1110, %v1371
    %v1373 = vpop.f32.mrf.mxu0
    %v1374 = vadd.f32 %v1115, %v1373
    %1375 = vmatmul.bf16.gmra.mxu0 %v1261
    %v1376 = vpop.f32.mrf.mxu0
    %v1377 = vadd.f32 %v1120, %v1376
    %v1378 = vpop.f32.mrf.mxu0
    %v1379 = vadd.f32 %v1125, %v1378
    %1380 = vmatmul.bf16.gmra.mxu0 %v1263
    %v1381 = vpop.f32.mrf.mxu0
    %v1382 = vadd.f32 %v1130, %v1381
    %v1383 = vpop.f32.mrf.mxu0
    %v1384 = vadd.f32 %v1135, %v1383
    %1385 = vdwg.mxu0
    %1386 = vmatpush.bf16.msra.mxu0 %v912
    %1387 = vmatpush.bf16.msra.mxu0 %v911
    %1388 = vmatpush.bf16.msra.mxu0 %v910
    %1389 = vmatpush.bf16.msra.mxu0 %v909
    %1390 = vmatpush.bf16.msra.mxu0 %v908
    %1391 = vmatpush.bf16.msra.mxu0 %v907
    %1392 = vmatpush.bf16.msra.mxu0 %v906
    %1393 = vmatpush.bf16.msra.mxu0 %v905
    %1394 = vmatmul.bf16.gmra.mxu0 %v1234
    %v1395 = vpop.f32.mrf.mxu0
    %v1396 = vadd.f32 %v1307, %v1395
    %v1397 = vpop.f32.mrf.mxu0
    %v1398 = vadd.f32 %v1309, %v1397
    %1399 = vmatmul.bf16.gmra.mxu0 %v1236
    %v1400 = vpop.f32.mrf.mxu0
    %v1401 = vadd.f32 %v1312, %v1400
    %v1402 = vpop.f32.mrf.mxu0
    %v1403 = vadd.f32 %v1314, %v1402
    %1404 = vmatmul.bf16.gmra.mxu0 %v1238
    %v1405 = vpop.f32.mrf.mxu0
    %v1406 = vadd.f32 %v1317, %v1405
    %v1407 = vpop.f32.mrf.mxu0
    %v1408 = vadd.f32 %v1319, %v1407
    %1409 = vmatmul.bf16.gmra.mxu0 %v1240
    %v1410 = vpop.f32.mrf.mxu0
    %v1411 = vadd.f32 %v1322, %v1410
    %v1412 = vpop.f32.mrf.mxu0
    %v1413 = vadd.f32 %v1324, %v1412
    %1414 = vmatmul.bf16.gmra.mxu0 %v1242
    %v1415 = vpop.f32.mrf.mxu0
    %v1416 = vadd.f32 %v1327, %v1415
    %v1417 = vpop.f32.mrf.mxu0
    %v1418 = vadd.f32 %v1329, %v1417
    %1419 = vmatmul.bf16.gmra.mxu0 %v1244
    %v1420 = vpop.f32.mrf.mxu0
    %v1421 = vadd.f32 %v1332, %v1420
    %v1422 = vpop.f32.mrf.mxu0
    %v1423 = vadd.f32 %v1334, %v1422
    %1424 = vmatmul.bf16.gmra.mxu0 %v1246
    %v1425 = vpop.f32.mrf.mxu0
    %v1426 = vadd.f32 %v1337, %v1425
    %v1427 = vpop.f32.mrf.mxu0
    %v1428 = vadd.f32 %v1339, %v1427
    %1429 = vmatmul.bf16.gmra.mxu0 %v1248
    %v1430 = vpop.f32.mrf.mxu0
    %v1431 = vadd.f32 %v1342, %v1430
    %v1432 = vpop.f32.mrf.mxu0
    %v1433 = vadd.f32 %v1344, %v1432
    %1434 = vmatmul.bf16.gmra.mxu0 %v1250
    %v1435 = vpop.f32.mrf.mxu0
    %v1436 = vadd.f32 %v1347, %v1435
    %v1437 = vpop.f32.mrf.mxu0
    %v1438 = vadd.f32 %v1349, %v1437
    %1439 = vmatmul.bf16.gmra.mxu0 %v1252
    %v1440 = vpop.f32.mrf.mxu0
    %v1441 = vadd.f32 %v1352, %v1440
    %v1442 = vpop.f32.mrf.mxu0
    %v1443 = vadd.f32 %v1354, %v1442
    %1444 = vmatmul.bf16.gmra.mxu0 %v1254
    %v1445 = vpop.f32.mrf.mxu0
    %v1446 = vadd.f32 %v1357, %v1445
    %v1447 = vpop.f32.mrf.mxu0
    %v1448 = vadd.f32 %v1359, %v1447
    %1449 = vmatmul.bf16.gmra.mxu0 %v1256
    %v1450 = vpop.f32.mrf.mxu0
    %v1451 = vadd.f32 %v1362, %v1450
    %v1452 = vpop.f32.mrf.mxu0
    %v1453 = vadd.f32 %v1364, %v1452
    %1454 = vmatmul.bf16.gmra.mxu0 %v1258
    %v1455 = vpop.f32.mrf.mxu0
    %v1456 = vadd.f32 %v1367, %v1455
    %v1457 = vpop.f32.mrf.mxu0
    %v1458 = vadd.f32 %v1369, %v1457
    %1459 = vmatmul.bf16.gmra.mxu0 %v1260
    %v1460 = vpop.f32.mrf.mxu0
    %v1461 = vadd.f32 %v1372, %v1460
    %v1462 = vpop.f32.mrf.mxu0
    %v1463 = vadd.f32 %v1374, %v1462
    %1464 = vmatmul.bf16.gmra.mxu0 %v1262
    %v1465 = vpop.f32.mrf.mxu0
    %v1466 = vadd.f32 %v1377, %v1465
    %v1467 = vpop.f32.mrf.mxu0
    %v1468 = vadd.f32 %v1379, %v1467
    %1469 = vmatmul.bf16.gmra.mxu0 %v1264
    %v1470 = vpop.f32.mrf.mxu0
    %v1471 = vadd.f32 %v1382, %v1470
    %v1472 = vpop.f32.mrf.mxu0
    %v1473 = vadd.f32 %v1384, %v1472
    %1474 = vdwg.mxu0
    %v1475 = vpack.c.bf16 %v1396, %v1396
    %v1476 = vpack.c.bf16 %v1398, %v1398
    %v1477 = vpack.c.bf16 %v1401, %v1401
    %v1478 = vpack.c.bf16 %v1403, %v1403
    %v1479 = vpack.c.bf16 %v1406, %v1406
    %v1480 = vpack.c.bf16 %v1408, %v1408
    %v1481 = vpack.c.bf16 %v1411, %v1411
    %v1482 = vpack.c.bf16 %v1413, %v1413
    %v1483 = vpack.c.bf16 %v1416, %v1416
    %v1484 = vpack.c.bf16 %v1418, %v1418
    %v1485 = vpack.c.bf16 %v1421, %v1421
    %v1486 = vpack.c.bf16 %v1423, %v1423
    %v1487 = vpack.c.bf16 %v1426, %v1426
    %v1488 = vpack.c.bf16 %v1428, %v1428
    %v1489 = vpack.c.bf16 %v1431, %v1431
    %v1490 = vpack.c.bf16 %v1433, %v1433
    %v1491 = vpack.c.bf16 %v1436, %v1436
    %v1492 = vpack.c.bf16 %v1438, %v1438
    %v1493 = vpack.c.bf16 %v1441, %v1441
    %v1494 = vpack.c.bf16 %v1443, %v1443
    %v1495 = vpack.c.bf16 %v1446, %v1446
    %v1496 = vpack.c.bf16 %v1448, %v1448
    %v1497 = vpack.c.bf16 %v1451, %v1451
    %v1498 = vpack.c.bf16 %v1453, %v1453
    %v1499 = vpack.c.bf16 %v1456, %v1456
    %v1500 = vpack.c.bf16 %v1458, %v1458
    %v1501 = vpack.c.bf16 %v1461, %v1461
    %v1502 = vpack.c.bf16 %v1463, %v1463
    %v1503 = vpack.c.bf16 %v1466, %v1466
    %v1504 = vpack.c.bf16 %v1468, %v1468
    %v1505 = vpack.c.bf16 %v1471, %v1471
    %v1506 = vpack.c.bf16 %v1473, %v1473
    %v1507 = vunpack.c.l.bf16 %v1475
    %v1508 = vunpack.c.l.bf16 %v1476
    %v1509 = vunpack.c.l.bf16 %v1477
    %v1510 = vunpack.c.l.bf16 %v1478
    %v1511 = vunpack.c.l.bf16 %v1479
    %v1512 = vunpack.c.l.bf16 %v1480
    %v1513 = vunpack.c.l.bf16 %v1481
    %v1514 = vunpack.c.l.bf16 %v1482
    %v1515 = vunpack.c.l.bf16 %v1483
    %v1516 = vunpack.c.l.bf16 %v1484
    %v1517 = vunpack.c.l.bf16 %v1485
    %v1518 = vunpack.c.l.bf16 %v1486
    %v1519 = vunpack.c.l.bf16 %v1487
    %v1520 = vunpack.c.l.bf16 %v1488
    %v1521 = vunpack.c.l.bf16 %v1489
    %v1522 = vunpack.c.l.bf16 %v1490
    %v1523 = vunpack.c.l.bf16 %v1491
    %v1524 = vunpack.c.l.bf16 %v1492
    %v1525 = vunpack.c.l.bf16 %v1493
    %v1526 = vunpack.c.l.bf16 %v1494
    %v1527 = vunpack.c.l.bf16 %v1495
    %v1528 = vunpack.c.l.bf16 %v1496
    %v1529 = vunpack.c.l.bf16 %v1497
    %v1530 = vunpack.c.l.bf16 %v1498
    %v1531 = vunpack.c.l.bf16 %v1499
    %v1532 = vunpack.c.l.bf16 %v1500
    %v1533 = vunpack.c.l.bf16 %v1501
    %v1534 = vunpack.c.l.bf16 %v1502
    %v1535 = vunpack.c.l.bf16 %v1503
    %v1536 = vunpack.c.l.bf16 %v1504
    %v1537 = vunpack.c.l.bf16 %v1505
    %v1538 = vunpack.c.l.bf16 %v1506
    %v1539 = vmul.f32 %v1507, 0.5
    %v1540 = vmul.f32 %v1508, 0.5
    %v1541 = vmul.f32 %v1509, 0.5
    %v1542 = vmul.f32 %v1510, 0.5
    %v1543 = vmul.f32 %v1511, 0.5
    %v1544 = vmul.f32 %v1512, 0.5
    %v1545 = vmul.f32 %v1513, 0.5
    %v1546 = vmul.f32 %v1514, 0.5
    %v1547 = vmul.f32 %v1515, 0.5
    %v1548 = vmul.f32 %v1516, 0.5
    %v1549 = vmul.f32 %v1517, 0.5
    %v1550 = vmul.f32 %v1518, 0.5
    %v1551 = vmul.f32 %v1519, 0.5
    %v1552 = vmul.f32 %v1520, 0.5
    %v1553 = vmul.f32 %v1521, 0.5
    %v1554 = vmul.f32 %v1522, 0.5
    %v1555 = vmul.f32 %v1523, 0.5
    %v1556 = vmul.f32 %v1524, 0.5
    %v1557 = vmul.f32 %v1525, 0.5
    %v1558 = vmul.f32 %v1526, 0.5
    %v1559 = vmul.f32 %v1527, 0.5
    %v1560 = vmul.f32 %v1528, 0.5
    %v1561 = vmul.f32 %v1529, 0.5
    %v1562 = vmul.f32 %v1530, 0.5
    %v1563 = vmul.f32 %v1531, 0.5
    %v1564 = vmul.f32 %v1532, 0.5
    %v1565 = vmul.f32 %v1533, 0.5
    %v1566 = vmul.f32 %v1534, 0.5
    %v1567 = vmul.f32 %v1535, 0.5
    %v1568 = vmul.f32 %v1536, 0.5
    %v1569 = vmul.f32 %v1537, 0.5
    %v1570 = vmul.f32 %v1538, 0.5
    %v1571 = vpack.c.bf16 %v1539, %v1539
    %v1572 = vpack.c.bf16 %v1540, %v1540
    %v1573 = vpack.c.bf16 %v1541, %v1541
    %v1574 = vpack.c.bf16 %v1542, %v1542
    %v1575 = vpack.c.bf16 %v1543, %v1543
    %v1576 = vpack.c.bf16 %v1544, %v1544
    %v1577 = vpack.c.bf16 %v1545, %v1545
    %v1578 = vpack.c.bf16 %v1546, %v1546
    %v1579 = vpack.c.bf16 %v1547, %v1547
    %v1580 = vpack.c.bf16 %v1548, %v1548
    %v1581 = vpack.c.bf16 %v1549, %v1549
    %v1582 = vpack.c.bf16 %v1550, %v1550
    %v1583 = vpack.c.bf16 %v1551, %v1551
    %v1584 = vpack.c.bf16 %v1552, %v1552
    %v1585 = vpack.c.bf16 %v1553, %v1553
    %v1586 = vpack.c.bf16 %v1554, %v1554
    %v1587 = vpack.c.bf16 %v1555, %v1555
    %v1588 = vpack.c.bf16 %v1556, %v1556
    %v1589 = vpack.c.bf16 %v1557, %v1557
    %v1590 = vpack.c.bf16 %v1558, %v1558
    %v1591 = vpack.c.bf16 %v1559, %v1559
    %v1592 = vpack.c.bf16 %v1560, %v1560
    %v1593 = vpack.c.bf16 %v1561, %v1561
    %v1594 = vpack.c.bf16 %v1562, %v1562
    %v1595 = vpack.c.bf16 %v1563, %v1563
    %v1596 = vpack.c.bf16 %v1564, %v1564
    %v1597 = vpack.c.bf16 %v1565, %v1565
    %v1598 = vpack.c.bf16 %v1566, %v1566
    %v1599 = vpack.c.bf16 %v1567, %v1567
    %v1600 = vpack.c.bf16 %v1568, %v1568
    %v1601 = vpack.c.bf16 %v1569, %v1569
    %v1602 = vpack.c.bf16 %v1570, %v1570
    %v1603 = vunpack.c.l.bf16 %v1571
    %v1604 = vunpack.c.l.bf16 %v1572
    %v1605 = vunpack.c.l.bf16 %v1573
    %v1606 = vunpack.c.l.bf16 %v1574
    %v1607 = vunpack.c.l.bf16 %v1575
    %v1608 = vunpack.c.l.bf16 %v1576
    %v1609 = vunpack.c.l.bf16 %v1577
    %v1610 = vunpack.c.l.bf16 %v1578
    %v1611 = vunpack.c.l.bf16 %v1579
    %v1612 = vunpack.c.l.bf16 %v1580
    %v1613 = vunpack.c.l.bf16 %v1581
    %v1614 = vunpack.c.l.bf16 %v1582
    %v1615 = vunpack.c.l.bf16 %v1583
    %v1616 = vunpack.c.l.bf16 %v1584
    %v1617 = vunpack.c.l.bf16 %v1585
    %v1618 = vunpack.c.l.bf16 %v1586
    %v1619 = vunpack.c.l.bf16 %v1587
    %v1620 = vunpack.c.l.bf16 %v1588
    %v1621 = vunpack.c.l.bf16 %v1589
    %v1622 = vunpack.c.l.bf16 %v1590
    %v1623 = vunpack.c.l.bf16 %v1591
    %v1624 = vunpack.c.l.bf16 %v1592
    %v1625 = vunpack.c.l.bf16 %v1593
    %v1626 = vunpack.c.l.bf16 %v1594
    %v1627 = vunpack.c.l.bf16 %v1595
    %v1628 = vunpack.c.l.bf16 %v1596
    %v1629 = vunpack.c.l.bf16 %v1597
    %v1630 = vunpack.c.l.bf16 %v1598
    %v1631 = vunpack.c.l.bf16 %v1599
    %v1632 = vunpack.c.l.bf16 %v1600
    %v1633 = vunpack.c.l.bf16 %v1601
    %v1634 = vunpack.c.l.bf16 %v1602
    %v1635 = vtanh.pop %v1603
    %v1636 = vtanh.pop %v1604
    %v1637 = vtanh.pop %v1605
    %v1638 = vtanh.pop %v1606
    %v1639 = vtanh.pop %v1607
    %v1640 = vtanh.pop %v1608
    %v1641 = vtanh.pop %v1609
    %v1642 = vtanh.pop %v1610
    %v1643 = vtanh.pop %v1611
    %v1644 = vtanh.pop %v1612
    %v1645 = vtanh.pop %v1613
    %v1646 = vtanh.pop %v1614
    %v1647 = vtanh.pop %v1615
    %v1648 = vtanh.pop %v1616
    %v1649 = vtanh.pop %v1617
    %v1650 = vtanh.pop %v1618
    %v1651 = vtanh.pop %v1619
    %v1652 = vtanh.pop %v1620
    %v1653 = vtanh.pop %v1621
    %v1654 = vtanh.pop %v1622
    %v1655 = vtanh.pop %v1623
    %v1656 = vtanh.pop %v1624
    %v1657 = vtanh.pop %v1625
    %v1658 = vtanh.pop %v1626
    %v1659 = vtanh.pop %v1627
    %v1660 = vtanh.pop %v1628
    %v1661 = vtanh.pop %v1629
    %v1662 = vtanh.pop %v1630
    %v1663 = vtanh.pop %v1631
    %v1664 = vtanh.pop %v1632
    %v1665 = vtanh.pop %v1633
    %v1666 = vtanh.pop %v1634
    %v1667 = vpack.c.bf16 %v1635, %v1635
    %v1668 = vpack.c.bf16 %v1636, %v1636
    %v1669 = vpack.c.bf16 %v1637, %v1637
    %v1670 = vpack.c.bf16 %v1638, %v1638
    %v1671 = vpack.c.bf16 %v1639, %v1639
    %v1672 = vpack.c.bf16 %v1640, %v1640
    %v1673 = vpack.c.bf16 %v1641, %v1641
    %v1674 = vpack.c.bf16 %v1642, %v1642
    %v1675 = vpack.c.bf16 %v1643, %v1643
    %v1676 = vpack.c.bf16 %v1644, %v1644
    %v1677 = vpack.c.bf16 %v1645, %v1645
    %v1678 = vpack.c.bf16 %v1646, %v1646
    %v1679 = vpack.c.bf16 %v1647, %v1647
    %v1680 = vpack.c.bf16 %v1648, %v1648
    %v1681 = vpack.c.bf16 %v1649, %v1649
    %v1682 = vpack.c.bf16 %v1650, %v1650
    %v1683 = vpack.c.bf16 %v1651, %v1651
    %v1684 = vpack.c.bf16 %v1652, %v1652
    %v1685 = vpack.c.bf16 %v1653, %v1653
    %v1686 = vpack.c.bf16 %v1654, %v1654
    %v1687 = vpack.c.bf16 %v1655, %v1655
    %v1688 = vpack.c.bf16 %v1656, %v1656
    %v1689 = vpack.c.bf16 %v1657, %v1657
    %v1690 = vpack.c.bf16 %v1658, %v1658
    %v1691 = vpack.c.bf16 %v1659, %v1659
    %v1692 = vpack.c.bf16 %v1660, %v1660
    %v1693 = vpack.c.bf16 %v1661, %v1661
    %v1694 = vpack.c.bf16 %v1662, %v1662
    %v1695 = vpack.c.bf16 %v1663, %v1663
    %v1696 = vpack.c.bf16 %v1664, %v1664
    %v1697 = vpack.c.bf16 %v1665, %v1665
    %v1698 = vpack.c.bf16 %v1666, %v1666
    %v1699 = vunpack.c.l.bf16 %v1667
    %v1700 = vunpack.c.l.bf16 %v1668
    %v1701 = vunpack.c.l.bf16 %v1669
    %v1702 = vunpack.c.l.bf16 %v1670
    %v1703 = vunpack.c.l.bf16 %v1671
    %v1704 = vunpack.c.l.bf16 %v1672
    %v1705 = vunpack.c.l.bf16 %v1673
    %v1706 = vunpack.c.l.bf16 %v1674
    %v1707 = vunpack.c.l.bf16 %v1675
    %v1708 = vunpack.c.l.bf16 %v1676
    %v1709 = vunpack.c.l.bf16 %v1677
    %v1710 = vunpack.c.l.bf16 %v1678
    %v1711 = vunpack.c.l.bf16 %v1679
    %v1712 = vunpack.c.l.bf16 %v1680
    %v1713 = vunpack.c.l.bf16 %v1681
    %v1714 = vunpack.c.l.bf16 %v1682
    %v1715 = vunpack.c.l.bf16 %v1683
    %v1716 = vunpack.c.l.bf16 %v1684
    %v1717 = vunpack.c.l.bf16 %v1685
    %v1718 = vunpack.c.l.bf16 %v1686
    %v1719 = vunpack.c.l.bf16 %v1687
    %v1720 = vunpack.c.l.bf16 %v1688
    %v1721 = vunpack.c.l.bf16 %v1689
    %v1722 = vunpack.c.l.bf16 %v1690
    %v1723 = vunpack.c.l.bf16 %v1691
    %v1724 = vunpack.c.l.bf16 %v1692
    %v1725 = vunpack.c.l.bf16 %v1693
    %v1726 = vunpack.c.l.bf16 %v1694
    %v1727 = vunpack.c.l.bf16 %v1695
    %v1728 = vunpack.c.l.bf16 %v1696
    %v1729 = vunpack.c.l.bf16 %v1697
    %v1730 = vunpack.c.l.bf16 %v1698
    %v1731 = vmul.f32 %v1699, 0.5
    %v1732 = vmul.f32 %v1700, 0.5
    %v1733 = vmul.f32 %v1701, 0.5
    %v1734 = vmul.f32 %v1702, 0.5
    %v1735 = vmul.f32 %v1703, 0.5
    %v1736 = vmul.f32 %v1704, 0.5
    %v1737 = vmul.f32 %v1705, 0.5
    %v1738 = vmul.f32 %v1706, 0.5
    %v1739 = vmul.f32 %v1707, 0.5
    %v1740 = vmul.f32 %v1708, 0.5
    %v1741 = vmul.f32 %v1709, 0.5
    %v1742 = vmul.f32 %v1710, 0.5
    %v1743 = vmul.f32 %v1711, 0.5
    %v1744 = vmul.f32 %v1712, 0.5
    %v1745 = vmul.f32 %v1713, 0.5
    %v1746 = vmul.f32 %v1714, 0.5
    %v1747 = vmul.f32 %v1715, 0.5
    %v1748 = vmul.f32 %v1716, 0.5
    %v1749 = vmul.f32 %v1717, 0.5
    %v1750 = vmul.f32 %v1718, 0.5
    %v1751 = vmul.f32 %v1719, 0.5
    %v1752 = vmul.f32 %v1720, 0.5
    %v1753 = vmul.f32 %v1721, 0.5
    %v1754 = vmul.f32 %v1722, 0.5
    %v1755 = vmul.f32 %v1723, 0.5
    %v1756 = vmul.f32 %v1724, 0.5
    %v1757 = vmul.f32 %v1725, 0.5
    %v1758 = vmul.f32 %v1726, 0.5
    %v1759 = vmul.f32 %v1727, 0.5
    %v1760 = vmul.f32 %v1728, 0.5
    %v1761 = vmul.f32 %v1729, 0.5
    %v1762 = vmul.f32 %v1730, 0.5
    %v1763 = vpack.c.bf16 %v1731, %v1731
    %v1764 = vpack.c.bf16 %v1732, %v1732
    %v1765 = vpack.c.bf16 %v1733, %v1733
    %v1766 = vpack.c.bf16 %v1734, %v1734
    %v1767 = vpack.c.bf16 %v1735, %v1735
    %v1768 = vpack.c.bf16 %v1736, %v1736
    %v1769 = vpack.c.bf16 %v1737, %v1737
    %v1770 = vpack.c.bf16 %v1738, %v1738
    %v1771 = vpack.c.bf16 %v1739, %v1739
    %v1772 = vpack.c.bf16 %v1740, %v1740
    %v1773 = vpack.c.bf16 %v1741, %v1741
    %v1774 = vpack.c.bf16 %v1742, %v1742
    %v1775 = vpack.c.bf16 %v1743, %v1743
    %v1776 = vpack.c.bf16 %v1744, %v1744
    %v1777 = vpack.c.bf16 %v1745, %v1745
    %v1778 = vpack.c.bf16 %v1746, %v1746
    %v1779 = vpack.c.bf16 %v1747, %v1747
    %v1780 = vpack.c.bf16 %v1748, %v1748
    %v1781 = vpack.c.bf16 %v1749, %v1749
    %v1782 = vpack.c.bf16 %v1750, %v1750
    %v1783 = vpack.c.bf16 %v1751, %v1751
    %v1784 = vpack.c.bf16 %v1752, %v1752
    %v1785 = vpack.c.bf16 %v1753, %v1753
    %v1786 = vpack.c.bf16 %v1754, %v1754
    %v1787 = vpack.c.bf16 %v1755, %v1755
    %v1788 = vpack.c.bf16 %v1756, %v1756
    %v1789 = vpack.c.bf16 %v1757, %v1757
    %v1790 = vpack.c.bf16 %v1758, %v1758
    %v1791 = vpack.c.bf16 %v1759, %v1759
    %v1792 = vpack.c.bf16 %v1760, %v1760
    %v1793 = vpack.c.bf16 %v1761, %v1761
    %v1794 = vpack.c.bf16 %v1762, %v1762
    %v1795 = vunpack.c.l.bf16 %v1763
    %v1796 = vunpack.c.l.bf16 %v1764
    %v1797 = vunpack.c.l.bf16 %v1765
    %v1798 = vunpack.c.l.bf16 %v1766
    %v1799 = vunpack.c.l.bf16 %v1767
    %v1800 = vunpack.c.l.bf16 %v1768
    %v1801 = vunpack.c.l.bf16 %v1769
    %v1802 = vunpack.c.l.bf16 %v1770
    %v1803 = vunpack.c.l.bf16 %v1771
    %v1804 = vunpack.c.l.bf16 %v1772
    %v1805 = vunpack.c.l.bf16 %v1773
    %v1806 = vunpack.c.l.bf16 %v1774
    %v1807 = vunpack.c.l.bf16 %v1775
    %v1808 = vunpack.c.l.bf16 %v1776
    %v1809 = vunpack.c.l.bf16 %v1777
    %v1810 = vunpack.c.l.bf16 %v1778
    %v1811 = vunpack.c.l.bf16 %v1779
    %v1812 = vunpack.c.l.bf16 %v1780
    %v1813 = vunpack.c.l.bf16 %v1781
    %v1814 = vunpack.c.l.bf16 %v1782
    %v1815 = vunpack.c.l.bf16 %v1783
    %v1816 = vunpack.c.l.bf16 %v1784
    %v1817 = vunpack.c.l.bf16 %v1785
    %v1818 = vunpack.c.l.bf16 %v1786
    %v1819 = vunpack.c.l.bf16 %v1787
    %v1820 = vunpack.c.l.bf16 %v1788
    %v1821 = vunpack.c.l.bf16 %v1789
    %v1822 = vunpack.c.l.bf16 %v1790
    %v1823 = vunpack.c.l.bf16 %v1791
    %v1824 = vunpack.c.l.bf16 %v1792
    %v1825 = vunpack.c.l.bf16 %v1793
    %v1826 = vunpack.c.l.bf16 %v1794
    %v1827 = vadd.f32 %v1795, 0.5
    %v1828 = vadd.f32 %v1796, 0.5
    %v1829 = vadd.f32 %v1797, 0.5
    %v1830 = vadd.f32 %v1798, 0.5
    %v1831 = vadd.f32 %v1799, 0.5
    %v1832 = vadd.f32 %v1800, 0.5
    %v1833 = vadd.f32 %v1801, 0.5
    %v1834 = vadd.f32 %v1802, 0.5
    %v1835 = vadd.f32 %v1803, 0.5
    %v1836 = vadd.f32 %v1804, 0.5
    %v1837 = vadd.f32 %v1805, 0.5
    %v1838 = vadd.f32 %v1806, 0.5
    %v1839 = vadd.f32 %v1807, 0.5
    %v1840 = vadd.f32 %v1808, 0.5
    %v1841 = vadd.f32 %v1809, 0.5
    %v1842 = vadd.f32 %v1810, 0.5
    %v1843 = vadd.f32 %v1811, 0.5
    %v1844 = vadd.f32 %v1812, 0.5
    %v1845 = vadd.f32 %v1813, 0.5
    %v1846 = vadd.f32 %v1814, 0.5
    %v1847 = vadd.f32 %v1815, 0.5
    %v1848 = vadd.f32 %v1816, 0.5
    %v1849 = vadd.f32 %v1817, 0.5
    %v1850 = vadd.f32 %v1818, 0.5
    %v1851 = vadd.f32 %v1819, 0.5
    %v1852 = vadd.f32 %v1820, 0.5
    %v1853 = vadd.f32 %v1821, 0.5
    %v1854 = vadd.f32 %v1822, 0.5
    %v1855 = vadd.f32 %v1823, 0.5
    %v1856 = vadd.f32 %v1824, 0.5
    %v1857 = vadd.f32 %v1825, 0.5
    %v1858 = vadd.f32 %v1826, 0.5
    %v1859 = vpack.c.bf16 %v1828, %v1827
    %v1860 = vpack.c.bf16 %v1830, %v1829
    %v1861 = vpack.c.bf16 %v1832, %v1831
    %v1862 = vpack.c.bf16 %v1834, %v1833
    %v1863 = vpack.c.bf16 %v1836, %v1835
    %v1864 = vpack.c.bf16 %v1838, %v1837
    %v1865 = vpack.c.bf16 %v1840, %v1839
    %v1866 = vpack.c.bf16 %v1842, %v1841
    %v1867 = vpack.c.bf16 %v1844, %v1843
    %v1868 = vpack.c.bf16 %v1846, %v1845
    %v1869 = vpack.c.bf16 %v1848, %v1847
    %v1870 = vpack.c.bf16 %v1850, %v1849
    %v1871 = vpack.c.bf16 %v1852, %v1851
    %v1872 = vpack.c.bf16 %v1854, %v1853
    %v1873 = vpack.c.bf16 %v1856, %v1855
    %v1874 = vpack.c.bf16 %v1858, %v1857
    %v1875 = vld [vmem:[%s6] sm:$0xff]
    %v1876 = vld [vmem:[%s6 + $0x8] sm:$0xff]
    %v1877 = vld [vmem:[%s6 + $0x10] sm:$0xff]
    %v1878 = vld [vmem:[%s6 + $0x18] sm:$0xff]
    %v1879 = vld [vmem:[%s6 + $0x20] sm:$0xff]
    %v1880 = vld [vmem:[%s6 + $0x28] sm:$0xff]
    %v1881 = vld [vmem:[%s6 + $0x30] sm:$0xff]
    %v1882 = vld [vmem:[%s6 + $0x38] sm:$0xff]
    %v1883 = vld [vmem:[%s6 + $0x40] sm:$0xff]
    %v1884 = vld [vmem:[%s6 + $0x48] sm:$0xff]
    %v1885 = vld [vmem:[%s6 + $0x50] sm:$0xff]
    %v1886 = vld [vmem:[%s6 + $0x58] sm:$0xff]
    %v1887 = vld [vmem:[%s6 + $0x60] sm:$0xff]
    %v1888 = vld [vmem:[%s6 + $0x68] sm:$0xff]
    %v1889 = vld [vmem:[%s6 + $0x70] sm:$0xff]
    %v1890 = vld [vmem:[%s6 + $0x78] sm:$0xff]
    %v1891 = vld [vmem:[%s7] sm:$0xff]
    %v1892 = vld [vmem:[%s7 + $0x8] sm:$0xff]
    %v1893 = vld [vmem:[%s7 + $0x10] sm:$0xff]
    %v1894 = vld [vmem:[%s7 + $0x18] sm:$0xff]
    %v1895 = vld [vmem:[%s7 + $0x20] sm:$0xff]
    %v1896 = vld [vmem:[%s7 + $0x28] sm:$0xff]
    %v1897 = vld [vmem:[%s7 + $0x30] sm:$0xff]
    %v1898 = vld [vmem:[%s7 + $0x38] sm:$0xff]
    %v1899 = vld [vmem:[%s7 + $0x40] sm:$0xff]
    %v1900 = vld [vmem:[%s7 + $0x48] sm:$0xff]
    %v1901 = vld [vmem:[%s7 + $0x50] sm:$0xff]
    %v1902 = vld [vmem:[%s7 + $0x58] sm:$0xff]
    %v1903 = vld [vmem:[%s7 + $0x60] sm:$0xff]
    %v1904 = vld [vmem:[%s7 + $0x68] sm:$0xff]
    %v1905 = vld [vmem:[%s7 + $0x70] sm:$0xff]
    %v1906 = vld [vmem:[%s7 + $0x78] sm:$0xff]
    %1908 = vset.pattern.permute.xlu0 0
    %1909 = vperm.xlu0 %1908, %v1891
    %v1910 = vpop.permute.xlu0 %1909
    %1913 = vset.pattern.permute.xlu0 0
    %1914 = vperm.xlu0 %1913, %v1892
    %v1915 = vpop.permute.xlu0 %1914
    %1918 = vset.pattern.permute.xlu0 0
    %1919 = vperm.xlu0 %1918, %v1893
    %v1920 = vpop.permute.xlu0 %1919
    %1923 = vset.pattern.permute.xlu0 0
    %1924 = vperm.xlu0 %1923, %v1894
    %v1925 = vpop.permute.xlu0 %1924
    %1928 = vset.pattern.permute.xlu0 0
    %1929 = vperm.xlu0 %1928, %v1895
    %v1930 = vpop.permute.xlu0 %1929
    %1933 = vset.pattern.permute.xlu0 0
    %1934 = vperm.xlu0 %1933, %v1896
    %v1935 = vpop.permute.xlu0 %1934
    %1938 = vset.pattern.permute.xlu0 0
    %1939 = vperm.xlu0 %1938, %v1897
    %v1940 = vpop.permute.xlu0 %1939
    %1943 = vset.pattern.permute.xlu0 0
    %1944 = vperm.xlu0 %1943, %v1898
    %v1945 = vpop.permute.xlu0 %1944
    %1948 = vset.pattern.permute.xlu0 0
    %1949 = vperm.xlu0 %1948, %v1899
    %v1950 = vpop.permute.xlu0 %1949
    %1953 = vset.pattern.permute.xlu0 0
    %1954 = vperm.xlu0 %1953, %v1900
    %v1955 = vpop.permute.xlu0 %1954
    %1958 = vset.pattern.permute.xlu0 0
    %1959 = vperm.xlu0 %1958, %v1901
    %v1960 = vpop.permute.xlu0 %1959
    %1963 = vset.pattern.permute.xlu0 0
    %1964 = vperm.xlu0 %1963, %v1902
    %v1965 = vpop.permute.xlu0 %1964
    %1968 = vset.pattern.permute.xlu0 0
    %1969 = vperm.xlu0 %1968, %v1903
    %v1970 = vpop.permute.xlu0 %1969
    %1973 = vset.pattern.permute.xlu0 0
    %1974 = vperm.xlu0 %1973, %v1904
    %v1975 = vpop.permute.xlu0 %1974
    %1978 = vset.pattern.permute.xlu0 0
    %1979 = vperm.xlu0 %1978, %v1905
    %v1980 = vpop.permute.xlu0 %1979
    %1983 = vset.pattern.permute.xlu0 0
    %1984 = vperm.xlu0 %1983, %v1906
    %v1985 = vpop.permute.xlu0 %1984
    %v2003 = vunpack.c.l.b16 %v1875
    %v2004 = vunpack.c.h.b16 %v1875
    %v2005 = vunpack.c.l.b16 %v1876
    %v2006 = vunpack.c.h.b16 %v1876
    %v2007 = vunpack.c.l.b16 %v1877
    %v2008 = vunpack.c.h.b16 %v1877
    %v2009 = vunpack.c.l.b16 %v1878
    %v2010 = vunpack.c.h.b16 %v1878
    %v2011 = vunpack.c.l.b16 %v1879
    %v2012 = vunpack.c.h.b16 %v1879
    %v2013 = vunpack.c.l.b16 %v1880
    %v2014 = vunpack.c.h.b16 %v1880
    %v2015 = vunpack.c.l.b16 %v1881
    %v2016 = vunpack.c.h.b16 %v1881
    %v2017 = vunpack.c.l.b16 %v1882
    %v2018 = vunpack.c.h.b16 %v1882
    %v2019 = vunpack.c.l.b16 %v1883
    %v2020 = vunpack.c.h.b16 %v1883
    %v2021 = vunpack.c.l.b16 %v1884
    %v2022 = vunpack.c.h.b16 %v1884
    %v2023 = vunpack.c.l.b16 %v1885
    %v2024 = vunpack.c.h.b16 %v1885
    %v2025 = vunpack.c.l.b16 %v1886
    %v2026 = vunpack.c.h.b16 %v1886
    %v2027 = vunpack.c.l.b16 %v1887
    %v2028 = vunpack.c.h.b16 %v1887
    %v2029 = vunpack.c.l.b16 %v1888
    %v2030 = vunpack.c.h.b16 %v1888
    %v2031 = vunpack.c.l.b16 %v1889
    %v2032 = vunpack.c.h.b16 %v1889
    %v2033 = vunpack.c.l.b16 %v1890
    %v2034 = vunpack.c.h.b16 %v1890
    %v2035 = vpack.c.b16 %v2005, %v2003
    %v2036 = vpack.c.b16 %v2006, %v2004
    %v2037 = vpack.c.b16 %v2009, %v2007
    %v2038 = vpack.c.b16 %v2010, %v2008
    %v2039 = vpack.c.b16 %v2013, %v2011
    %v2040 = vpack.c.b16 %v2014, %v2012
    %v2041 = vpack.c.b16 %v2017, %v2015
    %v2042 = vpack.c.b16 %v2018, %v2016
    %v2043 = vpack.c.b16 %v2021, %v2019
    %v2044 = vpack.c.b16 %v2022, %v2020
    %v2045 = vpack.c.b16 %v2025, %v2023
    %v2046 = vpack.c.b16 %v2026, %v2024
    %v2047 = vpack.c.b16 %v2029, %v2027
    %v2048 = vpack.c.b16 %v2030, %v2028
    %v2049 = vpack.c.b16 %v2033, %v2031
    %v2050 = vpack.c.b16 %v2034, %v2032
    %2067 = vmatpush.bf16.msra.mxu0 %v1866
    %2068 = vmatpush.bf16.msra.mxu0 %v1865
    %2069 = vmatpush.bf16.msra.mxu0 %v1864
    %2070 = vmatpush.bf16.msra.mxu0 %v1863
    %2071 = vmatpush.bf16.msra.mxu0 %v1862
    %2072 = vmatpush.bf16.msra.mxu0 %v1861
    %2073 = vmatpush.bf16.msra.mxu0 %v1860
    %2074 = vmatpush.bf16.msra.mxu0 %v1859
    %2075 = vmatmul.bf16.gmra.mxu0 %v2035
    %v2076 = vpop.f32.mrf.mxu0
    %v2077 = vadd.f32 %v1910, %v2076
    %v2078 = vpop.f32.mrf.mxu0
    %v2079 = vadd.f32 %v1915, %v2078
    %2080 = vmatmul.bf16.gmra.mxu0 %v2037
    %v2081 = vpop.f32.mrf.mxu0
    %v2082 = vadd.f32 %v1920, %v2081
    %v2083 = vpop.f32.mrf.mxu0
    %v2084 = vadd.f32 %v1925, %v2083
    %2085 = vmatmul.bf16.gmra.mxu0 %v2039
    %v2086 = vpop.f32.mrf.mxu0
    %v2087 = vadd.f32 %v1930, %v2086
    %v2088 = vpop.f32.mrf.mxu0
    %v2089 = vadd.f32 %v1935, %v2088
    %2090 = vmatmul.bf16.gmra.mxu0 %v2041
    %v2091 = vpop.f32.mrf.mxu0
    %v2092 = vadd.f32 %v1940, %v2091
    %v2093 = vpop.f32.mrf.mxu0
    %v2094 = vadd.f32 %v1945, %v2093
    %2095 = vmatmul.bf16.gmra.mxu0 %v2043
    %v2096 = vpop.f32.mrf.mxu0
    %v2097 = vadd.f32 %v1950, %v2096
    %v2098 = vpop.f32.mrf.mxu0
    %v2099 = vadd.f32 %v1955, %v2098
    %2100 = vmatmul.bf16.gmra.mxu0 %v2045
    %v2101 = vpop.f32.mrf.mxu0
    %v2102 = vadd.f32 %v1960, %v2101
    %v2103 = vpop.f32.mrf.mxu0
    %v2104 = vadd.f32 %v1965, %v2103
    %2105 = vmatmul.bf16.gmra.mxu0 %v2047
    %v2106 = vpop.f32.mrf.mxu0
    %v2107 = vadd.f32 %v1970, %v2106
    %v2108 = vpop.f32.mrf.mxu0
    %v2109 = vadd.f32 %v1975, %v2108
    %2110 = vmatmul.bf16.gmra.mxu0 %v2049
    %v2111 = vpop.f32.mrf.mxu0
    %v2112 = vadd.f32 %v1980, %v2111
    %v2113 = vpop.f32.mrf.mxu0
    %v2114 = vadd.f32 %v1985, %v2113
    %2115 = vdwg.mxu0
    %2116 = vmatpush.bf16.msra.mxu0 %v1874
    %2117 = vmatpush.bf16.msra.mxu0 %v1873
    %2118 = vmatpush.bf16.msra.mxu0 %v1872
    %2119 = vmatpush.bf16.msra.mxu0 %v1871
    %2120 = vmatpush.bf16.msra.mxu0 %v1870
    %2121 = vmatpush.bf16.msra.mxu0 %v1869
    %2122 = vmatpush.bf16.msra.mxu0 %v1868
    %2123 = vmatpush.bf16.msra.mxu0 %v1867
    %2124 = vmatmul.bf16.gmra.mxu0 %v2036
    %v2125 = vpop.f32.mrf.mxu0
    %v2126 = vadd.f32 %v2077, %v2125
    %v2127 = vpop.f32.mrf.mxu0
    %v2128 = vadd.f32 %v2079, %v2127
    %2129 = vmatmul.bf16.gmra.mxu0 %v2038
    %v2130 = vpop.f32.mrf.mxu0
    %v2131 = vadd.f32 %v2082, %v2130
    %v2132 = vpop.f32.mrf.mxu0
    %v2133 = vadd.f32 %v2084, %v2132
    %2134 = vmatmul.bf16.gmra.mxu0 %v2040
    %v2135 = vpop.f32.mrf.mxu0
    %v2136 = vadd.f32 %v2087, %v2135
    %v2137 = vpop.f32.mrf.mxu0
    %v2138 = vadd.f32 %v2089, %v2137
    %2139 = vmatmul.bf16.gmra.mxu0 %v2042
    %v2140 = vpop.f32.mrf.mxu0
    %v2141 = vadd.f32 %v2092, %v2140
    %v2142 = vpop.f32.mrf.mxu0
    %v2143 = vadd.f32 %v2094, %v2142
    %2144 = vmatmul.bf16.gmra.mxu0 %v2044
    %v2145 = vpop.f32.mrf.mxu0
    %v2146 = vadd.f32 %v2097, %v2145
    %v2147 = vpop.f32.mrf.mxu0
    %v2148 = vadd.f32 %v2099, %v2147
    %2149 = vmatmul.bf16.gmra.mxu0 %v2046
    %v2150 = vpop.f32.mrf.mxu0
    %v2151 = vadd.f32 %v2102, %v2150
    %v2152 = vpop.f32.mrf.mxu0
    %v2153 = vadd.f32 %v2104, %v2152
    %2154 = vmatmul.bf16.gmra.mxu0 %v2048
    %v2155 = vpop.f32.mrf.mxu0
    %v2156 = vadd.f32 %v2107, %v2155
    %v2157 = vpop.f32.mrf.mxu0
    %v2158 = vadd.f32 %v2109, %v2157
    %2159 = vmatmul.bf16.gmra.mxu0 %v2050
    %v2160 = vpop.f32.mrf.mxu0
    %v2161 = vadd.f32 %v2112, %v2160
    %v2162 = vpop.f32.mrf.mxu0
    %v2163 = vadd.f32 %v2114, %v2162
    %2164 = vdwg.mxu0
    %v2165 = vpack.c.bf16 %v2126, %v2126
    %v2166 = vpack.c.bf16 %v2128, %v2128
    %v2167 = vpack.c.bf16 %v2131, %v2131
    %v2168 = vpack.c.bf16 %v2133, %v2133
    %v2169 = vpack.c.bf16 %v2136, %v2136
    %v2170 = vpack.c.bf16 %v2138, %v2138
    %v2171 = vpack.c.bf16 %v2141, %v2141
    %v2172 = vpack.c.bf16 %v2143, %v2143
    %v2173 = vpack.c.bf16 %v2146, %v2146
    %v2174 = vpack.c.bf16 %v2148, %v2148
    %v2175 = vpack.c.bf16 %v2151, %v2151
    %v2176 = vpack.c.bf16 %v2153, %v2153
    %v2177 = vpack.c.bf16 %v2156, %v2156
    %v2178 = vpack.c.bf16 %v2158, %v2158
    %v2179 = vpack.c.bf16 %v2161, %v2161
    %v2180 = vpack.c.bf16 %v2163, %v2163
    %v2181 = vunpack.c.l.bf16 %v2165
    %v2182 = vunpack.c.l.bf16 %v2166
    %v2183 = vunpack.c.l.bf16 %v2167
    %v2184 = vunpack.c.l.bf16 %v2168
    %v2185 = vunpack.c.l.bf16 %v2169
    %v2186 = vunpack.c.l.bf16 %v2170
    %v2187 = vunpack.c.l.bf16 %v2171
    %v2188 = vunpack.c.l.bf16 %v2172
    %v2189 = vunpack.c.l.bf16 %v2173
    %v2190 = vunpack.c.l.bf16 %v2174
    %v2191 = vunpack.c.l.bf16 %v2175
    %v2192 = vunpack.c.l.bf16 %v2176
    %v2193 = vunpack.c.l.bf16 %v2177
    %v2194 = vunpack.c.l.bf16 %v2178
    %v2195 = vunpack.c.l.bf16 %v2179
    %v2196 = vunpack.c.l.bf16 %v2180
    %v2197 = vmul.f32 %v2181, 0.5
    %v2198 = vmul.f32 %v2182, 0.5
    %v2199 = vmul.f32 %v2183, 0.5
    %v2200 = vmul.f32 %v2184, 0.5
    %v2201 = vmul.f32 %v2185, 0.5
    %v2202 = vmul.f32 %v2186, 0.5
    %v2203 = vmul.f32 %v2187, 0.5
    %v2204 = vmul.f32 %v2188, 0.5
    %v2205 = vmul.f32 %v2189, 0.5
    %v2206 = vmul.f32 %v2190, 0.5
    %v2207 = vmul.f32 %v2191, 0.5
    %v2208 = vmul.f32 %v2192, 0.5
    %v2209 = vmul.f32 %v2193, 0.5
    %v2210 = vmul.f32 %v2194, 0.5
    %v2211 = vmul.f32 %v2195, 0.5
    %v2212 = vmul.f32 %v2196, 0.5
    %v2213 = vpack.c.bf16 %v2197, %v2197
    %v2214 = vpack.c.bf16 %v2198, %v2198
    %v2215 = vpack.c.bf16 %v2199, %v2199
    %v2216 = vpack.c.bf16 %v2200, %v2200
    %v2217 = vpack.c.bf16 %v2201, %v2201
    %v2218 = vpack.c.bf16 %v2202, %v2202
    %v2219 = vpack.c.bf16 %v2203, %v2203
    %v2220 = vpack.c.bf16 %v2204, %v2204
    %v2221 = vpack.c.bf16 %v2205, %v2205
    %v2222 = vpack.c.bf16 %v2206, %v2206
    %v2223 = vpack.c.bf16 %v2207, %v2207
    %v2224 = vpack.c.bf16 %v2208, %v2208
    %v2225 = vpack.c.bf16 %v2209, %v2209
    %v2226 = vpack.c.bf16 %v2210, %v2210
    %v2227 = vpack.c.bf16 %v2211, %v2211
    %v2228 = vpack.c.bf16 %v2212, %v2212
    %v2229 = vunpack.c.l.bf16 %v2213
    %v2230 = vunpack.c.l.bf16 %v2214
    %v2231 = vunpack.c.l.bf16 %v2215
    %v2232 = vunpack.c.l.bf16 %v2216
    %v2233 = vunpack.c.l.bf16 %v2217
    %v2234 = vunpack.c.l.bf16 %v2218
    %v2235 = vunpack.c.l.bf16 %v2219
    %v2236 = vunpack.c.l.bf16 %v2220
    %v2237 = vunpack.c.l.bf16 %v2221
    %v2238 = vunpack.c.l.bf16 %v2222
    %v2239 = vunpack.c.l.bf16 %v2223
    %v2240 = vunpack.c.l.bf16 %v2224
    %v2241 = vunpack.c.l.bf16 %v2225
    %v2242 = vunpack.c.l.bf16 %v2226
    %v2243 = vunpack.c.l.bf16 %v2227
    %v2244 = vunpack.c.l.bf16 %v2228
    %v2245 = vtanh.pop %v2229
    %v2246 = vtanh.pop %v2230
    %v2247 = vtanh.pop %v2231
    %v2248 = vtanh.pop %v2232
    %v2249 = vtanh.pop %v2233
    %v2250 = vtanh.pop %v2234
    %v2251 = vtanh.pop %v2235
    %v2252 = vtanh.pop %v2236
    %v2253 = vtanh.pop %v2237
    %v2254 = vtanh.pop %v2238
    %v2255 = vtanh.pop %v2239
    %v2256 = vtanh.pop %v2240
    %v2257 = vtanh.pop %v2241
    %v2258 = vtanh.pop %v2242
    %v2259 = vtanh.pop %v2243
    %v2260 = vtanh.pop %v2244
    %v2261 = vpack.c.bf16 %v2245, %v2245
    %v2262 = vpack.c.bf16 %v2246, %v2246
    %v2263 = vpack.c.bf16 %v2247, %v2247
    %v2264 = vpack.c.bf16 %v2248, %v2248
    %v2265 = vpack.c.bf16 %v2249, %v2249
    %v2266 = vpack.c.bf16 %v2250, %v2250
    %v2267 = vpack.c.bf16 %v2251, %v2251
    %v2268 = vpack.c.bf16 %v2252, %v2252
    %v2269 = vpack.c.bf16 %v2253, %v2253
    %v2270 = vpack.c.bf16 %v2254, %v2254
    %v2271 = vpack.c.bf16 %v2255, %v2255
    %v2272 = vpack.c.bf16 %v2256, %v2256
    %v2273 = vpack.c.bf16 %v2257, %v2257
    %v2274 = vpack.c.bf16 %v2258, %v2258
    %v2275 = vpack.c.bf16 %v2259, %v2259
    %v2276 = vpack.c.bf16 %v2260, %v2260
    %v2277 = vunpack.c.l.bf16 %v2261
    %v2278 = vunpack.c.l.bf16 %v2262
    %v2279 = vunpack.c.l.bf16 %v2263
    %v2280 = vunpack.c.l.bf16 %v2264
    %v2281 = vunpack.c.l.bf16 %v2265
    %v2282 = vunpack.c.l.bf16 %v2266
    %v2283 = vunpack.c.l.bf16 %v2267
    %v2284 = vunpack.c.l.bf16 %v2268
    %v2285 = vunpack.c.l.bf16 %v2269
    %v2286 = vunpack.c.l.bf16 %v2270
    %v2287 = vunpack.c.l.bf16 %v2271
    %v2288 = vunpack.c.l.bf16 %v2272
    %v2289 = vunpack.c.l.bf16 %v2273
    %v2290 = vunpack.c.l.bf16 %v2274
    %v2291 = vunpack.c.l.bf16 %v2275
    %v2292 = vunpack.c.l.bf16 %v2276
    %v2293 = vmul.f32 %v2277, 0.5
    %v2294 = vmul.f32 %v2278, 0.5
    %v2295 = vmul.f32 %v2279, 0.5
    %v2296 = vmul.f32 %v2280, 0.5
    %v2297 = vmul.f32 %v2281, 0.5
    %v2298 = vmul.f32 %v2282, 0.5
    %v2299 = vmul.f32 %v2283, 0.5
    %v2300 = vmul.f32 %v2284, 0.5
    %v2301 = vmul.f32 %v2285, 0.5
    %v2302 = vmul.f32 %v2286, 0.5
    %v2303 = vmul.f32 %v2287, 0.5
    %v2304 = vmul.f32 %v2288, 0.5
    %v2305 = vmul.f32 %v2289, 0.5
    %v2306 = vmul.f32 %v2290, 0.5
    %v2307 = vmul.f32 %v2291, 0.5
    %v2308 = vmul.f32 %v2292, 0.5
    %v2309 = vpack.c.bf16 %v2293, %v2293
    %v2310 = vpack.c.bf16 %v2294, %v2294
    %v2311 = vpack.c.bf16 %v2295, %v2295
    %v2312 = vpack.c.bf16 %v2296, %v2296
    %v2313 = vpack.c.bf16 %v2297, %v2297
    %v2314 = vpack.c.bf16 %v2298, %v2298
    %v2315 = vpack.c.bf16 %v2299, %v2299
    %v2316 = vpack.c.bf16 %v2300, %v2300
    %v2317 = vpack.c.bf16 %v2301, %v2301
    %v2318 = vpack.c.bf16 %v2302, %v2302
    %v2319 = vpack.c.bf16 %v2303, %v2303
    %v2320 = vpack.c.bf16 %v2304, %v2304
    %v2321 = vpack.c.bf16 %v2305, %v2305
    %v2322 = vpack.c.bf16 %v2306, %v2306
    %v2323 = vpack.c.bf16 %v2307, %v2307
    %v2324 = vpack.c.bf16 %v2308, %v2308
    %v2325 = vunpack.c.l.bf16 %v2309
    %v2326 = vunpack.c.l.bf16 %v2310
    %v2327 = vunpack.c.l.bf16 %v2311
    %v2328 = vunpack.c.l.bf16 %v2312
    %v2329 = vunpack.c.l.bf16 %v2313
    %v2330 = vunpack.c.l.bf16 %v2314
    %v2331 = vunpack.c.l.bf16 %v2315
    %v2332 = vunpack.c.l.bf16 %v2316
    %v2333 = vunpack.c.l.bf16 %v2317
    %v2334 = vunpack.c.l.bf16 %v2318
    %v2335 = vunpack.c.l.bf16 %v2319
    %v2336 = vunpack.c.l.bf16 %v2320
    %v2337 = vunpack.c.l.bf16 %v2321
    %v2338 = vunpack.c.l.bf16 %v2322
    %v2339 = vunpack.c.l.bf16 %v2323
    %v2340 = vunpack.c.l.bf16 %v2324
    %v2341 = vadd.f32 %v2325, 0.5
    %v2342 = vadd.f32 %v2326, 0.5
    %v2343 = vadd.f32 %v2327, 0.5
    %v2344 = vadd.f32 %v2328, 0.5
    %v2345 = vadd.f32 %v2329, 0.5
    %v2346 = vadd.f32 %v2330, 0.5
    %v2347 = vadd.f32 %v2331, 0.5
    %v2348 = vadd.f32 %v2332, 0.5
    %v2349 = vadd.f32 %v2333, 0.5
    %v2350 = vadd.f32 %v2334, 0.5
    %v2351 = vadd.f32 %v2335, 0.5
    %v2352 = vadd.f32 %v2336, 0.5
    %v2353 = vadd.f32 %v2337, 0.5
    %v2354 = vadd.f32 %v2338, 0.5
    %v2355 = vadd.f32 %v2339, 0.5
    %v2356 = vadd.f32 %v2340, 0.5
    %v2357 = vpack.c.bf16 %v2342, %v2341
    %v2358 = vpack.c.bf16 %v2344, %v2343
    %v2359 = vpack.c.bf16 %v2346, %v2345
    %v2360 = vpack.c.bf16 %v2348, %v2347
    %v2361 = vpack.c.bf16 %v2350, %v2349
    %v2362 = vpack.c.bf16 %v2352, %v2351
    %v2363 = vpack.c.bf16 %v2354, %v2353
    %v2364 = vpack.c.bf16 %v2356, %v2355
    %v2365 = vld [vmem:[%s8] sm:$0x1]
    %v2366 = vld [vmem:[#allocation2] sm:$0x1]
    %2368 = vset.pattern.permute.xlu0 0
    %2369 = vperm.xlu0 %2368, %v2366
    %v2370 = vpop.permute.xlu0 %2369
    %v2372 = vperm.slane %v2370, 0
    %2373 = vmatpush.bf16.msra.mxu0 %v2364
    %2374 = vmatpush.bf16.msra.mxu0 %v2363
    %2375 = vmatpush.bf16.msra.mxu0 %v2362
    %2376 = vmatpush.bf16.msra.mxu0 %v2361
    %2377 = vmatpush.bf16.msra.mxu0 %v2360
    %2378 = vmatpush.bf16.msra.mxu0 %v2359
    %2379 = vmatpush.bf16.msra.mxu0 %v2358
    %2380 = vmatpush.bf16.msra.mxu0 %v2357
    %2381 = vmatmul.bf16.gmra.mxu0 %v2365
    %v2382 = vpop.f32.mrf.mxu0
    %v2383 = vadd.f32 %v2372, %v2382
    %v2384 = vpop.f32.mrf.mxu0
    %2385 = vdwg.mxu0
    %v2386 = vld [vmem:[%s1] sm:$0x1]
    %v2387 = vld [vmem:[%s10] sm:$0xff]
    %v2388 = vld [vmem:[%s10 + $0x8] sm:$0xff]
    %v2389 = vld [vmem:[%s10 + $0x10] sm:$0xff]
    %v2390 = vld [vmem:[%s10 + $0x18] sm:$0xff]
    %v2391 = vld [vmem:[%s10 + $0x20] sm:$0xff]
    %v2392 = vld [vmem:[%s10 + $0x28] sm:$0xff]
    %v2393 = vld [vmem:[%s10 + $0x30] sm:$0xff]
    %v2394 = vld [vmem:[%s10 + $0x38] sm:$0xff]
    %v2395 = vld [vmem:[%s10 + $0x40] sm:$0xff]
    %v2396 = vld [vmem:[%s10 + $0x48] sm:$0xff]
    %v2397 = vld [vmem:[%s10 + $0x50] sm:$0xff]
    %v2398 = vld [vmem:[%s10 + $0x58] sm:$0xff]
    %v2399 = vld [vmem:[%s10 + $0x60] sm:$0xff]
    %v2400 = vld [vmem:[%s10 + $0x68] sm:$0xff]
    %v2401 = vld [vmem:[%s10 + $0x70] sm:$0xff]
    %v2402 = vld [vmem:[%s10 + $0x78] sm:$0xff]
    %2404 = vset.pattern.permute.xlu0 0
    %2405 = vperm.xlu0 %2404, %v2387
    %v2406 = vpop.permute.xlu0 %2405
    %2409 = vset.pattern.permute.xlu0 0
    %2410 = vperm.xlu0 %2409, %v2388
    %v2411 = vpop.permute.xlu0 %2410
    %2414 = vset.pattern.permute.xlu0 0
    %2415 = vperm.xlu0 %2414, %v2389
    %v2416 = vpop.permute.xlu0 %2415
    %2419 = vset.pattern.permute.xlu0 0
    %2420 = vperm.xlu0 %2419, %v2390
    %v2421 = vpop.permute.xlu0 %2420
    %2424 = vset.pattern.permute.xlu0 0
    %2425 = vperm.xlu0 %2424, %v2391
    %v2426 = vpop.permute.xlu0 %2425
    %2429 = vset.pattern.permute.xlu0 0
    %2430 = vperm.xlu0 %2429, %v2392
    %v2431 = vpop.permute.xlu0 %2430
    %2434 = vset.pattern.permute.xlu0 0
    %2435 = vperm.xlu0 %2434, %v2393
    %v2436 = vpop.permute.xlu0 %2435
    %2439 = vset.pattern.permute.xlu0 0
    %2440 = vperm.xlu0 %2439, %v2394
    %v2441 = vpop.permute.xlu0 %2440
    %2444 = vset.pattern.permute.xlu0 0
    %2445 = vperm.xlu0 %2444, %v2395
    %v2446 = vpop.permute.xlu0 %2445
    %2449 = vset.pattern.permute.xlu0 0
    %2450 = vperm.xlu0 %2449, %v2396
    %v2451 = vpop.permute.xlu0 %2450
    %2454 = vset.pattern.permute.xlu0 0
    %2455 = vperm.xlu0 %2454, %v2397
    %v2456 = vpop.permute.xlu0 %2455
    %2459 = vset.pattern.permute.xlu0 0
    %2460 = vperm.xlu0 %2459, %v2398
    %v2461 = vpop.permute.xlu0 %2460
    %2464 = vset.pattern.permute.xlu0 0
    %2465 = vperm.xlu0 %2464, %v2399
    %v2466 = vpop.permute.xlu0 %2465
    %2469 = vset.pattern.permute.xlu0 0
    %2470 = vperm.xlu0 %2469, %v2400
    %v2471 = vpop.permute.xlu0 %2470
    %2474 = vset.pattern.permute.xlu0 0
    %2475 = vperm.xlu0 %2474, %v2401
    %v2476 = vpop.permute.xlu0 %2475
    %2479 = vset.pattern.permute.xlu0 0
    %2480 = vperm.xlu0 %2479, %v2402
    %v2481 = vpop.permute.xlu0 %2480
    %v2484 = vperm.slane %v2386, 0
    %v2486 = vmul.f32 %v2406, %v2484
    %v2487 = vmul.f32 %v2411, %v2484
    %v2488 = vmul.f32 %v2416, %v2484
    %v2489 = vmul.f32 %v2421, %v2484
    %v2490 = vmul.f32 %v2426, %v2484
    %v2491 = vmul.f32 %v2431, %v2484
    %v2492 = vmul.f32 %v2436, %v2484
    %v2493 = vmul.f32 %v2441, %v2484
    %v2494 = vmul.f32 %v2446, %v2484
    %v2495 = vmul.f32 %v2451, %v2484
    %v2496 = vmul.f32 %v2456, %v2484
    %v2497 = vmul.f32 %v2461, %v2484
    %v2498 = vmul.f32 %v2466, %v2484
    %v2499 = vmul.f32 %v2471, %v2484
    %v2500 = vmul.f32 %v2476, %v2484
    %v2501 = vmul.f32 %v2481, %v2484
    %v2502 = vld [vmem:[%s11] sm:$0xff]
    %v2503 = vld [vmem:[%s11 + $0x8] sm:$0xff]
    %v2504 = vld [vmem:[%s11 + $0x10] sm:$0xff]
    %v2505 = vld [vmem:[%s11 + $0x18] sm:$0xff]
    %v2506 = vld [vmem:[%s11 + $0x20] sm:$0xff]
    %v2507 = vld [vmem:[%s11 + $0x28] sm:$0xff]
    %v2508 = vld [vmem:[%s11 + $0x30] sm:$0xff]
    %v2509 = vld [vmem:[%s11 + $0x38] sm:$0xff]
    %v2510 = vld [vmem:[%s11 + $0x40] sm:$0xff]
    %v2511 = vld [vmem:[%s11 + $0x48] sm:$0xff]
    %v2512 = vld [vmem:[%s11 + $0x50] sm:$0xff]
    %v2513 = vld [vmem:[%s11 + $0x58] sm:$0xff]
    %v2514 = vld [vmem:[%s11 + $0x60] sm:$0xff]
    %v2515 = vld [vmem:[%s11 + $0x68] sm:$0xff]
    %v2516 = vld [vmem:[%s11 + $0x70] sm:$0xff]
    %v2517 = vld [vmem:[%s11 + $0x78] sm:$0xff]
    %2519 = vset.pattern.permute.xlu0 0
    %2520 = vperm.xlu0 %2519, %v2502
    %v2521 = vpop.permute.xlu0 %2520
    %2524 = vset.pattern.permute.xlu0 0
    %2525 = vperm.xlu0 %2524, %v2503
    %v2526 = vpop.permute.xlu0 %2525
    %2529 = vset.pattern.permute.xlu0 0
    %2530 = vperm.xlu0 %2529, %v2504
    %v2531 = vpop.permute.xlu0 %2530
    %2534 = vset.pattern.permute.xlu0 0
    %2535 = vperm.xlu0 %2534, %v2505
    %v2536 = vpop.permute.xlu0 %2535
    %2539 = vset.pattern.permute.xlu0 0
    %2540 = vperm.xlu0 %2539, %v2506
    %v2541 = vpop.permute.xlu0 %2540
    %2544 = vset.pattern.permute.xlu0 0
    %2545 = vperm.xlu0 %2544, %v2507
    %v2546 = vpop.permute.xlu0 %2545
    %2549 = vset.pattern.permute.xlu0 0
    %2550 = vperm.xlu0 %2549, %v2508
    %v2551 = vpop.permute.xlu0 %2550
    %2554 = vset.pattern.permute.xlu0 0
    %2555 = vperm.xlu0 %2554, %v2509
    %v2556 = vpop.permute.xlu0 %2555
    %2559 = vset.pattern.permute.xlu0 0
    %2560 = vperm.xlu0 %2559, %v2510
    %v2561 = vpop.permute.xlu0 %2560
    %2564 = vset.pattern.permute.xlu0 0
    %2565 = vperm.xlu0 %2564, %v2511
    %v2566 = vpop.permute.xlu0 %2565
    %2569 = vset.pattern.permute.xlu0 0
    %2570 = vperm.xlu0 %2569, %v2512
    %v2571 = vpop.permute.xlu0 %2570
    %2574 = vset.pattern.permute.xlu0 0
    %2575 = vperm.xlu0 %2574, %v2513
    %v2576 = vpop.permute.xlu0 %2575
    %2579 = vset.pattern.permute.xlu0 0
    %2580 = vperm.xlu0 %2579, %v2514
    %v2581 = vpop.permute.xlu0 %2580
    %2584 = vset.pattern.permute.xlu0 0
    %2585 = vperm.xlu0 %2584, %v2515
    %v2586 = vpop.permute.xlu0 %2585
    %2589 = vset.pattern.permute.xlu0 0
    %2590 = vperm.xlu0 %2589, %v2516
    %v2591 = vpop.permute.xlu0 %2590
    %2594 = vset.pattern.permute.xlu0 0
    %2595 = vperm.xlu0 %2594, %v2517
    %v2596 = vpop.permute.xlu0 %2595
    %v2598 = vadd.f32 %v2486, %v2521
    %v2599 = vadd.f32 %v2487, %v2526
    %v2600 = vadd.f32 %v2488, %v2531
    %v2601 = vadd.f32 %v2489, %v2536
    %v2602 = vadd.f32 %v2490, %v2541
    %v2603 = vadd.f32 %v2491, %v2546
    %v2604 = vadd.f32 %v2492, %v2551
    %v2605 = vadd.f32 %v2493, %v2556
    %v2606 = vadd.f32 %v2494, %v2561
    %v2607 = vadd.f32 %v2495, %v2566
    %v2608 = vadd.f32 %v2496, %v2571
    %v2609 = vadd.f32 %v2497, %v2576
    %v2610 = vadd.f32 %v2498, %v2581
    %v2611 = vadd.f32 %v2499, %v2586
    %v2612 = vadd.f32 %v2500, %v2591
    %v2613 = vadd.f32 %v2501, %v2596
    %v2614 = vpack.c.bf16 %v2598, %v2598
    %v2615 = vpack.c.bf16 %v2599, %v2599
    %v2616 = vpack.c.bf16 %v2600, %v2600
    %v2617 = vpack.c.bf16 %v2601, %v2601
    %v2618 = vpack.c.bf16 %v2602, %v2602
    %v2619 = vpack.c.bf16 %v2603, %v2603
    %v2620 = vpack.c.bf16 %v2604, %v2604
    %v2621 = vpack.c.bf16 %v2605, %v2605
    %v2622 = vpack.c.bf16 %v2606, %v2606
    %v2623 = vpack.c.bf16 %v2607, %v2607
    %v2624 = vpack.c.bf16 %v2608, %v2608
    %v2625 = vpack.c.bf16 %v2609, %v2609
    %v2626 = vpack.c.bf16 %v2610, %v2610
    %v2627 = vpack.c.bf16 %v2611, %v2611
    %v2628 = vpack.c.bf16 %v2612, %v2612
    %v2629 = vpack.c.bf16 %v2613, %v2613
    %v2630 = vunpack.c.l.bf16 %v2614
    %v2631 = vunpack.c.l.bf16 %v2615
    %v2632 = vunpack.c.l.bf16 %v2616
    %v2633 = vunpack.c.l.bf16 %v2617
    %v2634 = vunpack.c.l.bf16 %v2618
    %v2635 = vunpack.c.l.bf16 %v2619
    %v2636 = vunpack.c.l.bf16 %v2620
    %v2637 = vunpack.c.l.bf16 %v2621
    %v2638 = vunpack.c.l.bf16 %v2622
    %v2639 = vunpack.c.l.bf16 %v2623
    %v2640 = vunpack.c.l.bf16 %v2624
    %v2641 = vunpack.c.l.bf16 %v2625
    %v2642 = vunpack.c.l.bf16 %v2626
    %v2643 = vunpack.c.l.bf16 %v2627
    %v2644 = vunpack.c.l.bf16 %v2628
    %v2645 = vunpack.c.l.bf16 %v2629
    %v2646 = vmul.f32 %v2630, 0.5
    %v2647 = vmul.f32 %v2631, 0.5
    %v2648 = vmul.f32 %v2632, 0.5
    %v2649 = vmul.f32 %v2633, 0.5
    %v2650 = vmul.f32 %v2634, 0.5
    %v2651 = vmul.f32 %v2635, 0.5
    %v2652 = vmul.f32 %v2636, 0.5
    %v2653 = vmul.f32 %v2637, 0.5
    %v2654 = vmul.f32 %v2638, 0.5
    %v2655 = vmul.f32 %v2639, 0.5
    %v2656 = vmul.f32 %v2640, 0.5
    %v2657 = vmul.f32 %v2641, 0.5
    %v2658 = vmul.f32 %v2642, 0.5
    %v2659 = vmul.f32 %v2643, 0.5
    %v2660 = vmul.f32 %v2644, 0.5
    %v2661 = vmul.f32 %v2645, 0.5
    %v2662 = vpack.c.bf16 %v2646, %v2646
    %v2663 = vpack.c.bf16 %v2647, %v2647
    %v2664 = vpack.c.bf16 %v2648, %v2648
    %v2665 = vpack.c.bf16 %v2649, %v2649
    %v2666 = vpack.c.bf16 %v2650, %v2650
    %v2667 = vpack.c.bf16 %v2651, %v2651
    %v2668 = vpack.c.bf16 %v2652, %v2652
    %v2669 = vpack.c.bf16 %v2653, %v2653
    %v2670 = vpack.c.bf16 %v2654, %v2654
    %v2671 = vpack.c.bf16 %v2655, %v2655
    %v2672 = vpack.c.bf16 %v2656, %v2656
    %v2673 = vpack.c.bf16 %v2657, %v2657
    %v2674 = vpack.c.bf16 %v2658, %v2658
    %v2675 = vpack.c.bf16 %v2659, %v2659
    %v2676 = vpack.c.bf16 %v2660, %v2660
    %v2677 = vpack.c.bf16 %v2661, %v2661
    %v2678 = vunpack.c.l.bf16 %v2662
    %v2679 = vunpack.c.l.bf16 %v2663
    %v2680 = vunpack.c.l.bf16 %v2664
    %v2681 = vunpack.c.l.bf16 %v2665
    %v2682 = vunpack.c.l.bf16 %v2666
    %v2683 = vunpack.c.l.bf16 %v2667
    %v2684 = vunpack.c.l.bf16 %v2668
    %v2685 = vunpack.c.l.bf16 %v2669
    %v2686 = vunpack.c.l.bf16 %v2670
    %v2687 = vunpack.c.l.bf16 %v2671
    %v2688 = vunpack.c.l.bf16 %v2672
    %v2689 = vunpack.c.l.bf16 %v2673
    %v2690 = vunpack.c.l.bf16 %v2674
    %v2691 = vunpack.c.l.bf16 %v2675
    %v2692 = vunpack.c.l.bf16 %v2676
    %v2693 = vunpack.c.l.bf16 %v2677
    %v2694 = vtanh.pop %v2678
    %v2695 = vtanh.pop %v2679
    %v2696 = vtanh.pop %v2680
    %v2697 = vtanh.pop %v2681
    %v2698 = vtanh.pop %v2682
    %v2699 = vtanh.pop %v2683
    %v2700 = vtanh.pop %v2684
    %v2701 = vtanh.pop %v2685
    %v2702 = vtanh.pop %v2686
    %v2703 = vtanh.pop %v2687
    %v2704 = vtanh.pop %v2688
    %v2705 = vtanh.pop %v2689
    %v2706 = vtanh.pop %v2690
    %v2707 = vtanh.pop %v2691
    %v2708 = vtanh.pop %v2692
    %v2709 = vtanh.pop %v2693
    %v2710 = vpack.c.bf16 %v2694, %v2694
    %v2711 = vpack.c.bf16 %v2695, %v2695
    %v2712 = vpack.c.bf16 %v2696, %v2696
    %v2713 = vpack.c.bf16 %v2697, %v2697
    %v2714 = vpack.c.bf16 %v2698, %v2698
    %v2715 = vpack.c.bf16 %v2699, %v2699
    %v2716 = vpack.c.bf16 %v2700, %v2700
    %v2717 = vpack.c.bf16 %v2701, %v2701
    %v2718 = vpack.c.bf16 %v2702, %v2702
    %v2719 = vpack.c.bf16 %v2703, %v2703
    %v2720 = vpack.c.bf16 %v2704, %v2704
    %v2721 = vpack.c.bf16 %v2705, %v2705
    %v2722 = vpack.c.bf16 %v2706, %v2706
    %v2723 = vpack.c.bf16 %v2707, %v2707
    %v2724 = vpack.c.bf16 %v2708, %v2708
    %v2725 = vpack.c.bf16 %v2709, %v2709
    %v2726 = vunpack.c.l.bf16 %v2710
    %v2727 = vunpack.c.l.bf16 %v2711
    %v2728 = vunpack.c.l.bf16 %v2712
    %v2729 = vunpack.c.l.bf16 %v2713
    %v2730 = vunpack.c.l.bf16 %v2714
    %v2731 = vunpack.c.l.bf16 %v2715
    %v2732 = vunpack.c.l.bf16 %v2716
    %v2733 = vunpack.c.l.bf16 %v2717
    %v2734 = vunpack.c.l.bf16 %v2718
    %v2735 = vunpack.c.l.bf16 %v2719
    %v2736 = vunpack.c.l.bf16 %v2720
    %v2737 = vunpack.c.l.bf16 %v2721
    %v2738 = vunpack.c.l.bf16 %v2722
    %v2739 = vunpack.c.l.bf16 %v2723
    %v2740 = vunpack.c.l.bf16 %v2724
    %v2741 = vunpack.c.l.bf16 %v2725
    %v2742 = vmul.f32 %v2726, 0.5
    %v2743 = vmul.f32 %v2727, 0.5
    %v2744 = vmul.f32 %v2728, 0.5
    %v2745 = vmul.f32 %v2729, 0.5
    %v2746 = vmul.f32 %v2730, 0.5
    %v2747 = vmul.f32 %v2731, 0.5
    %v2748 = vmul.f32 %v2732, 0.5
    %v2749 = vmul.f32 %v2733, 0.5
    %v2750 = vmul.f32 %v2734, 0.5
    %v2751 = vmul.f32 %v2735, 0.5
    %v2752 = vmul.f32 %v2736, 0.5
    %v2753 = vmul.f32 %v2737, 0.5
    %v2754 = vmul.f32 %v2738, 0.5
    %v2755 = vmul.f32 %v2739, 0.5
    %v2756 = vmul.f32 %v2740, 0.5
    %v2757 = vmul.f32 %v2741, 0.5
    %v2758 = vpack.c.bf16 %v2742, %v2742
    %v2759 = vpack.c.bf16 %v2743, %v2743
    %v2760 = vpack.c.bf16 %v2744, %v2744
    %v2761 = vpack.c.bf16 %v2745, %v2745
    %v2762 = vpack.c.bf16 %v2746, %v2746
    %v2763 = vpack.c.bf16 %v2747, %v2747
    %v2764 = vpack.c.bf16 %v2748, %v2748
    %v2765 = vpack.c.bf16 %v2749, %v2749
    %v2766 = vpack.c.bf16 %v2750, %v2750
    %v2767 = vpack.c.bf16 %v2751, %v2751
    %v2768 = vpack.c.bf16 %v2752, %v2752
    %v2769 = vpack.c.bf16 %v2753, %v2753
    %v2770 = vpack.c.bf16 %v2754, %v2754
    %v2771 = vpack.c.bf16 %v2755, %v2755
    %v2772 = vpack.c.bf16 %v2756, %v2756
    %v2773 = vpack.c.bf16 %v2757, %v2757
    %v2774 = vunpack.c.l.bf16 %v2758
    %v2775 = vunpack.c.l.bf16 %v2759
    %v2776 = vunpack.c.l.bf16 %v2760
    %v2777 = vunpack.c.l.bf16 %v2761
    %v2778 = vunpack.c.l.bf16 %v2762
    %v2779 = vunpack.c.l.bf16 %v2763
    %v2780 = vunpack.c.l.bf16 %v2764
    %v2781 = vunpack.c.l.bf16 %v2765
    %v2782 = vunpack.c.l.bf16 %v2766
    %v2783 = vunpack.c.l.bf16 %v2767
    %v2784 = vunpack.c.l.bf16 %v2768
    %v2785 = vunpack.c.l.bf16 %v2769
    %v2786 = vunpack.c.l.bf16 %v2770
    %v2787 = vunpack.c.l.bf16 %v2771
    %v2788 = vunpack.c.l.bf16 %v2772
    %v2789 = vunpack.c.l.bf16 %v2773
    %v2790 = vadd.f32 %v2774, 0.5
    %v2791 = vadd.f32 %v2775, 0.5
    %v2792 = vadd.f32 %v2776, 0.5
    %v2793 = vadd.f32 %v2777, 0.5
    %v2794 = vadd.f32 %v2778, 0.5
    %v2795 = vadd.f32 %v2779, 0.5
    %v2796 = vadd.f32 %v2780, 0.5
    %v2797 = vadd.f32 %v2781, 0.5
    %v2798 = vadd.f32 %v2782, 0.5
    %v2799 = vadd.f32 %v2783, 0.5
    %v2800 = vadd.f32 %v2784, 0.5
    %v2801 = vadd.f32 %v2785, 0.5
    %v2802 = vadd.f32 %v2786, 0.5
    %v2803 = vadd.f32 %v2787, 0.5
    %v2804 = vadd.f32 %v2788, 0.5
    %v2805 = vadd.f32 %v2789, 0.5
    %v2806 = vpack.c.bf16 %v2791, %v2790
    %v2807 = vpack.c.bf16 %v2793, %v2792
    %v2808 = vpack.c.bf16 %v2795, %v2794
    %v2809 = vpack.c.bf16 %v2797, %v2796
    %v2810 = vpack.c.bf16 %v2799, %v2798
    %v2811 = vpack.c.bf16 %v2801, %v2800
    %v2812 = vpack.c.bf16 %v2803, %v2802
    %v2813 = vpack.c.bf16 %v2805, %v2804
    %v2814 = vld [vmem:[%s12] sm:$0xf]
    %v2815 = vld [vmem:[%s12 + $0x4] sm:$0xf]
    %v2816 = vld [vmem:[%s12 + $0x8] sm:$0xf]
    %v2817 = vld [vmem:[%s12 + $0xc] sm:$0xf]
    %v2818 = vld [vmem:[%s12 + $0x10] sm:$0xf]
    %v2819 = vld [vmem:[%s12 + $0x14] sm:$0xf]
    %v2820 = vld [vmem:[%s12 + $0x18] sm:$0xf]
    %v2821 = vld [vmem:[%s12 + $0x1c] sm:$0xf]
    %v2822 = vld [vmem:[%s12 + $0x20] sm:$0xf]
    %v2823 = vld [vmem:[%s12 + $0x24] sm:$0xf]
    %v2824 = vld [vmem:[%s12 + $0x28] sm:$0xf]
    %v2825 = vld [vmem:[%s12 + $0x2c] sm:$0xf]
    %v2826 = vld [vmem:[%s12 + $0x30] sm:$0xf]
    %v2827 = vld [vmem:[%s12 + $0x34] sm:$0xf]
    %v2828 = vld [vmem:[%s12 + $0x38] sm:$0xf]
    %v2829 = vld [vmem:[%s12 + $0x3c] sm:$0xf]
    %v2830 = vld [vmem:[%s13] sm:$0xff]
    %v2831 = vld [vmem:[%s13 + $0x8] sm:$0xff]
    %v2832 = vld [vmem:[%s13 + $0x10] sm:$0xff]
    %v2833 = vld [vmem:[%s13 + $0x18] sm:$0xff]
    %v2834 = vld [vmem:[%s13 + $0x20] sm:$0xff]
    %v2835 = vld [vmem:[%s13 + $0x28] sm:$0xff]
    %v2836 = vld [vmem:[%s13 + $0x30] sm:$0xff]
    %v2837 = vld [vmem:[%s13 + $0x38] sm:$0xff]
    %v2838 = vld [vmem:[%s13 + $0x40] sm:$0xff]
    %v2839 = vld [vmem:[%s13 + $0x48] sm:$0xff]
    %v2840 = vld [vmem:[%s13 + $0x50] sm:$0xff]
    %v2841 = vld [vmem:[%s13 + $0x58] sm:$0xff]
    %v2842 = vld [vmem:[%s13 + $0x60] sm:$0xff]
    %v2843 = vld [vmem:[%s13 + $0x68] sm:$0xff]
    %v2844 = vld [vmem:[%s13 + $0x70] sm:$0xff]
    %v2845 = vld [vmem:[%s13 + $0x78] sm:$0xff]
    %2847 = vset.pattern.permute.xlu0 0
    %2848 = vperm.xlu0 %2847, %v2830
    %v2849 = vpop.permute.xlu0 %2848
    %2852 = vset.pattern.permute.xlu0 0
    %2853 = vperm.xlu0 %2852, %v2831
    %v2854 = vpop.permute.xlu0 %2853
    %2857 = vset.pattern.permute.xlu0 0
    %2858 = vperm.xlu0 %2857, %v2832
    %v2859 = vpop.permute.xlu0 %2858
    %2862 = vset.pattern.permute.xlu0 0
    %2863 = vperm.xlu0 %2862, %v2833
    %v2864 = vpop.permute.xlu0 %2863
    %2867 = vset.pattern.permute.xlu0 0
    %2868 = vperm.xlu0 %2867, %v2834
    %v2869 = vpop.permute.xlu0 %2868
    %2872 = vset.pattern.permute.xlu0 0
    %2873 = vperm.xlu0 %2872, %v2835
    %v2874 = vpop.permute.xlu0 %2873
    %2877 = vset.pattern.permute.xlu0 0
    %2878 = vperm.xlu0 %2877, %v2836
    %v2879 = vpop.permute.xlu0 %2878
    %2882 = vset.pattern.permute.xlu0 0
    %2883 = vperm.xlu0 %2882, %v2837
    %v2884 = vpop.permute.xlu0 %2883
    %2887 = vset.pattern.permute.xlu0 0
    %2888 = vperm.xlu0 %2887, %v2838
    %v2889 = vpop.permute.xlu0 %2888
    %2892 = vset.pattern.permute.xlu0 0
    %2893 = vperm.xlu0 %2892, %v2839
    %v2894 = vpop.permute.xlu0 %2893
    %2897 = vset.pattern.permute.xlu0 0
    %2898 = vperm.xlu0 %2897, %v2840
    %v2899 = vpop.permute.xlu0 %2898
    %2902 = vset.pattern.permute.xlu0 0
    %2903 = vperm.xlu0 %2902, %v2841
    %v2904 = vpop.permute.xlu0 %2903
    %2907 = vset.pattern.permute.xlu0 0
    %2908 = vperm.xlu0 %2907, %v2842
    %v2909 = vpop.permute.xlu0 %2908
    %2912 = vset.pattern.permute.xlu0 0
    %2913 = vperm.xlu0 %2912, %v2843
    %v2914 = vpop.permute.xlu0 %2913
    %2917 = vset.pattern.permute.xlu0 0
    %2918 = vperm.xlu0 %2917, %v2844
    %v2919 = vpop.permute.xlu0 %2918
    %2922 = vset.pattern.permute.xlu0 0
    %2923 = vperm.xlu0 %2922, %v2845
    %v2924 = vpop.permute.xlu0 %2923
    %v2942 = vunpack.c.l.b16 %v2814
    %v2943 = vunpack.c.l.b16 %v2815
    %v2944 = vunpack.c.l.b16 %v2816
    %v2945 = vunpack.c.l.b16 %v2817
    %v2946 = vunpack.c.l.b16 %v2818
    %v2947 = vunpack.c.l.b16 %v2819
    %v2948 = vunpack.c.l.b16 %v2820
    %v2949 = vunpack.c.l.b16 %v2821
    %v2950 = vunpack.c.l.b16 %v2822
    %v2951 = vunpack.c.l.b16 %v2823
    %v2952 = vunpack.c.l.b16 %v2824
    %v2953 = vunpack.c.l.b16 %v2825
    %v2954 = vunpack.c.l.b16 %v2826
    %v2955 = vunpack.c.l.b16 %v2827
    %v2956 = vunpack.c.l.b16 %v2828
    %v2957 = vunpack.c.l.b16 %v2829
    %v2958 = vpack.c.b16 %v2943, %v2942
    %v2959 = vpack.c.b16 %v2945, %v2944
    %v2960 = vpack.c.b16 %v2947, %v2946
    %v2961 = vpack.c.b16 %v2949, %v2948
    %v2962 = vpack.c.b16 %v2951, %v2950
    %v2963 = vpack.c.b16 %v2953, %v2952
    %v2964 = vpack.c.b16 %v2955, %v2954
    %v2965 = vpack.c.b16 %v2957, %v2956
    %2974 = vmatpush.bf16.msra.mxu0 %v2813
    %2975 = vmatpush.bf16.msra.mxu0 %v2812
    %2976 = vmatpush.bf16.msra.mxu0 %v2811
    %2977 = vmatpush.bf16.msra.mxu0 %v2810
    %2978 = vmatpush.bf16.msra.mxu0 %v2809
    %2979 = vmatpush.bf16.msra.mxu0 %v2808
    %2980 = vmatpush.bf16.msra.mxu0 %v2807
    %2981 = vmatpush.bf16.msra.mxu0 %v2806
    %2982 = vmatmul.bf16.gmra.mxu0 %v2958
    %v2983 = vpop.f32.mrf.mxu0
    %v2984 = vadd.f32 %v2849, %v2983
    %v2985 = vpop.f32.mrf.mxu0
    %v2986 = vadd.f32 %v2854, %v2985
    %2987 = vmatmul.bf16.gmra.mxu0 %v2959
    %v2988 = vpop.f32.mrf.mxu0
    %v2989 = vadd.f32 %v2859, %v2988
    %v2990 = vpop.f32.mrf.mxu0
    %v2991 = vadd.f32 %v2864, %v2990
    %2992 = vmatmul.bf16.gmra.mxu0 %v2960
    %v2993 = vpop.f32.mrf.mxu0
    %v2994 = vadd.f32 %v2869, %v2993
    %v2995 = vpop.f32.mrf.mxu0
    %v2996 = vadd.f32 %v2874, %v2995
    %2997 = vmatmul.bf16.gmra.mxu0 %v2961
    %v2998 = vpop.f32.mrf.mxu0
    %v2999 = vadd.f32 %v2879, %v2998
    %v3000 = vpop.f32.mrf.mxu0
    %v3001 = vadd.f32 %v2884, %v3000
    %3002 = vmatmul.bf16.gmra.mxu0 %v2962
    %v3003 = vpop.f32.mrf.mxu0
    %v3004 = vadd.f32 %v2889, %v3003
    %v3005 = vpop.f32.mrf.mxu0
    %v3006 = vadd.f32 %v2894, %v3005
    %3007 = vmatmul.bf16.gmra.mxu0 %v2963
    %v3008 = vpop.f32.mrf.mxu0
    %v3009 = vadd.f32 %v2899, %v3008
    %v3010 = vpop.f32.mrf.mxu0
    %v3011 = vadd.f32 %v2904, %v3010
    %3012 = vmatmul.bf16.gmra.mxu0 %v2964
    %v3013 = vpop.f32.mrf.mxu0
    %v3014 = vadd.f32 %v2909, %v3013
    %v3015 = vpop.f32.mrf.mxu0
    %v3016 = vadd.f32 %v2914, %v3015
    %3017 = vmatmul.bf16.gmra.mxu0 %v2965
    %v3018 = vpop.f32.mrf.mxu0
    %v3019 = vadd.f32 %v2919, %v3018
    %v3020 = vpop.f32.mrf.mxu0
    %v3021 = vadd.f32 %v2924, %v3020
    %3022 = vdwg.mxu0
    %v3023 = vpack.c.bf16 %v2984, %v2984
    %v3024 = vpack.c.bf16 %v2986, %v2986
    %v3025 = vpack.c.bf16 %v2989, %v2989
    %v3026 = vpack.c.bf16 %v2991, %v2991
    %v3027 = vpack.c.bf16 %v2994, %v2994
    %v3028 = vpack.c.bf16 %v2996, %v2996
    %v3029 = vpack.c.bf16 %v2999, %v2999
    %v3030 = vpack.c.bf16 %v3001, %v3001
    %v3031 = vpack.c.bf16 %v3004, %v3004
    %v3032 = vpack.c.bf16 %v3006, %v3006
    %v3033 = vpack.c.bf16 %v3009, %v3009
    %v3034 = vpack.c.bf16 %v3011, %v3011
    %v3035 = vpack.c.bf16 %v3014, %v3014
    %v3036 = vpack.c.bf16 %v3016, %v3016
    %v3037 = vpack.c.bf16 %v3019, %v3019
    %v3038 = vpack.c.bf16 %v3021, %v3021
    %v3039 = vunpack.c.l.bf16 %v3023
    %v3040 = vunpack.c.l.bf16 %v3024
    %v3041 = vunpack.c.l.bf16 %v3025
    %v3042 = vunpack.c.l.bf16 %v3026
    %v3043 = vunpack.c.l.bf16 %v3027
    %v3044 = vunpack.c.l.bf16 %v3028
    %v3045 = vunpack.c.l.bf16 %v3029
    %v3046 = vunpack.c.l.bf16 %v3030
    %v3047 = vunpack.c.l.bf16 %v3031
    %v3048 = vunpack.c.l.bf16 %v3032
    %v3049 = vunpack.c.l.bf16 %v3033
    %v3050 = vunpack.c.l.bf16 %v3034
    %v3051 = vunpack.c.l.bf16 %v3035
    %v3052 = vunpack.c.l.bf16 %v3036
    %v3053 = vunpack.c.l.bf16 %v3037
    %v3054 = vunpack.c.l.bf16 %v3038
    %v3055 = vmul.f32 %v3039, 0.5
    %v3056 = vmul.f32 %v3040, 0.5
    %v3057 = vmul.f32 %v3041, 0.5
    %v3058 = vmul.f32 %v3042, 0.5
    %v3059 = vmul.f32 %v3043, 0.5
    %v3060 = vmul.f32 %v3044, 0.5
    %v3061 = vmul.f32 %v3045, 0.5
    %v3062 = vmul.f32 %v3046, 0.5
    %v3063 = vmul.f32 %v3047, 0.5
    %v3064 = vmul.f32 %v3048, 0.5
    %v3065 = vmul.f32 %v3049, 0.5
    %v3066 = vmul.f32 %v3050, 0.5
    %v3067 = vmul.f32 %v3051, 0.5
    %v3068 = vmul.f32 %v3052, 0.5
    %v3069 = vmul.f32 %v3053, 0.5
    %v3070 = vmul.f32 %v3054, 0.5
    %v3071 = vpack.c.bf16 %v3055, %v3055
    %v3072 = vpack.c.bf16 %v3056, %v3056
    %v3073 = vpack.c.bf16 %v3057, %v3057
    %v3074 = vpack.c.bf16 %v3058, %v3058
    %v3075 = vpack.c.bf16 %v3059, %v3059
    %v3076 = vpack.c.bf16 %v3060, %v3060
    %v3077 = vpack.c.bf16 %v3061, %v3061
    %v3078 = vpack.c.bf16 %v3062, %v3062
    %v3079 = vpack.c.bf16 %v3063, %v3063
    %v3080 = vpack.c.bf16 %v3064, %v3064
    %v3081 = vpack.c.bf16 %v3065, %v3065
    %v3082 = vpack.c.bf16 %v3066, %v3066
    %v3083 = vpack.c.bf16 %v3067, %v3067
    %v3084 = vpack.c.bf16 %v3068, %v3068
    %v3085 = vpack.c.bf16 %v3069, %v3069
    %v3086 = vpack.c.bf16 %v3070, %v3070
    %v3087 = vunpack.c.l.bf16 %v3071
    %v3088 = vunpack.c.l.bf16 %v3072
    %v3089 = vunpack.c.l.bf16 %v3073
    %v3090 = vunpack.c.l.bf16 %v3074
    %v3091 = vunpack.c.l.bf16 %v3075
    %v3092 = vunpack.c.l.bf16 %v3076
    %v3093 = vunpack.c.l.bf16 %v3077
    %v3094 = vunpack.c.l.bf16 %v3078
    %v3095 = vunpack.c.l.bf16 %v3079
    %v3096 = vunpack.c.l.bf16 %v3080
    %v3097 = vunpack.c.l.bf16 %v3081
    %v3098 = vunpack.c.l.bf16 %v3082
    %v3099 = vunpack.c.l.bf16 %v3083
    %v3100 = vunpack.c.l.bf16 %v3084
    %v3101 = vunpack.c.l.bf16 %v3085
    %v3102 = vunpack.c.l.bf16 %v3086
    %v3103 = vtanh.pop %v3087
    %v3104 = vtanh.pop %v3088
    %v3105 = vtanh.pop %v3089
    %v3106 = vtanh.pop %v3090
    %v3107 = vtanh.pop %v3091
    %v3108 = vtanh.pop %v3092
    %v3109 = vtanh.pop %v3093
    %v3110 = vtanh.pop %v3094
    %v3111 = vtanh.pop %v3095
    %v3112 = vtanh.pop %v3096
    %v3113 = vtanh.pop %v3097
    %v3114 = vtanh.pop %v3098
    %v3115 = vtanh.pop %v3099
    %v3116 = vtanh.pop %v3100
    %v3117 = vtanh.pop %v3101
    %v3118 = vtanh.pop %v3102
    %v3119 = vpack.c.bf16 %v3103, %v3103
    %v3120 = vpack.c.bf16 %v3104, %v3104
    %v3121 = vpack.c.bf16 %v3105, %v3105
    %v3122 = vpack.c.bf16 %v3106, %v3106
    %v3123 = vpack.c.bf16 %v3107, %v3107
    %v3124 = vpack.c.bf16 %v3108, %v3108
    %v3125 = vpack.c.bf16 %v3109, %v3109
    %v3126 = vpack.c.bf16 %v3110, %v3110
    %v3127 = vpack.c.bf16 %v3111, %v3111
    %v3128 = vpack.c.bf16 %v3112, %v3112
    %v3129 = vpack.c.bf16 %v3113, %v3113
    %v3130 = vpack.c.bf16 %v3114, %v3114
    %v3131 = vpack.c.bf16 %v3115, %v3115
    %v3132 = vpack.c.bf16 %v3116, %v3116
    %v3133 = vpack.c.bf16 %v3117, %v3117
    %v3134 = vpack.c.bf16 %v3118, %v3118
    %v3135 = vunpack.c.l.bf16 %v3119
    %v3136 = vunpack.c.l.bf16 %v3120
    %v3137 = vunpack.c.l.bf16 %v3121
    %v3138 = vunpack.c.l.bf16 %v3122
    %v3139 = vunpack.c.l.bf16 %v3123
    %v3140 = vunpack.c.l.bf16 %v3124
    %v3141 = vunpack.c.l.bf16 %v3125
    %v3142 = vunpack.c.l.bf16 %v3126
    %v3143 = vunpack.c.l.bf16 %v3127
    %v3144 = vunpack.c.l.bf16 %v3128
    %v3145 = vunpack.c.l.bf16 %v3129
    %v3146 = vunpack.c.l.bf16 %v3130
    %v3147 = vunpack.c.l.bf16 %v3131
    %v3148 = vunpack.c.l.bf16 %v3132
    %v3149 = vunpack.c.l.bf16 %v3133
    %v3150 = vunpack.c.l.bf16 %v3134
    %v3151 = vmul.f32 %v3135, 0.5
    %v3152 = vmul.f32 %v3136, 0.5
    %v3153 = vmul.f32 %v3137, 0.5
    %v3154 = vmul.f32 %v3138, 0.5
    %v3155 = vmul.f32 %v3139, 0.5
    %v3156 = vmul.f32 %v3140, 0.5
    %v3157 = vmul.f32 %v3141, 0.5
    %v3158 = vmul.f32 %v3142, 0.5
    %v3159 = vmul.f32 %v3143, 0.5
    %v3160 = vmul.f32 %v3144, 0.5
    %v3161 = vmul.f32 %v3145, 0.5
    %v3162 = vmul.f32 %v3146, 0.5
    %v3163 = vmul.f32 %v3147, 0.5
    %v3164 = vmul.f32 %v3148, 0.5
    %v3165 = vmul.f32 %v3149, 0.5
    %v3166 = vmul.f32 %v3150, 0.5
    %v3167 = vpack.c.bf16 %v3151, %v3151
    %v3168 = vpack.c.bf16 %v3152, %v3152
    %v3169 = vpack.c.bf16 %v3153, %v3153
    %v3170 = vpack.c.bf16 %v3154, %v3154
    %v3171 = vpack.c.bf16 %v3155, %v3155
    %v3172 = vpack.c.bf16 %v3156, %v3156
    %v3173 = vpack.c.bf16 %v3157, %v3157
    %v3174 = vpack.c.bf16 %v3158, %v3158
    %v3175 = vpack.c.bf16 %v3159, %v3159
    %v3176 = vpack.c.bf16 %v3160, %v3160
    %v3177 = vpack.c.bf16 %v3161, %v3161
    %v3178 = vpack.c.bf16 %v3162, %v3162
    %v3179 = vpack.c.bf16 %v3163, %v3163
    %v3180 = vpack.c.bf16 %v3164, %v3164
    %v3181 = vpack.c.bf16 %v3165, %v3165
    %v3182 = vpack.c.bf16 %v3166, %v3166
    %v3183 = vunpack.c.l.bf16 %v3167
    %v3184 = vunpack.c.l.bf16 %v3168
    %v3185 = vunpack.c.l.bf16 %v3169
    %v3186 = vunpack.c.l.bf16 %v3170
    %v3187 = vunpack.c.l.bf16 %v3171
    %v3188 = vunpack.c.l.bf16 %v3172
    %v3189 = vunpack.c.l.bf16 %v3173
    %v3190 = vunpack.c.l.bf16 %v3174
    %v3191 = vunpack.c.l.bf16 %v3175
    %v3192 = vunpack.c.l.bf16 %v3176
    %v3193 = vunpack.c.l.bf16 %v3177
    %v3194 = vunpack.c.l.bf16 %v3178
    %v3195 = vunpack.c.l.bf16 %v3179
    %v3196 = vunpack.c.l.bf16 %v3180
    %v3197 = vunpack.c.l.bf16 %v3181
    %v3198 = vunpack.c.l.bf16 %v3182
    %v3199 = vadd.f32 %v3183, 0.5
    %v3200 = vadd.f32 %v3184, 0.5
    %v3201 = vadd.f32 %v3185, 0.5
    %v3202 = vadd.f32 %v3186, 0.5
    %v3203 = vadd.f32 %v3187, 0.5
    %v3204 = vadd.f32 %v3188, 0.5
    %v3205 = vadd.f32 %v3189, 0.5
    %v3206 = vadd.f32 %v3190, 0.5
    %v3207 = vadd.f32 %v3191, 0.5
    %v3208 = vadd.f32 %v3192, 0.5
    %v3209 = vadd.f32 %v3193, 0.5
    %v3210 = vadd.f32 %v3194, 0.5
    %v3211 = vadd.f32 %v3195, 0.5
    %v3212 = vadd.f32 %v3196, 0.5
    %v3213 = vadd.f32 %v3197, 0.5
    %v3214 = vadd.f32 %v3198, 0.5
    %v3215 = vpack.c.bf16 %v3200, %v3199
    %v3216 = vpack.c.bf16 %v3202, %v3201
    %v3217 = vpack.c.bf16 %v3204, %v3203
    %v3218 = vpack.c.bf16 %v3206, %v3205
    %v3219 = vpack.c.bf16 %v3208, %v3207
    %v3220 = vpack.c.bf16 %v3210, %v3209
    %v3221 = vpack.c.bf16 %v3212, %v3211
    %v3222 = vpack.c.bf16 %v3214, %v3213
    %v3223 = vld [vmem:[%s14] sm:$0xf]
    %v3224 = vld [vmem:[%s14 + $0x4] sm:$0xf]
    %v3225 = vld [vmem:[%s14 + $0x8] sm:$0xf]
    %v3226 = vld [vmem:[%s14 + $0xc] sm:$0xf]
    %v3227 = vld [vmem:[%s14 + $0x10] sm:$0xf]
    %v3228 = vld [vmem:[%s14 + $0x14] sm:$0xf]
    %v3229 = vld [vmem:[%s14 + $0x18] sm:$0xf]
    %v3230 = vld [vmem:[%s14 + $0x1c] sm:$0xf]
    %v3231 = vld [vmem:[%s14 + $0x20] sm:$0xf]
    %v3232 = vld [vmem:[%s14 + $0x24] sm:$0xf]
    %v3233 = vld [vmem:[%s14 + $0x28] sm:$0xf]
    %v3234 = vld [vmem:[%s14 + $0x2c] sm:$0xf]
    %v3235 = vld [vmem:[%s14 + $0x30] sm:$0xf]
    %v3236 = vld [vmem:[%s14 + $0x34] sm:$0xf]
    %v3237 = vld [vmem:[%s14 + $0x38] sm:$0xf]
    %v3238 = vld [vmem:[%s14 + $0x3c] sm:$0xf]
    %v3239 = vld [vmem:[%s15] sm:$0xff]
    %v3240 = vld [vmem:[%s15 + $0x8] sm:$0xff]
    %v3241 = vld [vmem:[%s15 + $0x10] sm:$0xff]
    %v3242 = vld [vmem:[%s15 + $0x18] sm:$0xff]
    %v3243 = vld [vmem:[%s15 + $0x20] sm:$0xff]
    %v3244 = vld [vmem:[%s15 + $0x28] sm:$0xff]
    %v3245 = vld [vmem:[%s15 + $0x30] sm:$0xff]
    %v3246 = vld [vmem:[%s15 + $0x38] sm:$0xff]
    %v3247 = vld [vmem:[%s15 + $0x40] sm:$0xff]
    %v3248 = vld [vmem:[%s15 + $0x48] sm:$0xff]
    %v3249 = vld [vmem:[%s15 + $0x50] sm:$0xff]
    %v3250 = vld [vmem:[%s15 + $0x58] sm:$0xff]
    %v3251 = vld [vmem:[%s15 + $0x60] sm:$0xff]
    %v3252 = vld [vmem:[%s15 + $0x68] sm:$0xff]
    %v3253 = vld [vmem:[%s15 + $0x70] sm:$0xff]
    %v3254 = vld [vmem:[%s15 + $0x78] sm:$0xff]
    %3256 = vset.pattern.permute.xlu0 0
    %3257 = vperm.xlu0 %3256, %v3239
    %v3258 = vpop.permute.xlu0 %3257
    %3261 = vset.pattern.permute.xlu0 0
    %3262 = vperm.xlu0 %3261, %v3240
    %v3263 = vpop.permute.xlu0 %3262
    %3266 = vset.pattern.permute.xlu0 0
    %3267 = vperm.xlu0 %3266, %v3241
    %v3268 = vpop.permute.xlu0 %3267
    %3271 = vset.pattern.permute.xlu0 0
    %3272 = vperm.xlu0 %3271, %v3242
    %v3273 = vpop.permute.xlu0 %3272
    %3276 = vset.pattern.permute.xlu0 0
    %3277 = vperm.xlu0 %3276, %v3243
    %v3278 = vpop.permute.xlu0 %3277
    %3281 = vset.pattern.permute.xlu0 0
    %3282 = vperm.xlu0 %3281, %v3244
    %v3283 = vpop.permute.xlu0 %3282
    %3286 = vset.pattern.permute.xlu0 0
    %3287 = vperm.xlu0 %3286, %v3245
    %v3288 = vpop.permute.xlu0 %3287
    %3291 = vset.pattern.permute.xlu0 0
    %3292 = vperm.xlu0 %3291, %v3246
    %v3293 = vpop.permute.xlu0 %3292
    %3296 = vset.pattern.permute.xlu0 0
    %3297 = vperm.xlu0 %3296, %v3247
    %v3298 = vpop.permute.xlu0 %3297
    %3301 = vset.pattern.permute.xlu0 0
    %3302 = vperm.xlu0 %3301, %v3248
    %v3303 = vpop.permute.xlu0 %3302
    %3306 = vset.pattern.permute.xlu0 0
    %3307 = vperm.xlu0 %3306, %v3249
    %v3308 = vpop.permute.xlu0 %3307
    %3311 = vset.pattern.permute.xlu0 0
    %3312 = vperm.xlu0 %3311, %v3250
    %v3313 = vpop.permute.xlu0 %3312
    %3316 = vset.pattern.permute.xlu0 0
    %3317 = vperm.xlu0 %3316, %v3251
    %v3318 = vpop.permute.xlu0 %3317
    %3321 = vset.pattern.permute.xlu0 0
    %3322 = vperm.xlu0 %3321, %v3252
    %v3323 = vpop.permute.xlu0 %3322
    %3326 = vset.pattern.permute.xlu0 0
    %3327 = vperm.xlu0 %3326, %v3253
    %v3328 = vpop.permute.xlu0 %3327
    %3331 = vset.pattern.permute.xlu0 0
    %3332 = vperm.xlu0 %3331, %v3254
    %v3333 = vpop.permute.xlu0 %3332
    %v3351 = vunpack.c.l.b16 %v3223
    %v3352 = vunpack.c.l.b16 %v3224
    %v3353 = vunpack.c.l.b16 %v3225
    %v3354 = vunpack.c.l.b16 %v3226
    %v3355 = vunpack.c.l.b16 %v3227
    %v3356 = vunpack.c.l.b16 %v3228
    %v3357 = vunpack.c.l.b16 %v3229
    %v3358 = vunpack.c.l.b16 %v3230
    %v3359 = vunpack.c.l.b16 %v3231
    %v3360 = vunpack.c.l.b16 %v3232
    %v3361 = vunpack.c.l.b16 %v3233
    %v3362 = vunpack.c.l.b16 %v3234
    %v3363 = vunpack.c.l.b16 %v3235
    %v3364 = vunpack.c.l.b16 %v3236
    %v3365 = vunpack.c.l.b16 %v3237
    %v3366 = vunpack.c.l.b16 %v3238
    %v3367 = vpack.c.b16 %v3352, %v3351
    %v3368 = vpack.c.b16 %v3354, %v3353
    %v3369 = vpack.c.b16 %v3356, %v3355
    %v3370 = vpack.c.b16 %v3358, %v3357
    %v3371 = vpack.c.b16 %v3360, %v3359
    %v3372 = vpack.c.b16 %v3362, %v3361
    %v3373 = vpack.c.b16 %v3364, %v3363
    %v3374 = vpack.c.b16 %v3366, %v3365
    %3383 = vmatpush.bf16.msra.mxu0 %v3222
    %3384 = vmatpush.bf16.msra.mxu0 %v3221
    %3385 = vmatpush.bf16.msra.mxu0 %v3220
    %3386 = vmatpush.bf16.msra.mxu0 %v3219
    %3387 = vmatpush.bf16.msra.mxu0 %v3218
    %3388 = vmatpush.bf16.msra.mxu0 %v3217
    %3389 = vmatpush.bf16.msra.mxu0 %v3216
    %3390 = vmatpush.bf16.msra.mxu0 %v3215
    %3391 = vmatmul.bf16.gmra.mxu0 %v3367
    %v3392 = vpop.f32.mrf.mxu0
    %v3393 = vadd.f32 %v3258, %v3392
    %v3394 = vpop.f32.mrf.mxu0
    %v3395 = vadd.f32 %v3263, %v3394
    %3396 = vmatmul.bf16.gmra.mxu0 %v3368
    %v3397 = vpop.f32.mrf.mxu0
    %v3398 = vadd.f32 %v3268, %v3397
    %v3399 = vpop.f32.mrf.mxu0
    %v3400 = vadd.f32 %v3273, %v3399
    %3401 = vmatmul.bf16.gmra.mxu0 %v3369
    %v3402 = vpop.f32.mrf.mxu0
    %v3403 = vadd.f32 %v3278, %v3402
    %v3404 = vpop.f32.mrf.mxu0
    %v3405 = vadd.f32 %v3283, %v3404
    %3406 = vmatmul.bf16.gmra.mxu0 %v3370
    %v3407 = vpop.f32.mrf.mxu0
    %v3408 = vadd.f32 %v3288, %v3407
    %v3409 = vpop.f32.mrf.mxu0
    %v3410 = vadd.f32 %v3293, %v3409
    %3411 = vmatmul.bf16.gmra.mxu0 %v3371
    %v3412 = vpop.f32.mrf.mxu0
    %v3413 = vadd.f32 %v3298, %v3412
    %v3414 = vpop.f32.mrf.mxu0
    %v3415 = vadd.f32 %v3303, %v3414
    %3416 = vmatmul.bf16.gmra.mxu0 %v3372
    %v3417 = vpop.f32.mrf.mxu0
    %v3418 = vadd.f32 %v3308, %v3417
    %v3419 = vpop.f32.mrf.mxu0
    %v3420 = vadd.f32 %v3313, %v3419
    %3421 = vmatmul.bf16.gmra.mxu0 %v3373
    %v3422 = vpop.f32.mrf.mxu0
    %v3423 = vadd.f32 %v3318, %v3422
    %v3424 = vpop.f32.mrf.mxu0
    %v3425 = vadd.f32 %v3323, %v3424
    %3426 = vmatmul.bf16.gmra.mxu0 %v3374
    %v3427 = vpop.f32.mrf.mxu0
    %v3428 = vadd.f32 %v3328, %v3427
    %v3429 = vpop.f32.mrf.mxu0
    %v3430 = vadd.f32 %v3333, %v3429
    %3431 = vdwg.mxu0
    %v3432 = vpack.c.bf16 %v3393, %v3393
    %v3433 = vpack.c.bf16 %v3395, %v3395
    %v3434 = vpack.c.bf16 %v3398, %v3398
    %v3435 = vpack.c.bf16 %v3400, %v3400
    %v3436 = vpack.c.bf16 %v3403, %v3403
    %v3437 = vpack.c.bf16 %v3405, %v3405
    %v3438 = vpack.c.bf16 %v3408, %v3408
    %v3439 = vpack.c.bf16 %v3410, %v3410
    %v3440 = vpack.c.bf16 %v3413, %v3413
    %v3441 = vpack.c.bf16 %v3415, %v3415
    %v3442 = vpack.c.bf16 %v3418, %v3418
    %v3443 = vpack.c.bf16 %v3420, %v3420
    %v3444 = vpack.c.bf16 %v3423, %v3423
    %v3445 = vpack.c.bf16 %v3425, %v3425
    %v3446 = vpack.c.bf16 %v3428, %v3428
    %v3447 = vpack.c.bf16 %v3430, %v3430
    %v3448 = vunpack.c.l.bf16 %v3432
    %v3449 = vunpack.c.l.bf16 %v3433
    %v3450 = vunpack.c.l.bf16 %v3434
    %v3451 = vunpack.c.l.bf16 %v3435
    %v3452 = vunpack.c.l.bf16 %v3436
    %v3453 = vunpack.c.l.bf16 %v3437
    %v3454 = vunpack.c.l.bf16 %v3438
    %v3455 = vunpack.c.l.bf16 %v3439
    %v3456 = vunpack.c.l.bf16 %v3440
    %v3457 = vunpack.c.l.bf16 %v3441
    %v3458 = vunpack.c.l.bf16 %v3442
    %v3459 = vunpack.c.l.bf16 %v3443
    %v3460 = vunpack.c.l.bf16 %v3444
    %v3461 = vunpack.c.l.bf16 %v3445
    %v3462 = vunpack.c.l.bf16 %v3446
    %v3463 = vunpack.c.l.bf16 %v3447
    %v3464 = vmul.f32 %v3448, 0.5
    %v3465 = vmul.f32 %v3449, 0.5
    %v3466 = vmul.f32 %v3450, 0.5
    %v3467 = vmul.f32 %v3451, 0.5
    %v3468 = vmul.f32 %v3452, 0.5
    %v3469 = vmul.f32 %v3453, 0.5
    %v3470 = vmul.f32 %v3454, 0.5
    %v3471 = vmul.f32 %v3455, 0.5
    %v3472 = vmul.f32 %v3456, 0.5
    %v3473 = vmul.f32 %v3457, 0.5
    %v3474 = vmul.f32 %v3458, 0.5
    %v3475 = vmul.f32 %v3459, 0.5
    %v3476 = vmul.f32 %v3460, 0.5
    %v3477 = vmul.f32 %v3461, 0.5
    %v3478 = vmul.f32 %v3462, 0.5
    %v3479 = vmul.f32 %v3463, 0.5
    %v3480 = vpack.c.bf16 %v3464, %v3464
    %v3481 = vpack.c.bf16 %v3465, %v3465
    %v3482 = vpack.c.bf16 %v3466, %v3466
    %v3483 = vpack.c.bf16 %v3467, %v3467
    %v3484 = vpack.c.bf16 %v3468, %v3468
    %v3485 = vpack.c.bf16 %v3469, %v3469
    %v3486 = vpack.c.bf16 %v3470, %v3470
    %v3487 = vpack.c.bf16 %v3471, %v3471
    %v3488 = vpack.c.bf16 %v3472, %v3472
    %v3489 = vpack.c.bf16 %v3473, %v3473
    %v3490 = vpack.c.bf16 %v3474, %v3474
    %v3491 = vpack.c.bf16 %v3475, %v3475
    %v3492 = vpack.c.bf16 %v3476, %v3476
    %v3493 = vpack.c.bf16 %v3477, %v3477
    %v3494 = vpack.c.bf16 %v3478, %v3478
    %v3495 = vpack.c.bf16 %v3479, %v3479
    %v3496 = vunpack.c.l.bf16 %v3480
    %v3497 = vunpack.c.l.bf16 %v3481
    %v3498 = vunpack.c.l.bf16 %v3482
    %v3499 = vunpack.c.l.bf16 %v3483
    %v3500 = vunpack.c.l.bf16 %v3484
    %v3501 = vunpack.c.l.bf16 %v3485
    %v3502 = vunpack.c.l.bf16 %v3486
    %v3503 = vunpack.c.l.bf16 %v3487
    %v3504 = vunpack.c.l.bf16 %v3488
    %v3505 = vunpack.c.l.bf16 %v3489
    %v3506 = vunpack.c.l.bf16 %v3490
    %v3507 = vunpack.c.l.bf16 %v3491
    %v3508 = vunpack.c.l.bf16 %v3492
    %v3509 = vunpack.c.l.bf16 %v3493
    %v3510 = vunpack.c.l.bf16 %v3494
    %v3511 = vunpack.c.l.bf16 %v3495
    %v3512 = vtanh.pop %v3496
    %v3513 = vtanh.pop %v3497
    %v3514 = vtanh.pop %v3498
    %v3515 = vtanh.pop %v3499
    %v3516 = vtanh.pop %v3500
    %v3517 = vtanh.pop %v3501
    %v3518 = vtanh.pop %v3502
    %v3519 = vtanh.pop %v3503
    %v3520 = vtanh.pop %v3504
    %v3521 = vtanh.pop %v3505
    %v3522 = vtanh.pop %v3506
    %v3523 = vtanh.pop %v3507
    %v3524 = vtanh.pop %v3508
    %v3525 = vtanh.pop %v3509
    %v3526 = vtanh.pop %v3510
    %v3527 = vtanh.pop %v3511
    %v3528 = vpack.c.bf16 %v3512, %v3512
    %v3529 = vpack.c.bf16 %v3513, %v3513
    %v3530 = vpack.c.bf16 %v3514, %v3514
    %v3531 = vpack.c.bf16 %v3515, %v3515
    %v3532 = vpack.c.bf16 %v3516, %v3516
    %v3533 = vpack.c.bf16 %v3517, %v3517
    %v3534 = vpack.c.bf16 %v3518, %v3518
    %v3535 = vpack.c.bf16 %v3519, %v3519
    %v3536 = vpack.c.bf16 %v3520, %v3520
    %v3537 = vpack.c.bf16 %v3521, %v3521
    %v3538 = vpack.c.bf16 %v3522, %v3522
    %v3539 = vpack.c.bf16 %v3523, %v3523
    %v3540 = vpack.c.bf16 %v3524, %v3524
    %v3541 = vpack.c.bf16 %v3525, %v3525
    %v3542 = vpack.c.bf16 %v3526, %v3526
    %v3543 = vpack.c.bf16 %v3527, %v3527
    %v3544 = vunpack.c.l.bf16 %v3528
    %v3545 = vunpack.c.l.bf16 %v3529
    %v3546 = vunpack.c.l.bf16 %v3530
    %v3547 = vunpack.c.l.bf16 %v3531
    %v3548 = vunpack.c.l.bf16 %v3532
    %v3549 = vunpack.c.l.bf16 %v3533
    %v3550 = vunpack.c.l.bf16 %v3534
    %v3551 = vunpack.c.l.bf16 %v3535
    %v3552 = vunpack.c.l.bf16 %v3536
    %v3553 = vunpack.c.l.bf16 %v3537
    %v3554 = vunpack.c.l.bf16 %v3538
    %v3555 = vunpack.c.l.bf16 %v3539
    %v3556 = vunpack.c.l.bf16 %v3540
    %v3557 = vunpack.c.l.bf16 %v3541
    %v3558 = vunpack.c.l.bf16 %v3542
    %v3559 = vunpack.c.l.bf16 %v3543
    %v3560 = vmul.f32 %v3544, 0.5
    %v3561 = vmul.f32 %v3545, 0.5
    %v3562 = vmul.f32 %v3546, 0.5
    %v3563 = vmul.f32 %v3547, 0.5
    %v3564 = vmul.f32 %v3548, 0.5
    %v3565 = vmul.f32 %v3549, 0.5
    %v3566 = vmul.f32 %v3550, 0.5
    %v3567 = vmul.f32 %v3551, 0.5
    %v3568 = vmul.f32 %v3552, 0.5
    %v3569 = vmul.f32 %v3553, 0.5
    %v3570 = vmul.f32 %v3554, 0.5
    %v3571 = vmul.f32 %v3555, 0.5
    %v3572 = vmul.f32 %v3556, 0.5
    %v3573 = vmul.f32 %v3557, 0.5
    %v3574 = vmul.f32 %v3558, 0.5
    %v3575 = vmul.f32 %v3559, 0.5
    %v3576 = vpack.c.bf16 %v3560, %v3560
    %v3577 = vpack.c.bf16 %v3561, %v3561
    %v3578 = vpack.c.bf16 %v3562, %v3562
    %v3579 = vpack.c.bf16 %v3563, %v3563
    %v3580 = vpack.c.bf16 %v3564, %v3564
    %v3581 = vpack.c.bf16 %v3565, %v3565
    %v3582 = vpack.c.bf16 %v3566, %v3566
    %v3583 = vpack.c.bf16 %v3567, %v3567
    %v3584 = vpack.c.bf16 %v3568, %v3568
    %v3585 = vpack.c.bf16 %v3569, %v3569
    %v3586 = vpack.c.bf16 %v3570, %v3570
    %v3587 = vpack.c.bf16 %v3571, %v3571
    %v3588 = vpack.c.bf16 %v3572, %v3572
    %v3589 = vpack.c.bf16 %v3573, %v3573
    %v3590 = vpack.c.bf16 %v3574, %v3574
    %v3591 = vpack.c.bf16 %v3575, %v3575
    %v3592 = vunpack.c.l.bf16 %v3576
    %v3593 = vunpack.c.l.bf16 %v3577
    %v3594 = vunpack.c.l.bf16 %v3578
    %v3595 = vunpack.c.l.bf16 %v3579
    %v3596 = vunpack.c.l.bf16 %v3580
    %v3597 = vunpack.c.l.bf16 %v3581
    %v3598 = vunpack.c.l.bf16 %v3582
    %v3599 = vunpack.c.l.bf16 %v3583
    %v3600 = vunpack.c.l.bf16 %v3584
    %v3601 = vunpack.c.l.bf16 %v3585
    %v3602 = vunpack.c.l.bf16 %v3586
    %v3603 = vunpack.c.l.bf16 %v3587
    %v3604 = vunpack.c.l.bf16 %v3588
    %v3605 = vunpack.c.l.bf16 %v3589
    %v3606 = vunpack.c.l.bf16 %v3590
    %v3607 = vunpack.c.l.bf16 %v3591
    %v3608 = vadd.f32 %v3592, 0.5
    %v3609 = vadd.f32 %v3593, 0.5
    %v3610 = vadd.f32 %v3594, 0.5
    %v3611 = vadd.f32 %v3595, 0.5
    %v3612 = vadd.f32 %v3596, 0.5
    %v3613 = vadd.f32 %v3597, 0.5
    %v3614 = vadd.f32 %v3598, 0.5
    %v3615 = vadd.f32 %v3599, 0.5
    %v3616 = vadd.f32 %v3600, 0.5
    %v3617 = vadd.f32 %v3601, 0.5
    %v3618 = vadd.f32 %v3602, 0.5
    %v3619 = vadd.f32 %v3603, 0.5
    %v3620 = vadd.f32 %v3604, 0.5
    %v3621 = vadd.f32 %v3605, 0.5
    %v3622 = vadd.f32 %v3606, 0.5
    %v3623 = vadd.f32 %v3607, 0.5
    %v3624 = vpack.c.bf16 %v3609, %v3608
    %v3625 = vpack.c.bf16 %v3611, %v3610
    %v3626 = vpack.c.bf16 %v3613, %v3612
    %v3627 = vpack.c.bf16 %v3615, %v3614
    %v3628 = vpack.c.bf16 %v3617, %v3616
    %v3629 = vpack.c.bf16 %v3619, %v3618
    %v3630 = vpack.c.bf16 %v3621, %v3620
    %v3631 = vpack.c.bf16 %v3623, %v3622
    %v3632 = vld [vmem:[%s16] sm:$0x1]
    %v3633 = vld [vmem:[#allocation3] sm:$0x1]
    %3635 = vset.pattern.permute.xlu0 0
    %3636 = vperm.xlu0 %3635, %v3633
    %v3637 = vpop.permute.xlu0 %3636
    %v3639 = vperm.slane %v3637, 0
    %3640 = vmatpush.bf16.msra.mxu0 %v3631
    %3641 = vmatpush.bf16.msra.mxu0 %v3630
    %3642 = vmatpush.bf16.msra.mxu0 %v3629
    %3643 = vmatpush.bf16.msra.mxu0 %v3628
    %3644 = vmatpush.bf16.msra.mxu0 %v3627
    %3645 = vmatpush.bf16.msra.mxu0 %v3626
    %3646 = vmatpush.bf16.msra.mxu0 %v3625
    %3647 = vmatpush.bf16.msra.mxu0 %v3624
    %3648 = vmatmul.bf16.gmra.mxu0 %v3632
    %v3649 = vpop.f32.mrf.mxu0
    %v3650 = vadd.f32 %v3639, %v3649
    %v3651 = vpop.f32.mrf.mxu0
    %3652 = vdwg.mxu0
    %v3653 = vadd.f32 %v2386, %v3650
    %v3654 = vsub.f32 %v2383, %v3653
    %v3655 = vmul.f32 %v3654, 0.5
    %v3656 = vmul.f32 %v3655, %v3654
    %3657 = vst [vmem:[#allocation4] sm:$0x1] %v3656
    // Predicated region
    $region74: #{tpu_custom_call.1} parent=1 // pred_check
      _
    $region75: #{tpu_custom_call.1} parent=1 // pred_check_branch
      %3659 = sbr.rel (0) target = $region77
    $region76: #{tpu_custom_call.1} parent=1 // pred_region
      %3661 = vsyncadd [#allocation5], 0
      %s3663 = sshll.u32 [#allocation4], 4
      %s3664 = int_to_ptr.vmem [resolvable:$true] %s3663
      %s3665 = sshll.u32 %s18, 4
      %s3666 = int_to_ptr.hbm [resolvable:$true] %s3665
      %3668 = dma.vmem_to_hbm [thread:$0]  %s3664, 16, %s3666, [#allocation5]
    $region77: #{tpu_custom_call.1} parent=1 // pred_fallthru
      _
    // Predicated region
    $region78: #{tpu_custom_call.1} parent=1 // pred_check
      _
    $region79: #{tpu_custom_call.1} parent=1 // pred_check_branch
      %3670 = sbr.rel (0) target = $region81
    $region80: #{tpu_custom_call.1} parent=1 // pred_region
      %3672 = dma.done [#allocation5], 16
    $region81: #{tpu_custom_call.1} parent=1 // pred_fallthru
      _
    %3673 = vsyncpa [#allocation5], 1

</llo_original>
